<compile_context>
chip_gen: v6e
topology: v6e:2x2x1
jax: 0.10.0
libtpu: 0.0.40
codegen_flags: <defaults>
</compile_context>

<pallas_src>
import functools
import math

import jax
import jax.numpy as jnp
from jax.experimental import pallas as pl
from jax.experimental.pallas import tpu as pltpu


# ----------------------------------------------------------------------------
# helpers
# ----------------------------------------------------------------------------

def _pick_tile(n, cap):
    """Largest power-of-two tile <= cap that divides n (else the full extent)."""
    t = cap
    while t >= 8:
        if n % t == 0:
            return t
        t //= 2
    return n


def _pick_rows(Ho, Wo):
    """Output rows per inner MXU block in kernel 1: aim for M = R*Wo >= ~128."""
    if Wo % 8 != 0:
        return 1                      # layout-safe fallback (per-row dots)
    target = max(1, 128 // Wo)
    best = 1
    for r in range(1, Ho + 1):
        if Ho % r == 0 and r <= target:
            best = r
    return best


def _vmem_limit_bytes():
    """Generation-aware scoped-VMEM budget (~3/4 of physical VMEM)."""
    cap = 64 * 1024 * 1024
    try:
        info = pltpu.get_tpu_info()
        cap = int(getattr(info, "vmem_capacity_bytes", cap))
    except Exception:
        pass
    return max(16 * 1024 * 1024, (cap * 3) // 4)


# ----------------------------------------------------------------------------
# Kernel 1: direct 3x3 conv (stride 1, pad 1) + per-image BN partial statistics
# ----------------------------------------------------------------------------

def _conv3x3_stats_kernel(x_ref, w_ref, y_ref, s_ref, ss_ref, *, rows_per_block):
    # x_ref  : (1, Hp, Wp, Cin) padded image of one batch element   (bf16)
    # w_ref  : (3, 3, Cin, C)                                        (bf16)
    # y_ref  : (1, Ho*Wo, C)  conv output, flattened spatially       (bf16)
    # s_ref  : (1, 1, C)      per-image sum                          (f32)
    # ss_ref : (1, 1, C)      per-image sum of squares               (f32)
    _, Hp, Wp, Cin = x_ref.shape
    Ho, Wo = Hp - 2, Wp - 2
    C = y_ref.shape[-1]
    R = rows_per_block

    s_tot = jnp.zeros((1, C), jnp.float32)
    ss_tot = jnp.zeros((1, C), jnp.float32)

    for rb in range(Ho // R):
        r0 = rb * R
        # f32 accumulator for an (R*Wo, C) row block (modest vreg footprint).
        acc = jnp.zeros((R * Wo, C), jnp.float32)
        for ki in range(3):
            for kj in range(3):
                # static VMEM slice of the resident image, reshaped so the MXU
                # sees M = R*Wo rows per push.
                lhs = x_ref[0, r0 + ki:r0 + ki + R, kj:kj + Wo, :]
                acc = acc + jnp.dot(lhs.reshape(R * Wo, Cin), w_ref[ki, kj],
                                    preferred_element_type=jnp.float32)
        y_ref[0, r0 * Wo:(r0 + R) * Wo, :] = acc.astype(y_ref.dtype)
        s_tot = s_tot + jnp.sum(acc, axis=0, keepdims=True)
        ss_tot = ss_tot + jnp.sum(acc * acc, axis=0, keepdims=True)

    s_ref[0] = s_tot
    ss_ref[0] = ss_tot


def _conv3x3_pallas(xp, w3):
    """xp: (N, H+2, W+2, Cin) bf16 padded input; w3: (3, 3, Cin, C) bf16."""
    N, Hp, Wp, Cin = xp.shape
    Ho, Wo = Hp - 2, Wp - 2
    C = w3.shape[-1]
    R = _pick_rows(Ho, Wo)

    flops = 2 * N * Ho * Wo * 9 * Cin * C
    bytes_accessed = (xp.size + w3.size + N * Ho * Wo * C) * 2 + 2 * N * C * 4

    return pl.pallas_call(
        functools.partial(_conv3x3_stats_kernel, rows_per_block=R),
        out_shape=(
            jax.ShapeDtypeStruct((N, Ho * Wo, C), jnp.bfloat16),
            jax.ShapeDtypeStruct((N, 1, C), jnp.float32),
            jax.ShapeDtypeStruct((N, 1, C), jnp.float32),
        ),
        grid=(N,),
        in_specs=[
            # whole padded image of one batch element, read ONCE per step
            pl.BlockSpec((1, Hp, Wp, Cin), lambda n: (n, 0, 0, 0)),
            # tiny weight block, stays resident in VMEM across steps
            pl.BlockSpec((3, 3, Cin, C), lambda n: (0, 0, 0, 0)),
        ],
        out_specs=(
            pl.BlockSpec((1, Ho * Wo, C), lambda n: (n, 0, 0)),
            pl.BlockSpec((1, 1, C), lambda n: (n, 0, 0)),
            pl.BlockSpec((1, 1, C), lambda n: (n, 0, 0)),
        ),
        compiler_params=pltpu.CompilerParams(
            dimension_semantics=("parallel",),
            vmem_limit_bytes=_vmem_limit_bytes()),
        cost_estimate=pl.CostEstimate(flops=flops, transcendentals=0,
                                      bytes_accessed=bytes_accessed),
    )(xp, w3)


# ----------------------------------------------------------------------------
# Kernel 2: fused BN affine + PReLU + 1x1 conv (single-K-block tiled matmul)
# ----------------------------------------------------------------------------

def _bn_prelu_1x1_kernel(y_ref, sc_ref, sh_ref, al_ref, w_ref, o_ref):
    # y_ref : (tm, K) bf16; sc/sh/al: (1, K) f32; w_ref: (K, nOut) bf16
    # BN affine + PReLU prologue computed exactly once per LHS tile (f32 VPU,
    # accurate on all generations), then one bf16 MXU dot with f32 accumulation.
    z = y_ref[...].astype(jnp.float32) * sc_ref[...] + sh_ref[...]
    z = jnp.where(z > 0, z, al_ref[...] * z)
    o_ref[...] = jnp.dot(z.astype(jnp.bfloat16), w_ref[...],
                         preferred_element_type=jnp.float32).astype(o_ref.dtype)


def _bn_prelu_matmul_pallas(y, scale, shift, alpha, w1):
    """y: (M, K) bf16; scale/shift/alpha: (1, K) f32; w1: (K, nOut) bf16."""
    M, K = y.shape
    K2, Nc = w1.shape
    assert K == K2
    tm = _pick_tile(M, 256)           # >=2 grid steps at demo size (megacore)

    flops = 2 * M * K * Nc
    bytes_accessed = y.size * 2 + w1.size * 2 + M * Nc * 4 + 3 * K * 4

    return pl.pallas_call(
        _bn_prelu_1x1_kernel,
        out_shape=jax.ShapeDtypeStruct((M, Nc), jnp.float32),
        grid=(M // tm,),
        in_specs=[
            pl.BlockSpec((tm, K), lambda i: (i, 0)),
            pl.BlockSpec((1, K), lambda i: (0, 0)),
            pl.BlockSpec((1, K), lambda i: (0, 0)),
            pl.BlockSpec((1, K), lambda i: (0, 0)),
            pl.BlockSpec((K, Nc), lambda i: (0, 0)),
        ],
        out_specs=pl.BlockSpec((tm, Nc), lambda i: (i, 0)),
        compiler_params=pltpu.CompilerParams(
            dimension_semantics=("parallel",),
            vmem_limit_bytes=_vmem_limit_bytes()),
        cost_estimate=pl.CostEstimate(flops=flops, transcendentals=0,
                                      bytes_accessed=bytes_accessed),
    )(y, scale, shift, alpha, w1)


# ----------------------------------------------------------------------------
# conv3x3_resume forward
# ----------------------------------------------------------------------------

def conv3x3_resume_forward(params, x_nchw, eps=1e-3):
    """params: {'w3':(3,3,C,C), 'w1':(C,nOut), 'gamma','beta','alpha':(C,)}.
    x_nchw: (N, C, H, W) with C = nIn // 2.  Returns (N, nOut, H, W) f32."""
    C = params['w3'].shape[2]
    nOut = params['w1'].shape[1]

    # NCHW -> NHWC + bf16 cast + spatial zero-pad: a single XLA fusion pass
    # over the activation (the pad rides along with the unavoidable layout
    # conversion; no separate HBM round trip).
    x = jnp.transpose(x_nchw, (0, 2, 3, 1)).astype(jnp.bfloat16)
    N, H, W, Cin = x.shape
    assert Cin == C
    xp = jnp.pad(x, ((0, 0), (1, 1), (1, 1), (0, 0)))
    w3 = params['w3'].astype(jnp.bfloat16)

    # ---- kernel 1: 3x3 conv + fused BN partial stats (y at true width C) ----
    y, s, ss = _conv3x3_pallas(xp, w3)                 # y: (N, H*W, C) bf16

    # ---- tiny per-channel reduction + BN folding (plain jnp, O(C) scalars) --
    M = N * H * W
    mean = jnp.sum(s, axis=(0, 1)) / M
    var = jnp.maximum(jnp.sum(ss, axis=(0, 1)) / M - mean * mean, 0.0)
    inv_std = jax.lax.rsqrt(var + eps)
    scale = (params['gamma'] * inv_std).reshape(1, C).astype(jnp.float32)
    shift = (params['beta'] - mean * params['gamma'] * inv_std
             ).reshape(1, C).astype(jnp.float32)
    alpha = params['alpha'].reshape(1, C).astype(jnp.float32)

    # ---- kernel 2: fused BN affine + PReLU + 1x1 conv -----------------------
    w1 = params['w1'].astype(jnp.bfloat16)
    out = _bn_prelu_matmul_pallas(y.reshape(M, C), scale, shift, alpha, w1)

    out = out.reshape(N, H, W, nOut)
    return jnp.transpose(out, (0, 3, 1, 2))            # NHWC -> NCHW


# ----------------------------------------------------------------------------
# Pure-JAX reference (for validation only)
# ----------------------------------------------------------------------------

def reference_forward(params, x_nchw, eps=1e-3):
    x = jnp.transpose(x_nchw, (0, 2, 3, 1)).astype(jnp.bfloat16).astype(jnp.float32)
    w3 = params['w3'].astype(jnp.bfloat16).astype(jnp.float32)
    w1 = params['w1'].astype(jnp.bfloat16).astype(jnp.float32)
    y = jax.lax.conv_general_dilated(
        x, w3, window_strides=(1, 1), padding=((1, 1), (1, 1)),
        dimension_numbers=('NHWC', 'HWIO', 'NHWC'),
        precision=jax.lax.Precision.HIGHEST)
    mean = jnp.mean(y, axis=(0, 1, 2))
    var = jnp.mean((y - mean) ** 2, axis=(0, 1, 2))
    yn = (y - mean) * jax.lax.rsqrt(var + eps) * params['gamma'] + params['beta']
    ya = jnp.where(yn > 0, yn, params['alpha'] * yn)
    out = jnp.einsum('nhwc,co->nhwo', ya, w1,
                     precision=jax.lax.Precision.HIGHEST)
    return jnp.transpose(out, (0, 3, 1, 2))


# ----------------------------------------------------------------------------
# Demo
# ----------------------------------------------------------------------------

if __name__ == "__main__":
    nIn = 64                       # conv3x3_resume(nIn=64): 32 -> 32 -> 64 channels
    C = nIn // 2
    N, H, W = 2, 16, 16

    key = jax.random.PRNGKey(0)
    kx, kw3, kw1 = jax.random.split(key, 3)
    params = {
        'w3': jax.random.normal(kw3, (3, 3, C, C), jnp.float32) / math.sqrt(9 * C),
        'w1': jax.random.normal(kw1, (C, nIn), jnp.float32) / math.sqrt(C),
        'gamma': jnp.ones((C,), jnp.float32),            # BatchNorm2d defaults
        'beta': jnp.zeros((C,), jnp.float32),
        'alpha': jnp.full((C,), 0.25, jnp.float32),      # PReLU default
    }
    x = jax.random.normal(kx, (N, C, H, W), jnp.float32)

    fwd = jax.jit(lambda inp: conv3x3_resume_forward(params, inp))
    out = jax.block_until_ready(fwd(x))

    assert out.shape == (N, nIn, H, W), out.shape
    assert bool(jnp.all(jnp.isfinite(out)))

    ref = reference_forward(params, x)
    err = float(jnp.max(jnp.abs(out - ref)))
    assert err < 0.15, f"max abs error vs reference too large: {err}"

    print("KERNEL_OK")
</pallas_src>

<mosaic_0001>
module attributes {stable_mosaic.version = 11 : i64} {
  func.func @_conv3x3_stats_kernel(%arg0: i32, %arg1: memref<1x18x18x32xbf16, #tpu.memory_space<vmem>>, %arg2: memref<3x3x32x32xbf16, #tpu.memory_space<vmem>>, %arg3: memref<1x256x32xbf16, #tpu.memory_space<vmem>>, %arg4: memref<1x1x32xf32, #tpu.memory_space<vmem>>, %arg5: memref<1x1x32xf32, #tpu.memory_space<vmem>>) attributes {dimension_semantics = [#tpu.dimension_semantics<parallel>], iteration_bounds = array<i64: 2>, scalar_prefetch = 0 : i64, scratch_operands = 0 : i64, tpu.core_type = #tpu.core_type<tc>, window_params = [{transform_indices = @transform_0, window_bounds = array<i64: 1, 18, 18, 32>}, {pipeline_mode = #tpu.pipeline_mode<synchronous>, transform_indices = @transform_1, window_bounds = array<i64: 3, 3, 32, 32>}, {transform_indices = @transform_2, window_bounds = array<i64: 1, 256, 32>}, {transform_indices = @transform_3, window_bounds = array<i64: 1, 1, 32>}, {transform_indices = @transform_4, window_bounds = array<i64: 1, 1, 32>}]} {
    %cst = arith.constant 0.000000e+00 : f32
    %0 = vector.broadcast %cst : f32 to vector<1x32xf32>
    %cst_0 = arith.constant 0.000000e+00 : f32
    %1 = vector.broadcast %cst_0 : f32 to vector<1x32xf32>
    %cst_1 = arith.constant 0.000000e+00 : f32
    %2 = vector.broadcast %cst_1 : f32 to vector<128x32xf32>
    %c0 = arith.constant 0 : index
    %c0_2 = arith.constant 0 : index
    %c0_3 = arith.constant 0 : index
    %c0_4 = arith.constant 0 : index
    %3 = vector.load %arg1[%c0, %c0_2, %c0_3, %c0_4] : memref<1x18x18x32xbf16, #tpu.memory_space<vmem>>, vector<1x8x16x32xbf16>
    %4 = vector.shape_cast %3 : vector<1x8x16x32xbf16> to vector<8x16x32xbf16>
    %5 = vector.shape_cast %4 : vector<8x16x32xbf16> to vector<128x32xbf16>
    %c0_5 = arith.constant 0 : index
    %c0_6 = arith.constant 0 : index
    %c0_7 = arith.constant 0 : index
    %c0_8 = arith.constant 0 : index
    %6 = vector.load %arg2[%c0_5, %c0_6, %c0_7, %c0_8] : memref<3x3x32x32xbf16, #tpu.memory_space<vmem>>, vector<1x1x32x32xbf16>
    %7 = vector.shape_cast %6 : vector<1x1x32x32xbf16> to vector<32x32xbf16>
    %cst_9 = arith.constant dense<0.000000e+00> : vector<128x32xf32>
    %8 = tpu.matmul %5, %7, %cst_9 {dimension_numbers = #tpu.dot_dimension_numbers<[1], [0], [0], [1], [0, 0, 1, 1], [], []>} : vector<128x32xbf16>, vector<32x32xbf16>, vector<128x32xf32> -> vector<128x32xf32>
    %9 = arith.addf %2, %8 : vector<128x32xf32>
    %c0_10 = arith.constant 0 : index
    %c0_11 = arith.constant 0 : index
    %c1 = arith.constant 1 : index
    %c0_12 = arith.constant 0 : index
    %10 = vector.load %arg1[%c0_10, %c0_11, %c1, %c0_12] : memref<1x18x18x32xbf16, #tpu.memory_space<vmem>>, vector<1x8x16x32xbf16>
    %11 = vector.shape_cast %10 : vector<1x8x16x32xbf16> to vector<8x16x32xbf16>
    %12 = vector.shape_cast %11 : vector<8x16x32xbf16> to vector<128x32xbf16>
    %c0_13 = arith.constant 0 : index
    %c1_14 = arith.constant 1 : index
    %c0_15 = arith.constant 0 : index
    %c0_16 = arith.constant 0 : index
    %13 = vector.load %arg2[%c0_13, %c1_14, %c0_15, %c0_16] : memref<3x3x32x32xbf16, #tpu.memory_space<vmem>>, vector<1x1x32x32xbf16>
    %14 = vector.shape_cast %13 : vector<1x1x32x32xbf16> to vector<32x32xbf16>
    %cst_17 = arith.constant dense<0.000000e+00> : vector<128x32xf32>
    %15 = tpu.matmul %12, %14, %cst_17 {dimension_numbers = #tpu.dot_dimension_numbers<[1], [0], [0], [1], [0, 0, 1, 1], [], []>} : vector<128x32xbf16>, vector<32x32xbf16>, vector<128x32xf32> -> vector<128x32xf32>
    %16 = arith.addf %9, %15 : vector<128x32xf32>
    %c0_18 = arith.constant 0 : index
    %c0_19 = arith.constant 0 : index
    %c2 = arith.constant 2 : index
    %c0_20 = arith.constant 0 : index
    %17 = vector.load %arg1[%c0_18, %c0_19, %c2, %c0_20] : memref<1x18x18x32xbf16, #tpu.memory_space<vmem>>, vector<1x8x16x32xbf16>
    %18 = vector.shape_cast %17 : vector<1x8x16x32xbf16> to vector<8x16x32xbf16>
    %19 = vector.shape_cast %18 : vector<8x16x32xbf16> to vector<128x32xbf16>
    %c0_21 = arith.constant 0 : index
    %c2_22 = arith.constant 2 : index
    %c0_23 = arith.constant 0 : index
    %c0_24 = arith.constant 0 : index
    %20 = vector.load %arg2[%c0_21, %c2_22, %c0_23, %c0_24] : memref<3x3x32x32xbf16, #tpu.memory_space<vmem>>, vector<1x1x32x32xbf16>
    %21 = vector.shape_cast %20 : vector<1x1x32x32xbf16> to vector<32x32xbf16>
    %cst_25 = arith.constant dense<0.000000e+00> : vector<128x32xf32>
    %22 = tpu.matmul %19, %21, %cst_25 {dimension_numbers = #tpu.dot_dimension_numbers<[1], [0], [0], [1], [0, 0, 1, 1], [], []>} : vector<128x32xbf16>, vector<32x32xbf16>, vector<128x32xf32> -> vector<128x32xf32>
    %23 = arith.addf %16, %22 : vector<128x32xf32>
    %c0_26 = arith.constant 0 : index
    %c1_27 = arith.constant 1 : index
    %c0_28 = arith.constant 0 : index
    %c0_29 = arith.constant 0 : index
    %24 = vector.load %arg1[%c0_26, %c1_27, %c0_28, %c0_29] : memref<1x18x18x32xbf16, #tpu.memory_space<vmem>>, vector<1x8x16x32xbf16>
    %25 = vector.shape_cast %24 : vector<1x8x16x32xbf16> to vector<8x16x32xbf16>
    %26 = vector.shape_cast %25 : vector<8x16x32xbf16> to vector<128x32xbf16>
    %c1_30 = arith.constant 1 : index
    %c0_31 = arith.constant 0 : index
    %c0_32 = arith.constant 0 : index
    %c0_33 = arith.constant 0 : index
    %27 = vector.load %arg2[%c1_30, %c0_31, %c0_32, %c0_33] : memref<3x3x32x32xbf16, #tpu.memory_space<vmem>>, vector<1x1x32x32xbf16>
    %28 = vector.shape_cast %27 : vector<1x1x32x32xbf16> to vector<32x32xbf16>
    %cst_34 = arith.constant dense<0.000000e+00> : vector<128x32xf32>
    %29 = tpu.matmul %26, %28, %cst_34 {dimension_numbers = #tpu.dot_dimension_numbers<[1], [0], [0], [1], [0, 0, 1, 1], [], []>} : vector<128x32xbf16>, vector<32x32xbf16>, vector<128x32xf32> -> vector<128x32xf32>
    %30 = arith.addf %23, %29 : vector<128x32xf32>
    %c0_35 = arith.constant 0 : index
    %c1_36 = arith.constant 1 : index
    %c1_37 = arith.constant 1 : index
    %c0_38 = arith.constant 0 : index
    %31 = vector.load %arg1[%c0_35, %c1_36, %c1_37, %c0_38] : memref<1x18x18x32xbf16, #tpu.memory_space<vmem>>, vector<1x8x16x32xbf16>
    %32 = vector.shape_cast %31 : vector<1x8x16x32xbf16> to vector<8x16x32xbf16>
    %33 = vector.shape_cast %32 : vector<8x16x32xbf16> to vector<128x32xbf16>
    %c1_39 = arith.constant 1 : index
    %c1_40 = arith.constant 1 : index
    %c0_41 = arith.constant 0 : index
    %c0_42 = arith.constant 0 : index
    %34 = vector.load %arg2[%c1_39, %c1_40, %c0_41, %c0_42] : memref<3x3x32x32xbf16, #tpu.memory_space<vmem>>, vector<1x1x32x32xbf16>
    %35 = vector.shape_cast %34 : vector<1x1x32x32xbf16> to vector<32x32xbf16>
    %cst_43 = arith.constant dense<0.000000e+00> : vector<128x32xf32>
    %36 = tpu.matmul %33, %35, %cst_43 {dimension_numbers = #tpu.dot_dimension_numbers<[1], [0], [0], [1], [0, 0, 1, 1], [], []>} : vector<128x32xbf16>, vector<32x32xbf16>, vector<128x32xf32> -> vector<128x32xf32>
    %37 = arith.addf %30, %36 : vector<128x32xf32>
    %c0_44 = arith.constant 0 : index
    %c1_45 = arith.constant 1 : index
    %c2_46 = arith.constant 2 : index
    %c0_47 = arith.constant 0 : index
    %38 = vector.load %arg1[%c0_44, %c1_45, %c2_46, %c0_47] : memref<1x18x18x32xbf16, #tpu.memory_space<vmem>>, vector<1x8x16x32xbf16>
    %39 = vector.shape_cast %38 : vector<1x8x16x32xbf16> to vector<8x16x32xbf16>
    %40 = vector.shape_cast %39 : vector<8x16x32xbf16> to vector<128x32xbf16>
    %c1_48 = arith.constant 1 : index
    %c2_49 = arith.constant 2 : index
    %c0_50 = arith.constant 0 : index
    %c0_51 = arith.constant 0 : index
    %41 = vector.load %arg2[%c1_48, %c2_49, %c0_50, %c0_51] : memref<3x3x32x32xbf16, #tpu.memory_space<vmem>>, vector<1x1x32x32xbf16>
    %42 = vector.shape_cast %41 : vector<1x1x32x32xbf16> to vector<32x32xbf16>
    %cst_52 = arith.constant dense<0.000000e+00> : vector<128x32xf32>
    %43 = tpu.matmul %40, %42, %cst_52 {dimension_numbers = #tpu.dot_dimension_numbers<[1], [0], [0], [1], [0, 0, 1, 1], [], []>} : vector<128x32xbf16>, vector<32x32xbf16>, vector<128x32xf32> -> vector<128x32xf32>
    %44 = arith.addf %37, %43 : vector<128x32xf32>
    %c0_53 = arith.constant 0 : index
    %c2_54 = arith.constant 2 : index
    %c0_55 = arith.constant 0 : index
    %c0_56 = arith.constant 0 : index
    %45 = vector.load %arg1[%c0_53, %c2_54, %c0_55, %c0_56] : memref<1x18x18x32xbf16, #tpu.memory_space<vmem>>, vector<1x8x16x32xbf16>
    %46 = vector.shape_cast %45 : vector<1x8x16x32xbf16> to vector<8x16x32xbf16>
    %47 = vector.shape_cast %46 : vector<8x16x32xbf16> to vector<128x32xbf16>
    %c2_57 = arith.constant 2 : index
    %c0_58 = arith.constant 0 : index
    %c0_59 = arith.constant 0 : index
    %c0_60 = arith.constant 0 : index
    %48 = vector.load %arg2[%c2_57, %c0_58, %c0_59, %c0_60] : memref<3x3x32x32xbf16, #tpu.memory_space<vmem>>, vector<1x1x32x32xbf16>
    %49 = vector.shape_cast %48 : vector<1x1x32x32xbf16> to vector<32x32xbf16>
    %cst_61 = arith.constant dense<0.000000e+00> : vector<128x32xf32>
    %50 = tpu.matmul %47, %49, %cst_61 {dimension_numbers = #tpu.dot_dimension_numbers<[1], [0], [0], [1], [0, 0, 1, 1], [], []>} : vector<128x32xbf16>, vector<32x32xbf16>, vector<128x32xf32> -> vector<128x32xf32>
    %51 = arith.addf %44, %50 : vector<128x32xf32>
    %c0_62 = arith.constant 0 : index
    %c2_63 = arith.constant 2 : index
    %c1_64 = arith.constant 1 : index
    %c0_65 = arith.constant 0 : index
    %52 = vector.load %arg1[%c0_62, %c2_63, %c1_64, %c0_65] : memref<1x18x18x32xbf16, #tpu.memory_space<vmem>>, vector<1x8x16x32xbf16>
    %53 = vector.shape_cast %52 : vector<1x8x16x32xbf16> to vector<8x16x32xbf16>
    %54 = vector.shape_cast %53 : vector<8x16x32xbf16> to vector<128x32xbf16>
    %c2_66 = arith.constant 2 : index
    %c1_67 = arith.constant 1 : index
    %c0_68 = arith.constant 0 : index
    %c0_69 = arith.constant 0 : index
    %55 = vector.load %arg2[%c2_66, %c1_67, %c0_68, %c0_69] : memref<3x3x32x32xbf16, #tpu.memory_space<vmem>>, vector<1x1x32x32xbf16>
    %56 = vector.shape_cast %55 : vector<1x1x32x32xbf16> to vector<32x32xbf16>
    %cst_70 = arith.constant dense<0.000000e+00> : vector<128x32xf32>
    %57 = tpu.matmul %54, %56, %cst_70 {dimension_numbers = #tpu.dot_dimension_numbers<[1], [0], [0], [1], [0, 0, 1, 1], [], []>} : vector<128x32xbf16>, vector<32x32xbf16>, vector<128x32xf32> -> vector<128x32xf32>
    %58 = arith.addf %51, %57 : vector<128x32xf32>
    %c0_71 = arith.constant 0 : index
    %c2_72 = arith.constant 2 : index
    %c2_73 = arith.constant 2 : index
    %c0_74 = arith.constant 0 : index
    %59 = vector.load %arg1[%c0_71, %c2_72, %c2_73, %c0_74] : memref<1x18x18x32xbf16, #tpu.memory_space<vmem>>, vector<1x8x16x32xbf16>
    %60 = vector.shape_cast %59 : vector<1x8x16x32xbf16> to vector<8x16x32xbf16>
    %61 = vector.shape_cast %60 : vector<8x16x32xbf16> to vector<128x32xbf16>
    %c2_75 = arith.constant 2 : index
    %c2_76 = arith.constant 2 : index
    %c0_77 = arith.constant 0 : index
    %c0_78 = arith.constant 0 : index
    %62 = vector.load %arg2[%c2_75, %c2_76, %c0_77, %c0_78] : memref<3x3x32x32xbf16, #tpu.memory_space<vmem>>, vector<1x1x32x32xbf16>
    %63 = vector.shape_cast %62 : vector<1x1x32x32xbf16> to vector<32x32xbf16>
    %cst_79 = arith.constant dense<0.000000e+00> : vector<128x32xf32>
    %64 = tpu.matmul %61, %63, %cst_79 {dimension_numbers = #tpu.dot_dimension_numbers<[1], [0], [0], [1], [0, 0, 1, 1], [], []>} : vector<128x32xbf16>, vector<32x32xbf16>, vector<128x32xf32> -> vector<128x32xf32>
    %65 = arith.addf %58, %64 : vector<128x32xf32>
    %66 = arith.truncf %65 : vector<128x32xf32> to vector<128x32xbf16>
    %c0_80 = arith.constant 0 : index
    %c0_81 = arith.constant 0 : index
    %c0_82 = arith.constant 0 : index
    %67 = vector.load %arg3[%c0_80, %c0_81, %c0_82] : memref<1x256x32xbf16, #tpu.memory_space<vmem>>, vector<1x128x32xbf16>
    %68 = vector.shape_cast %67 : vector<1x128x32xbf16> to vector<128x32xbf16>
    %69 = vector.shape_cast %66 : vector<128x32xbf16> to vector<1x128x32xbf16>
    tpu.vector_store %arg3[%c0_80, %c0_81, %c0_82], %69 {strides = array<i32>} : memref<1x256x32xbf16, #tpu.memory_space<vmem>>, vector<1x128x32xbf16>,
    %cst_83 = arith.constant dense<0.000000e+00> : vector<32xf32>
    %70 = vector.multi_reduction <add>, %65, %cst_83 [0] : vector<128x32xf32> to vector<32xf32>
    %71 = vector.shape_cast %70 : vector<32xf32> to vector<1x32xf32>
    %72 = arith.addf %0, %71 : vector<1x32xf32>
    %73 = arith.mulf %65, %65 : vector<128x32xf32>
    %cst_84 = arith.constant dense<0.000000e+00> : vector<32xf32>
    %74 = vector.multi_reduction <add>, %73, %cst_84 [0] : vector<128x32xf32> to vector<32xf32>
    %75 = vector.shape_cast %74 : vector<32xf32> to vector<1x32xf32>
    %76 = arith.addf %1, %75 : vector<1x32xf32>
    %cst_85 = arith.constant 0.000000e+00 : f32
    %77 = vector.broadcast %cst_85 : f32 to vector<128x32xf32>
    %c0_86 = arith.constant 0 : index
    %c8 = arith.constant 8 : index
    %c0_87 = arith.constant 0 : index
    %c0_88 = arith.constant 0 : index
    %78 = vector.load %arg1[%c0_86, %c8, %c0_87, %c0_88] : memref<1x18x18x32xbf16, #tpu.memory_space<vmem>>, vector<1x8x16x32xbf16>
    %79 = vector.shape_cast %78 : vector<1x8x16x32xbf16> to vector<8x16x32xbf16>
    %80 = vector.shape_cast %79 : vector<8x16x32xbf16> to vector<128x32xbf16>
    %c0_89 = arith.constant 0 : index
    %c0_90 = arith.constant 0 : index
    %c0_91 = arith.constant 0 : index
    %c0_92 = arith.constant 0 : index
    %81 = vector.load %arg2[%c0_89, %c0_90, %c0_91, %c0_92] : memref<3x3x32x32xbf16, #tpu.memory_space<vmem>>, vector<1x1x32x32xbf16>
    %82 = vector.shape_cast %81 : vector<1x1x32x32xbf16> to vector<32x32xbf16>
    %cst_93 = arith.constant dense<0.000000e+00> : vector<128x32xf32>
    %83 = tpu.matmul %80, %82, %cst_93 {dimension_numbers = #tpu.dot_dimension_numbers<[1], [0], [0], [1], [0, 0, 1, 1], [], []>} : vector<128x32xbf16>, vector<32x32xbf16>, vector<128x32xf32> -> vector<128x32xf32>
    %84 = arith.addf %77, %83 : vector<128x32xf32>
    %c0_94 = arith.constant 0 : index
    %c8_95 = arith.constant 8 : index
    %c1_96 = arith.constant 1 : index
    %c0_97 = arith.constant 0 : index
    %85 = vector.load %arg1[%c0_94, %c8_95, %c1_96, %c0_97] : memref<1x18x18x32xbf16, #tpu.memory_space<vmem>>, vector<1x8x16x32xbf16>
    %86 = vector.shape_cast %85 : vector<1x8x16x32xbf16> to vector<8x16x32xbf16>
    %87 = vector.shape_cast %86 : vector<8x16x32xbf16> to vector<128x32xbf16>
    %c0_98 = arith.constant 0 : index
    %c1_99 = arith.constant 1 : index
    %c0_100 = arith.constant 0 : index
    %c0_101 = arith.constant 0 : index
    %88 = vector.load %arg2[%c0_98, %c1_99, %c0_100, %c0_101] : memref<3x3x32x32xbf16, #tpu.memory_space<vmem>>, vector<1x1x32x32xbf16>
    %89 = vector.shape_cast %88 : vector<1x1x32x32xbf16> to vector<32x32xbf16>
    %cst_102 = arith.constant dense<0.000000e+00> : vector<128x32xf32>
    %90 = tpu.matmul %87, %89, %cst_102 {dimension_numbers = #tpu.dot_dimension_numbers<[1], [0], [0], [1], [0, 0, 1, 1], [], []>} : vector<128x32xbf16>, vector<32x32xbf16>, vector<128x32xf32> -> vector<128x32xf32>
    %91 = arith.addf %84, %90 : vector<128x32xf32>
    %c0_103 = arith.constant 0 : index
    %c8_104 = arith.constant 8 : index
    %c2_105 = arith.constant 2 : index
    %c0_106 = arith.constant 0 : index
    %92 = vector.load %arg1[%c0_103, %c8_104, %c2_105, %c0_106] : memref<1x18x18x32xbf16, #tpu.memory_space<vmem>>, vector<1x8x16x32xbf16>
    %93 = vector.shape_cast %92 : vector<1x8x16x32xbf16> to vector<8x16x32xbf16>
    %94 = vector.shape_cast %93 : vector<8x16x32xbf16> to vector<128x32xbf16>
    %c0_107 = arith.constant 0 : index
    %c2_108 = arith.constant 2 : index
    %c0_109 = arith.constant 0 : index
    %c0_110 = arith.constant 0 : index
    %95 = vector.load %arg2[%c0_107, %c2_108, %c0_109, %c0_110] : memref<3x3x32x32xbf16, #tpu.memory_space<vmem>>, vector<1x1x32x32xbf16>
    %96 = vector.shape_cast %95 : vector<1x1x32x32xbf16> to vector<32x32xbf16>
    %cst_111 = arith.constant dense<0.000000e+00> : vector<128x32xf32>
    %97 = tpu.matmul %94, %96, %cst_111 {dimension_numbers = #tpu.dot_dimension_numbers<[1], [0], [0], [1], [0, 0, 1, 1], [], []>} : vector<128x32xbf16>, vector<32x32xbf16>, vector<128x32xf32> -> vector<128x32xf32>
    %98 = arith.addf %91, %97 : vector<128x32xf32>
    %c0_112 = arith.constant 0 : index
    %c9 = arith.constant 9 : index
    %c0_113 = arith.constant 0 : index
    %c0_114 = arith.constant 0 : index
    %99 = vector.load %arg1[%c0_112, %c9, %c0_113, %c0_114] : memref<1x18x18x32xbf16, #tpu.memory_space<vmem>>, vector<1x8x16x32xbf16>
    %100 = vector.shape_cast %99 : vector<1x8x16x32xbf16> to vector<8x16x32xbf16>
    %101 = vector.shape_cast %100 : vector<8x16x32xbf16> to vector<128x32xbf16>
    %c1_115 = arith.constant 1 : index
    %c0_116 = arith.constant 0 : index
    %c0_117 = arith.constant 0 : index
    %c0_118 = arith.constant 0 : index
    %102 = vector.load %arg2[%c1_115, %c0_116, %c0_117, %c0_118] : memref<3x3x32x32xbf16, #tpu.memory_space<vmem>>, vector<1x1x32x32xbf16>
    %103 = vector.shape_cast %102 : vector<1x1x32x32xbf16> to vector<32x32xbf16>
    %cst_119 = arith.constant dense<0.000000e+00> : vector<128x32xf32>
    %104 = tpu.matmul %101, %103, %cst_119 {dimension_numbers = #tpu.dot_dimension_numbers<[1], [0], [0], [1], [0, 0, 1, 1], [], []>} : vector<128x32xbf16>, vector<32x32xbf16>, vector<128x32xf32> -> vector<128x32xf32>
    %105 = arith.addf %98, %104 : vector<128x32xf32>
    %c0_120 = arith.constant 0 : index
    %c9_121 = arith.constant 9 : index
    %c1_122 = arith.constant 1 : index
    %c0_123 = arith.constant 0 : index
    %106 = vector.load %arg1[%c0_120, %c9_121, %c1_122, %c0_123] : memref<1x18x18x32xbf16, #tpu.memory_space<vmem>>, vector<1x8x16x32xbf16>
    %107 = vector.shape_cast %106 : vector<1x8x16x32xbf16> to vector<8x16x32xbf16>
    %108 = vector.shape_cast %107 : vector<8x16x32xbf16> to vector<128x32xbf16>
    %c1_124 = arith.constant 1 : index
    %c1_125 = arith.constant 1 : index
    %c0_126 = arith.constant 0 : index
    %c0_127 = arith.constant 0 : index
    %109 = vector.load %arg2[%c1_124, %c1_125, %c0_126, %c0_127] : memref<3x3x32x32xbf16, #tpu.memory_space<vmem>>, vector<1x1x32x32xbf16>
    %110 = vector.shape_cast %109 : vector<1x1x32x32xbf16> to vector<32x32xbf16>
    %cst_128 = arith.constant dense<0.000000e+00> : vector<128x32xf32>
    %111 = tpu.matmul %108, %110, %cst_128 {dimension_numbers = #tpu.dot_dimension_numbers<[1], [0], [0], [1], [0, 0, 1, 1], [], []>} : vector<128x32xbf16>, vector<32x32xbf16>, vector<128x32xf32> -> vector<128x32xf32>
    %112 = arith.addf %105, %111 : vector<128x32xf32>
    %c0_129 = arith.constant 0 : index
    %c9_130 = arith.constant 9 : index
    %c2_131 = arith.constant 2 : index
    %c0_132 = arith.constant 0 : index
    %113 = vector.load %arg1[%c0_129, %c9_130, %c2_131, %c0_132] : memref<1x18x18x32xbf16, #tpu.memory_space<vmem>>, vector<1x8x16x32xbf16>
    %114 = vector.shape_cast %113 : vector<1x8x16x32xbf16> to vector<8x16x32xbf16>
    %115 = vector.shape_cast %114 : vector<8x16x32xbf16> to vector<128x32xbf16>
    %c1_133 = arith.constant 1 : index
    %c2_134 = arith.constant 2 : index
    %c0_135 = arith.constant 0 : index
    %c0_136 = arith.constant 0 : index
    %116 = vector.load %arg2[%c1_133, %c2_134, %c0_135, %c0_136] : memref<3x3x32x32xbf16, #tpu.memory_space<vmem>>, vector<1x1x32x32xbf16>
    %117 = vector.shape_cast %116 : vector<1x1x32x32xbf16> to vector<32x32xbf16>
    %cst_137 = arith.constant dense<0.000000e+00> : vector<128x32xf32>
    %118 = tpu.matmul %115, %117, %cst_137 {dimension_numbers = #tpu.dot_dimension_numbers<[1], [0], [0], [1], [0, 0, 1, 1], [], []>} : vector<128x32xbf16>, vector<32x32xbf16>, vector<128x32xf32> -> vector<128x32xf32>
    %119 = arith.addf %112, %118 : vector<128x32xf32>
    %c0_138 = arith.constant 0 : index
    %c10 = arith.constant 10 : index
    %c0_139 = arith.constant 0 : index
    %c0_140 = arith.constant 0 : index
    %120 = vector.load %arg1[%c0_138, %c10, %c0_139, %c0_140] : memref<1x18x18x32xbf16, #tpu.memory_space<vmem>>, vector<1x8x16x32xbf16>
    %121 = vector.shape_cast %120 : vector<1x8x16x32xbf16> to vector<8x16x32xbf16>
    %122 = vector.shape_cast %121 : vector<8x16x32xbf16> to vector<128x32xbf16>
    %c2_141 = arith.constant 2 : index
    %c0_142 = arith.constant 0 : index
    %c0_143 = arith.constant 0 : index
    %c0_144 = arith.constant 0 : index
    %123 = vector.load %arg2[%c2_141, %c0_142, %c0_143, %c0_144] : memref<3x3x32x32xbf16, #tpu.memory_space<vmem>>, vector<1x1x32x32xbf16>
    %124 = vector.shape_cast %123 : vector<1x1x32x32xbf16> to vector<32x32xbf16>
    %cst_145 = arith.constant dense<0.000000e+00> : vector<128x32xf32>
    %125 = tpu.matmul %122, %124, %cst_145 {dimension_numbers = #tpu.dot_dimension_numbers<[1], [0], [0], [1], [0, 0, 1, 1], [], []>} : vector<128x32xbf16>, vector<32x32xbf16>, vector<128x32xf32> -> vector<128x32xf32>
    %126 = arith.addf %119, %125 : vector<128x32xf32>
    %c0_146 = arith.constant 0 : index
    %c10_147 = arith.constant 10 : index
    %c1_148 = arith.constant 1 : index
    %c0_149 = arith.constant 0 : index
    %127 = vector.load %arg1[%c0_146, %c10_147, %c1_148, %c0_149] : memref<1x18x18x32xbf16, #tpu.memory_space<vmem>>, vector<1x8x16x32xbf16>
    %128 = vector.shape_cast %127 : vector<1x8x16x32xbf16> to vector<8x16x32xbf16>
    %129 = vector.shape_cast %128 : vector<8x16x32xbf16> to vector<128x32xbf16>
    %c2_150 = arith.constant 2 : index
    %c1_151 = arith.constant 1 : index
    %c0_152 = arith.constant 0 : index
    %c0_153 = arith.constant 0 : index
    %130 = vector.load %arg2[%c2_150, %c1_151, %c0_152, %c0_153] : memref<3x3x32x32xbf16, #tpu.memory_space<vmem>>, vector<1x1x32x32xbf16>
    %131 = vector.shape_cast %130 : vector<1x1x32x32xbf16> to vector<32x32xbf16>
    %cst_154 = arith.constant dense<0.000000e+00> : vector<128x32xf32>
    %132 = tpu.matmul %129, %131, %cst_154 {dimension_numbers = #tpu.dot_dimension_numbers<[1], [0], [0], [1], [0, 0, 1, 1], [], []>} : vector<128x32xbf16>, vector<32x32xbf16>, vector<128x32xf32> -> vector<128x32xf32>
    %133 = arith.addf %126, %132 : vector<128x32xf32>
    %c0_155 = arith.constant 0 : index
    %c10_156 = arith.constant 10 : index
    %c2_157 = arith.constant 2 : index
    %c0_158 = arith.constant 0 : index
    %134 = vector.load %arg1[%c0_155, %c10_156, %c2_157, %c0_158] : memref<1x18x18x32xbf16, #tpu.memory_space<vmem>>, vector<1x8x16x32xbf16>
    %135 = vector.shape_cast %134 : vector<1x8x16x32xbf16> to vector<8x16x32xbf16>
    %136 = vector.shape_cast %135 : vector<8x16x32xbf16> to vector<128x32xbf16>
    %c2_159 = arith.constant 2 : index
    %c2_160 = arith.constant 2 : index
    %c0_161 = arith.constant 0 : index
    %c0_162 = arith.constant 0 : index
    %137 = vector.load %arg2[%c2_159, %c2_160, %c0_161, %c0_162] : memref<3x3x32x32xbf16, #tpu.memory_space<vmem>>, vector<1x1x32x32xbf16>
    %138 = vector.shape_cast %137 : vector<1x1x32x32xbf16> to vector<32x32xbf16>
    %cst_163 = arith.constant dense<0.000000e+00> : vector<128x32xf32>
    %139 = tpu.matmul %136, %138, %cst_163 {dimension_numbers = #tpu.dot_dimension_numbers<[1], [0], [0], [1], [0, 0, 1, 1], [], []>} : vector<128x32xbf16>, vector<32x32xbf16>, vector<128x32xf32> -> vector<128x32xf32>
    %140 = arith.addf %133, %139 : vector<128x32xf32>
    %141 = arith.truncf %140 : vector<128x32xf32> to vector<128x32xbf16>
    %c0_164 = arith.constant 0 : index
    %c128 = arith.constant 128 : index
    %c0_165 = arith.constant 0 : index
    %142 = vector.load %arg3[%c0_164, %c128, %c0_165] : memref<1x256x32xbf16, #tpu.memory_space<vmem>>, vector<1x128x32xbf16>
    %143 = vector.shape_cast %142 : vector<1x128x32xbf16> to vector<128x32xbf16>
    %144 = vector.shape_cast %141 : vector<128x32xbf16> to vector<1x128x32xbf16>
    tpu.vector_store %arg3[%c0_164, %c128, %c0_165], %144 {strides = array<i32>} : memref<1x256x32xbf16, #tpu.memory_space<vmem>>, vector<1x128x32xbf16>,
    %cst_166 = arith.constant dense<0.000000e+00> : vector<32xf32>
    %145 = vector.multi_reduction <add>, %140, %cst_166 [0] : vector<128x32xf32> to vector<32xf32>
    %146 = vector.shape_cast %145 : vector<32xf32> to vector<1x32xf32>
    %147 = arith.addf %72, %146 : vector<1x32xf32>
    %148 = arith.mulf %140, %140 : vector<128x32xf32>
    %cst_167 = arith.constant dense<0.000000e+00> : vector<32xf32>
    %149 = vector.multi_reduction <add>, %148, %cst_167 [0] : vector<128x32xf32> to vector<32xf32>
    %150 = vector.shape_cast %149 : vector<32xf32> to vector<1x32xf32>
    %151 = arith.addf %76, %150 : vector<1x32xf32>
    %c0_168 = arith.constant 0 : index
    %c0_169 = arith.constant 0 : index
    %c0_170 = arith.constant 0 : index
    %152 = vector.load %arg4[%c0_168, %c0_169, %c0_170] : memref<1x1x32xf32, #tpu.memory_space<vmem>>, vector<1x1x32xf32>
    %153 = vector.shape_cast %152 : vector<1x1x32xf32> to vector<1x32xf32>
    %154 = vector.shape_cast %147 : vector<1x32xf32> to vector<1x1x32xf32>
    tpu.vector_store %arg4[%c0_168, %c0_169, %c0_170], %154 {strides = array<i32>} : memref<1x1x32xf32, #tpu.memory_space<vmem>>, vector<1x1x32xf32>,
    %c0_171 = arith.constant 0 : index
    %c0_172 = arith.constant 0 : index
    %c0_173 = arith.constant 0 : index
    %155 = vector.load %arg5[%c0_171, %c0_172, %c0_173] : memref<1x1x32xf32, #tpu.memory_space<vmem>>, vector<1x1x32xf32>
    %156 = vector.shape_cast %155 : vector<1x1x32xf32> to vector<1x32xf32>
    %157 = vector.shape_cast %151 : vector<1x32xf32> to vector<1x1x32xf32>
    tpu.vector_store %arg5[%c0_171, %c0_172, %c0_173], %157 {strides = array<i32>} : memref<1x1x32xf32, #tpu.memory_space<vmem>>, vector<1x1x32xf32>,
    return
  }
  func.func @transform_0(%arg0: i32) -> (i32, i32, i32, i32) {
    %c0_i32 = arith.constant 0 : i32
    %c0_i32_0 = arith.constant 0 : i32
    %c0_i32_1 = arith.constant 0 : i32
    %c0_i32_2 = arith.constant 0 : i32
    return %arg0, %c0_i32, %c0_i32_0, %c0_i32_1 : i32, i32, i32, i32
  }
  func.func @transform_1(%arg0: i32) -> (i32, i32, i32, i32) {
    %c0_i32 = arith.constant 0 : i32
    %c0_i32_0 = arith.constant 0 : i32
    %c0_i32_1 = arith.constant 0 : i32
    %c0_i32_2 = arith.constant 0 : i32
    %c0_i32_3 = arith.constant 0 : i32
    return %c0_i32, %c0_i32_0, %c0_i32_1, %c0_i32_2 : i32, i32, i32, i32
  }
  func.func @transform_2(%arg0: i32) -> (i32, i32, i32) {
    %c0_i32 = arith.constant 0 : i32
    %c0_i32_0 = arith.constant 0 : i32
    %c0_i32_1 = arith.constant 0 : i32
    return %arg0, %c0_i32, %c0_i32_0 : i32, i32, i32
  }
  func.func @transform_3(%arg0: i32) -> (i32, i32, i32) {
    %c0_i32 = arith.constant 0 : i32
    %c0_i32_0 = arith.constant 0 : i32
    %c0_i32_1 = arith.constant 0 : i32
    return %arg0, %c0_i32, %c0_i32_0 : i32, i32, i32
  }
  func.func @transform_4(%arg0: i32) -> (i32, i32, i32) {
    %c0_i32 = arith.constant 0 : i32
    %c0_i32_0 = arith.constant 0 : i32
    %c0_i32_1 = arith.constant 0 : i32
    return %arg0, %c0_i32, %c0_i32_0 : i32, i32, i32
  }
}

module attributes {stable_mosaic.version = 11 : i64} {
  func.func @_bn_prelu_1x1_kernel(%arg0: i32, %arg1: memref<256x32xbf16, #tpu.memory_space<vmem>>, %arg2: memref<1x32xf32, #tpu.memory_space<vmem>>, %arg3: memref<1x32xf32, #tpu.memory_space<vmem>>, %arg4: memref<1x32xf32, #tpu.memory_space<vmem>>, %arg5: memref<32x64xbf16, #tpu.memory_space<vmem>>, %arg6: memref<256x64xf32, #tpu.memory_space<vmem>>) attributes {dimension_semantics = [#tpu.dimension_semantics<parallel>], iteration_bounds = array<i64: 2>, scalar_prefetch = 0 : i64, scratch_operands = 0 : i64, tpu.core_type = #tpu.core_type<tc>, window_params = [{transform_indices = @transform_0, window_bounds = array<i64: 256, 32>}, {pipeline_mode = #tpu.pipeline_mode<synchronous>, transform_indices = @transform_1, window_bounds = array<i64: 1, 32>}, {pipeline_mode = #tpu.pipeline_mode<synchronous>, transform_indices = @transform_2, window_bounds = array<i64: 1, 32>}, {pipeline_mode = #tpu.pipeline_mode<synchronous>, transform_indices = @transform_3, window_bounds = array<i64: 1, 32>}, {pipeline_mode = #tpu.pipeline_mode<synchronous>, transform_indices = @transform_4, window_bounds = array<i64: 32, 64>}, {transform_indices = @transform_5, window_bounds = array<i64: 256, 64>}]} {
    %c0 = arith.constant 0 : index
    %c0_0 = arith.constant 0 : index
    %0 = vector.load %arg1[%c0, %c0_0] : memref<256x32xbf16, #tpu.memory_space<vmem>>, vector<256x32xbf16>
    %1 = arith.extf %0 : vector<256x32xbf16> to vector<256x32xf32>
    %c0_1 = arith.constant 0 : index
    %c0_2 = arith.constant 0 : index
    %2 = vector.load %arg2[%c0_1, %c0_2] : memref<1x32xf32, #tpu.memory_space<vmem>>, vector<1x32xf32>
    %3 = vector.broadcast %2 : vector<1x32xf32> to vector<256x32xf32>
    %4 = arith.mulf %1, %3 : vector<256x32xf32>
    %c0_3 = arith.constant 0 : index
    %c0_4 = arith.constant 0 : index
    %5 = vector.load %arg3[%c0_3, %c0_4] : memref<1x32xf32, #tpu.memory_space<vmem>>, vector<1x32xf32>
    %6 = vector.broadcast %5 : vector<1x32xf32> to vector<256x32xf32>
    %7 = arith.addf %4, %6 : vector<256x32xf32>
    %cst = arith.constant 0.000000e+00 : f32
    %8 = vector.broadcast %cst : f32 to vector<256x32xf32>
    %9 = arith.cmpf ogt, %7, %8 : vector<256x32xf32>
    %c0_5 = arith.constant 0 : index
    %c0_6 = arith.constant 0 : index
    %10 = vector.load %arg4[%c0_5, %c0_6] : memref<1x32xf32, #tpu.memory_space<vmem>>, vector<1x32xf32>
    %11 = vector.broadcast %10 : vector<1x32xf32> to vector<256x32xf32>
    %12 = arith.mulf %11, %7 : vector<256x32xf32>
    %13 = arith.select %9, %7, %12 : vector<256x32xi1>, vector<256x32xf32>
    %14 = arith.truncf %13 : vector<256x32xf32> to vector<256x32xbf16>
    %c0_7 = arith.constant 0 : index
    %c0_8 = arith.constant 0 : index
    %15 = vector.load %arg5[%c0_7, %c0_8] : memref<32x64xbf16, #tpu.memory_space<vmem>>, vector<32x64xbf16>
    %cst_9 = arith.constant dense<0.000000e+00> : vector<256x64xf32>
    %16 = tpu.matmul %14, %15, %cst_9 {dimension_numbers = #tpu.dot_dimension_numbers<[1], [0], [0], [1], [0, 0, 1, 1], [], []>} : vector<256x32xbf16>, vector<32x64xbf16>, vector<256x64xf32> -> vector<256x64xf32>
    %c0_10 = arith.constant 0 : index
    %c0_11 = arith.constant 0 : index
    %17 = vector.load %arg6[%c0_10, %c0_11] : memref<256x64xf32, #tpu.memory_space<vmem>>, vector<256x64xf32>
    tpu.vector_store %arg6[%c0_10, %c0_11], %16 {strides = array<i32>} : memref<256x64xf32, #tpu.memory_space<vmem>>, vector<256x64xf32>,
    return
  }
  func.func @transform_0(%arg0: i32) -> (i32, i32) {
    %c0_i32 = arith.constant 0 : i32
    %c0_i32_0 = arith.constant 0 : i32
    return %arg0, %c0_i32 : i32, i32
  }
  func.func @transform_1(%arg0: i32) -> (i32, i32) {
    %c0_i32 = arith.constant 0 : i32
    %c0_i32_0 = arith.constant 0 : i32
    %c0_i32_1 = arith.constant 0 : i32
    return %c0_i32, %c0_i32_0 : i32, i32
  }
  func.func @transform_2(%arg0: i32) -> (i32, i32) {
    %c0_i32 = arith.constant 0 : i32
    %c0_i32_0 = arith.constant 0 : i32
    %c0_i32_1 = arith.constant 0 : i32
    return %c0_i32, %c0_i32_0 : i32, i32
  }
  func.func @transform_3(%arg0: i32) -> (i32, i32) {
    %c0_i32 = arith.constant 0 : i32
    %c0_i32_0 = arith.constant 0 : i32
    %c0_i32_1 = arith.constant 0 : i32
    return %c0_i32, %c0_i32_0 : i32, i32
  }
  func.func @transform_4(%arg0: i32) -> (i32, i32) {
    %c0_i32 = arith.constant 0 : i32
    %c0_i32_0 = arith.constant 0 : i32
    %c0_i32_1 = arith.constant 0 : i32
    return %c0_i32, %c0_i32_0 : i32, i32
  }
  func.func @transform_5(%arg0: i32) -> (i32, i32) {
    %c0_i32 = arith.constant 0 : i32
    %c0_i32_0 = arith.constant 0 : i32
    return %arg0, %c0_i32 : i32, i32
  }
}

</mosaic_0001>

<llo_original>
// kernel: _lambda_.3
$region0: #{_lambda_.3}
  #allocation0 [shape = 'u32[]', space=smem, size = 0x4, offset = 0x4, fixed_abs, tag = 'smem constant byte address 0x4 - core index']
  #allocation1 [shape = 'u32[144,128]{1,0:T(1,128)}', space=vmem, size = 0x12000, scoped, tag = 'internal scratch']
  %s0 = inlined_call_operand.vmem [shape: bf16[512,32], index: 0, kind: input, shape index: {}]
  %s1 = inlined_call_operand.vmem [shape: f32[1,32], index: 1, kind: input, shape index: {}]
  %s2 = inlined_call_operand.vmem [shape: f32[1,32], index: 2, kind: input, shape index: {}]
  %s3 = inlined_call_operand.vmem [shape: f32[1,32], index: 3, kind: input, shape index: {}]
  %s4 = inlined_call_operand.vmem [shape: bf16[32,64], index: 4, kind: input, shape index: {}]
  %s5 = inlined_call_operand.hbm [shape: f32[512,64], index: 5, kind: output, shape index: {}]
  %s6 = sld [smem:[#allocation0]]
  $region53: #{_lambda_.3} parent=0
    _
  %s8 = ssub.s32 1, %s6
  %s9 = scalar_select 0, %s8, %s6
  $region1: #{_lambda_.3} parent=0
    #allocation2 [shape = 'u8[262144]{0}', space=vmem, size = 0x40000, scoped, tag = 'output window, operand 0']
    #allocation3 [shape = 's32[2]{0}', space=sflag, size = 0x8, scoped, tag = 'scoped memory for _lambda_.3']
    %10 = vsyncpa [#allocation3], 0
    %s11 = scalar_lea.sflag [#allocation3], 1
    %12 = vsyncpa %s11, 0
    loop: start=0, step=1, limit=4
    $region2: #{_lambda_.3} parent=1 // loop_pre_header
      _
    $region3: #{_lambda_.3} parent=1 // loop_header
      %s14 = sphi 0, %s18
      %p15 = scmp.ge.s32.totalorder %s14, 4
      %s24 = sphi 0, %s26
      %s27 = sphi 0, %s24
      %s28 = sphi 0, %s27
      %s44 = sphi 0, %s28
      %s48 = sphi 0, %s48
      %s50 = sphi 0, %s48
      %s51 = sphi 0, %s50
      %s65 = sphi 0, %s51
      %s69 = sphi 0, %s69
      %s71 = sphi 0, %s69
      %s72 = sphi 0, %s71
      %s86 = sphi 0, %s72
      %s90 = sphi 0, %s90
      %s92 = sphi 0, %s90
      %s93 = sphi 0, %s92
      %s107 = sphi 0, %s93
      %s111 = sphi 0, %s111
      %s113 = sphi 0, %s111
      %s114 = sphi 0, %s113
      %s128 = sphi 0, %s114
      %s134 = sphi 0, %s136
      %s137 = sphi 0, %s134
      %s138 = sphi 0, %s137
      %s154 = sphi 0, %s138
    $region4: #{_lambda_.3} parent=1 // loop_header_branch
      %17 = sbr.rel (%p15) target = $region8
    $region5: #{_lambda_.3} parent=1 // loop_body
      %s19 = ssub.s32 %s14, 1
      %s20 = ssub.s32 %s14, 2
      %s21 = sadd.s32 %s14, 1
      %s22 = ssub.s32 %s14, %s21
      %p23 = scmp.eq.s32.totalorder %s22, 0
      %s25 = sadd.s32 %s24, 1
      %s26 = scalar_select %p23, %s24, %s25
      %p29 = pneg %p23
      %p30 = scmp.eq.s32.totalorder %s14, 1
      %p31 = por %p29, %p30
      %p32 = scmp.ne.s32.totalorder %s24, %s27
      %p33 = scmp.eq.s32.totalorder %s14, 0
      %p34 = por %p32, %p33
      %p35 = scmp.ne.s32.totalorder %s24, %s27
      %p36 = scmp.eq.s32.totalorder %s19, 1
      %p37 = por %p35, %p36
      %p38 = scmp.ne.s32.totalorder %s27, %s28
      %p39 = scmp.eq.s32.totalorder %s19, 0
      %p40 = por %p38, %p39
      %p41 = scmp.ne.s32.totalorder %s27, %s28
      %p42 = scmp.eq.s32.totalorder %s20, 1
      %p43 = por %p41, %p42
      %p45 = scmp.ne.s32.totalorder %s28, %s44
      %p46 = scmp.eq.s32.totalorder %s20, 0
      %p47 = por %p45, %p46
      %s49 = sadd.s32 %s48, 1
      %p52 = scmp.eq.s32.totalorder %s14, 1
      %p53 = scmp.ne.s32.totalorder %s48, %s50
      %p54 = scmp.eq.s32.totalorder %s14, 0
      %p55 = por %p53, %p54
      %p56 = scmp.ne.s32.totalorder %s48, %s50
      %p57 = scmp.eq.s32.totalorder %s19, 1
      %p58 = por %p56, %p57
      %p59 = scmp.ne.s32.totalorder %s50, %s51
      %p60 = scmp.eq.s32.totalorder %s19, 0
      %p61 = por %p59, %p60
      %p62 = scmp.ne.s32.totalorder %s50, %s51
      %p63 = scmp.eq.s32.totalorder %s20, 1
      %p64 = por %p62, %p63
      %p66 = scmp.ne.s32.totalorder %s51, %s65
      %p67 = scmp.eq.s32.totalorder %s20, 0
      %p68 = por %p66, %p67
      %s70 = sadd.s32 %s69, 1
      %p73 = scmp.eq.s32.totalorder %s14, 1
      %p74 = scmp.ne.s32.totalorder %s69, %s71
      %p75 = scmp.eq.s32.totalorder %s14, 0
      %p76 = por %p74, %p75
      %p77 = scmp.ne.s32.totalorder %s69, %s71
      %p78 = scmp.eq.s32.totalorder %s19, 1
      %p79 = por %p77, %p78
      %p80 = scmp.ne.s32.totalorder %s71, %s72
      %p81 = scmp.eq.s32.totalorder %s19, 0
      %p82 = por %p80, %p81
      %p83 = scmp.ne.s32.totalorder %s71, %s72
      %p84 = scmp.eq.s32.totalorder %s20, 1
      %p85 = por %p83, %p84
      %p87 = scmp.ne.s32.totalorder %s72, %s86
      %p88 = scmp.eq.s32.totalorder %s20, 0
      %p89 = por %p87, %p88
      %s91 = sadd.s32 %s90, 1
      %p94 = scmp.eq.s32.totalorder %s14, 1
      %p95 = scmp.ne.s32.totalorder %s90, %s92
      %p96 = scmp.eq.s32.totalorder %s14, 0
      %p97 = por %p95, %p96
      %p98 = scmp.ne.s32.totalorder %s90, %s92
      %p99 = scmp.eq.s32.totalorder %s19, 1
      %p100 = por %p98, %p99
      %p101 = scmp.ne.s32.totalorder %s92, %s93
      %p102 = scmp.eq.s32.totalorder %s19, 0
      %p103 = por %p101, %p102
      %p104 = scmp.ne.s32.totalorder %s92, %s93
      %p105 = scmp.eq.s32.totalorder %s20, 1
      %p106 = por %p104, %p105
      %p108 = scmp.ne.s32.totalorder %s93, %s107
      %p109 = scmp.eq.s32.totalorder %s20, 0
      %p110 = por %p108, %p109
      %s112 = sadd.s32 %s111, 1
      %p115 = scmp.eq.s32.totalorder %s14, 1
      %p116 = scmp.ne.s32.totalorder %s111, %s113
      %p117 = scmp.eq.s32.totalorder %s14, 0
      %p118 = por %p116, %p117
      %p119 = scmp.ne.s32.totalorder %s111, %s113
      %p120 = scmp.eq.s32.totalorder %s19, 1
      %p121 = por %p119, %p120
      %p122 = scmp.ne.s32.totalorder %s113, %s114
      %p123 = scmp.eq.s32.totalorder %s19, 0
      %p124 = por %p122, %p123
      %p125 = scmp.ne.s32.totalorder %s113, %s114
      %p126 = scmp.eq.s32.totalorder %s20, 1
      %p127 = por %p125, %p126
      %p129 = scmp.ne.s32.totalorder %s114, %s128
      %p130 = scmp.eq.s32.totalorder %s20, 0
      %p131 = por %p129, %p130
      %s132 = ssub.s32 %s14, %s21
      %p133 = scmp.eq.s32.totalorder %s132, 0
      %s135 = sadd.s32 %s134, 1
      %s136 = scalar_select %p133, %s134, %s135
      %p139 = pneg %p133
      %p140 = scmp.eq.s32.totalorder %s14, 1
      %p141 = por %p139, %p140
      %p142 = scmp.ne.s32.totalorder %s134, %s137
      %p143 = scmp.eq.s32.totalorder %s14, 0
      %p144 = por %p142, %p143
      %p145 = scmp.ne.s32.totalorder %s134, %s137
      %p146 = scmp.eq.s32.totalorder %s19, 1
      %p147 = por %p145, %p146
      %p148 = scmp.ne.s32.totalorder %s137, %s138
      %p149 = scmp.eq.s32.totalorder %s19, 0
      %p150 = por %p148, %p149
      %p151 = scmp.ne.s32.totalorder %s137, %s138
      %p152 = scmp.eq.s32.totalorder %s20, 1
      %p153 = por %p151, %p152
      %p155 = scmp.ne.s32.totalorder %s138, %s154
      %p156 = scmp.eq.s32.totalorder %s20, 0
      %p157 = por %p155, %p156
      %p158 = scmp.le.s32.totalorder 1, %s14
      %p159 = scmp.lt.s32.totalorder %s14, 3
      %p160 = pnand %p158, %p159
      %p161 = pneg %p160
      // Predicated region
      $region9: #{_lambda_.3} parent=5 // pred_check
        _
      $region10: #{_lambda_.3} parent=5 // pred_check_branch
        %163 = sbr.rel (%p160) target = $region12
      $region11: #{_lambda_.3} parent=5 // pred_region
        %s164 = ssub.s32 %s14, 1
        // Predicated region
        $region13: #{_lambda_.3} parent=11 // pred_check
          %p165 = pneg %p61
        $region14: #{_lambda_.3} parent=11 // pred_check_branch
          %167 = sbr.rel (%p165) target = $region16
        $region15: #{_lambda_.3} parent=11 // pred_region
          _
        $region16: #{_lambda_.3} parent=11 // pred_fallthru
          _
        // Predicated region
        $region17: #{_lambda_.3} parent=11 // pred_check
          %p168 = pneg %p82
        $region18: #{_lambda_.3} parent=11 // pred_check_branch
          %170 = sbr.rel (%p168) target = $region20
        $region19: #{_lambda_.3} parent=11 // pred_region
          _
        $region20: #{_lambda_.3} parent=11 // pred_fallthru
          _
        // Predicated region
        $region21: #{_lambda_.3} parent=11 // pred_check
          %p171 = pneg %p103
        $region22: #{_lambda_.3} parent=11 // pred_check_branch
          %173 = sbr.rel (%p171) target = $region24
        $region23: #{_lambda_.3} parent=11 // pred_region
          _
        $region24: #{_lambda_.3} parent=11 // pred_fallthru
          _
        // Predicated region
        $region25: #{_lambda_.3} parent=11 // pred_check
          %p174 = pneg %p124
        $region26: #{_lambda_.3} parent=11 // pred_check_branch
          %176 = sbr.rel (%p174) target = $region28
        $region27: #{_lambda_.3} parent=11 // pred_region
          _
        $region28: #{_lambda_.3} parent=11 // pred_fallthru
          _
      $region12: #{_lambda_.3} parent=5 // pred_fallthru
        _
      %p177 = scmp.lt.s32.totalorder %s14, 2
      // Predicated region
      $region29: #{_lambda_.3} parent=5 // pred_check
        %p178 = pneg %p177
      $region30: #{_lambda_.3} parent=5 // pred_check_branch
        %180 = sbr.rel (%p178) target = $region32
      $region31: #{_lambda_.3} parent=5 // pred_region
        // Predicated region
        $region33: #{_lambda_.3} parent=31 // pred_check
          %p181 = pneg %p34
        $region34: #{_lambda_.3} parent=31 // pred_check_branch
          %183 = sbr.rel (%p181) target = $region36
        $region35: #{_lambda_.3} parent=31 // pred_region
          %s184 = smul.u32 32, %s14
          %p185 = scmp.lt.s32.totalorder %s184, 63
          %s186 = scalar_select %p185, %s184, 63
          %s187 = smul.addr %s186, 4
          %s188 = scalar_lea.vmem %s0, %s187
          %s189 = smul.u32 32, %s14
        $region36: #{_lambda_.3} parent=31 // pred_fallthru
          _
      $region32: #{_lambda_.3} parent=5 // pred_fallthru
        _
      %p190 = scmp.le.s32.totalorder 1, %s14
      %p191 = scmp.lt.s32.totalorder %s14, 3
      %p192 = pnand %p190, %p191
      %p193 = pneg %p192
      // Predicated region
      $region37: #{_lambda_.3} parent=5 // pred_check
        _
      $region38: #{_lambda_.3} parent=5 // pred_check_branch
        %195 = sbr.rel (%p192) target = $region40
      $region39: #{_lambda_.3} parent=5 // pred_region
        %s196 = ssub.s32 %s14, 1
        %s197 = smul.u32 32, %s19
        %p198 = scmp.lt.s32.totalorder %s197, 63
        %s199 = scalar_select %p198, %s197, 63
        %s200 = smul.addr %s199, 4
        %s201 = scalar_lea.vmem %s0, %s200
        %p202 = pneg %p40
        %p203 = pneg %p37
        %p204 = pneg %p61
        %p205 = pneg %p58
        %p206 = pneg %p82
        %p207 = pneg %p79
        %p208 = pneg %p103
        %p209 = pneg %p100
        %p210 = pneg %p124
        %p211 = pneg %p121
        %p212 = pneg %p150
        %p213 = pneg %p147
        %s214 = sand.u32 %s137, 1
        %s215 = scalar_lea.sflag [#allocation3], %s214
        %s216 = sand.u32 %s137, 1
        %s217 = smul.addr %s216, 256
        %s218 = scalar_lea.vmem [#allocation2], %s217
        %s219 = smul.u32 32, %s19
        %p220 = scmp.lt.s32.totalorder %s219, 63
        %s221 = scalar_select %p220, %s219, 63
        %s222 = smul.addr %s221, 4
        %s223 = scalar_lea.vmem %s0, %s222
        %s224 = smul.u32 32, %s19
        %s225 = smul.u32 32, %s19
        %v227 = vld [vmem:[%s223] sm:$0xf]
        %v228 = vld [vmem:[%s223 + $0x4] sm:$0xf]
        %v229 = vld [vmem:[%s223 + $0x8] sm:$0xf]
        %v230 = vld [vmem:[%s223 + $0xc] sm:$0xf]
        %v231 = vld [vmem:[%s223 + $0x10] sm:$0xf]
        %v232 = vld [vmem:[%s223 + $0x14] sm:$0xf]
        %v233 = vld [vmem:[%s223 + $0x18] sm:$0xf]
        %v234 = vld [vmem:[%s223 + $0x1c] sm:$0xf]
        %v235 = vld [vmem:[%s223 + $0x20] sm:$0xf]
        %v236 = vld [vmem:[%s223 + $0x24] sm:$0xf]
        %v237 = vld [vmem:[%s223 + $0x28] sm:$0xf]
        %v238 = vld [vmem:[%s223 + $0x2c] sm:$0xf]
        %v239 = vld [vmem:[%s223 + $0x30] sm:$0xf]
        %v240 = vld [vmem:[%s223 + $0x34] sm:$0xf]
        %v241 = vld [vmem:[%s223 + $0x38] sm:$0xf]
        %v242 = vld [vmem:[%s223 + $0x3c] sm:$0xf]
        %v243 = vld [vmem:[%s223 + $0x40] sm:$0xf]
        %v244 = vld [vmem:[%s223 + $0x44] sm:$0xf]
        %v245 = vld [vmem:[%s223 + $0x48] sm:$0xf]
        %v246 = vld [vmem:[%s223 + $0x4c] sm:$0xf]
        %v247 = vld [vmem:[%s223 + $0x50] sm:$0xf]
        %v248 = vld [vmem:[%s223 + $0x54] sm:$0xf]
        %v249 = vld [vmem:[%s223 + $0x58] sm:$0xf]
        %v250 = vld [vmem:[%s223 + $0x5c] sm:$0xf]
        %v251 = vld [vmem:[%s223 + $0x60] sm:$0xf]
        %v252 = vld [vmem:[%s223 + $0x64] sm:$0xf]
        %v253 = vld [vmem:[%s223 + $0x68] sm:$0xf]
        %v254 = vld [vmem:[%s223 + $0x6c] sm:$0xf]
        %v255 = vld [vmem:[%s223 + $0x70] sm:$0xf]
        %v256 = vld [vmem:[%s223 + $0x74] sm:$0xf]
        %v257 = vld [vmem:[%s223 + $0x78] sm:$0xf]
        %v258 = vld [vmem:[%s223 + $0x7c] sm:$0xf]
        %v259 = vunpack.c.l.bf16 %v227
        %v260 = vunpack.c.l.bf16 %v228
        %v261 = vunpack.c.l.bf16 %v229
        %v262 = vunpack.c.l.bf16 %v230
        %v263 = vunpack.c.l.bf16 %v231
        %v264 = vunpack.c.l.bf16 %v232
        %v265 = vunpack.c.l.bf16 %v233
        %v266 = vunpack.c.l.bf16 %v234
        %v267 = vunpack.c.l.bf16 %v235
        %v268 = vunpack.c.l.bf16 %v236
        %v269 = vunpack.c.l.bf16 %v237
        %v270 = vunpack.c.l.bf16 %v238
        %v271 = vunpack.c.l.bf16 %v239
        %v272 = vunpack.c.l.bf16 %v240
        %v273 = vunpack.c.l.bf16 %v241
        %v274 = vunpack.c.l.bf16 %v242
        %v275 = vunpack.c.l.bf16 %v243
        %v276 = vunpack.c.l.bf16 %v244
        %v277 = vunpack.c.l.bf16 %v245
        %v278 = vunpack.c.l.bf16 %v246
        %v279 = vunpack.c.l.bf16 %v247
        %v280 = vunpack.c.l.bf16 %v248
        %v281 = vunpack.c.l.bf16 %v249
        %v282 = vunpack.c.l.bf16 %v250
        %v283 = vunpack.c.l.bf16 %v251
        %v284 = vunpack.c.l.bf16 %v252
        %v285 = vunpack.c.l.bf16 %v253
        %v286 = vunpack.c.l.bf16 %v254
        %v287 = vunpack.c.l.bf16 %v255
        %v288 = vunpack.c.l.bf16 %v256
        %v289 = vunpack.c.l.bf16 %v257
        %v290 = vunpack.c.l.bf16 %v258
        %v291 = vld [vmem:[%s1] sm:$0x1]
        %v293 = vlaneseq
        %v294 = vshrl.u32 %v293, 7
        %v295 = vsub.s32 0, %v294
        %v296 = vrot.slane %v291, %v295
        %v298 = vmul.f32 %v259, %v296
        %v299 = vmul.f32 %v260, %v296
        %v300 = vmul.f32 %v261, %v296
        %v301 = vmul.f32 %v262, %v296
        %v302 = vmul.f32 %v263, %v296
        %v303 = vmul.f32 %v264, %v296
        %v304 = vmul.f32 %v265, %v296
        %v305 = vmul.f32 %v266, %v296
        %v306 = vmul.f32 %v267, %v296
        %v307 = vmul.f32 %v268, %v296
        %v308 = vmul.f32 %v269, %v296
        %v309 = vmul.f32 %v270, %v296
        %v310 = vmul.f32 %v271, %v296
        %v311 = vmul.f32 %v272, %v296
        %v312 = vmul.f32 %v273, %v296
        %v313 = vmul.f32 %v274, %v296
        %v314 = vmul.f32 %v275, %v296
        %v315 = vmul.f32 %v276, %v296
        %v316 = vmul.f32 %v277, %v296
        %v317 = vmul.f32 %v278, %v296
        %v318 = vmul.f32 %v279, %v296
        %v319 = vmul.f32 %v280, %v296
        %v320 = vmul.f32 %v281, %v296
        %v321 = vmul.f32 %v282, %v296
        %v322 = vmul.f32 %v283, %v296
        %v323 = vmul.f32 %v284, %v296
        %v324 = vmul.f32 %v285, %v296
        %v325 = vmul.f32 %v286, %v296
        %v326 = vmul.f32 %v287, %v296
        %v327 = vmul.f32 %v288, %v296
        %v328 = vmul.f32 %v289, %v296
        %v329 = vmul.f32 %v290, %v296
        %v330 = vld [vmem:[%s2] sm:$0x1]
        %v332 = vlaneseq
        %v333 = vshrl.u32 %v332, 7
        %v334 = vsub.s32 0, %v333
        %v335 = vrot.slane %v330, %v334
        %v337 = vadd.f32 %v298, %v335
        %v338 = vadd.f32 %v299, %v335
        %v339 = vadd.f32 %v300, %v335
        %v340 = vadd.f32 %v301, %v335
        %v341 = vadd.f32 %v302, %v335
        %v342 = vadd.f32 %v303, %v335
        %v343 = vadd.f32 %v304, %v335
        %v344 = vadd.f32 %v305, %v335
        %v345 = vadd.f32 %v306, %v335
        %v346 = vadd.f32 %v307, %v335
        %v347 = vadd.f32 %v308, %v335
        %v348 = vadd.f32 %v309, %v335
        %v349 = vadd.f32 %v310, %v335
        %v350 = vadd.f32 %v311, %v335
        %v351 = vadd.f32 %v312, %v335
        %v352 = vadd.f32 %v313, %v335
        %v353 = vadd.f32 %v314, %v335
        %v354 = vadd.f32 %v315, %v335
        %v355 = vadd.f32 %v316, %v335
        %v356 = vadd.f32 %v317, %v335
        %v357 = vadd.f32 %v318, %v335
        %v358 = vadd.f32 %v319, %v335
        %v359 = vadd.f32 %v320, %v335
        %v360 = vadd.f32 %v321, %v335
        %v361 = vadd.f32 %v322, %v335
        %v362 = vadd.f32 %v323, %v335
        %v363 = vadd.f32 %v324, %v335
        %v364 = vadd.f32 %v325, %v335
        %v365 = vadd.f32 %v326, %v335
        %v366 = vadd.f32 %v327, %v335
        %v367 = vadd.f32 %v328, %v335
        %v368 = vadd.f32 %v329, %v335
        %vm369 = vcmp.gt.f32.partialorder %v337, 0.0
        %vm370 = vcmp.gt.f32.partialorder %v338, 0.0
        %vm371 = vcmp.gt.f32.partialorder %v339, 0.0
        %vm372 = vcmp.gt.f32.partialorder %v340, 0.0
        %vm373 = vcmp.gt.f32.partialorder %v341, 0.0
        %vm374 = vcmp.gt.f32.partialorder %v342, 0.0
        %vm375 = vcmp.gt.f32.partialorder %v343, 0.0
        %vm376 = vcmp.gt.f32.partialorder %v344, 0.0
        %vm377 = vcmp.gt.f32.partialorder %v345, 0.0
        %vm378 = vcmp.gt.f32.partialorder %v346, 0.0
        %vm379 = vcmp.gt.f32.partialorder %v347, 0.0
        %vm380 = vcmp.gt.f32.partialorder %v348, 0.0
        %vm381 = vcmp.gt.f32.partialorder %v349, 0.0
        %vm382 = vcmp.gt.f32.partialorder %v350, 0.0
        %vm383 = vcmp.gt.f32.partialorder %v351, 0.0
        %vm384 = vcmp.gt.f32.partialorder %v352, 0.0
        %vm385 = vcmp.gt.f32.partialorder %v353, 0.0
        %vm386 = vcmp.gt.f32.partialorder %v354, 0.0
        %vm387 = vcmp.gt.f32.partialorder %v355, 0.0
        %vm388 = vcmp.gt.f32.partialorder %v356, 0.0
        %vm389 = vcmp.gt.f32.partialorder %v357, 0.0
        %vm390 = vcmp.gt.f32.partialorder %v358, 0.0
        %vm391 = vcmp.gt.f32.partialorder %v359, 0.0
        %vm392 = vcmp.gt.f32.partialorder %v360, 0.0
        %vm393 = vcmp.gt.f32.partialorder %v361, 0.0
        %vm394 = vcmp.gt.f32.partialorder %v362, 0.0
        %vm395 = vcmp.gt.f32.partialorder %v363, 0.0
        %vm396 = vcmp.gt.f32.partialorder %v364, 0.0
        %vm397 = vcmp.gt.f32.partialorder %v365, 0.0
        %vm398 = vcmp.gt.f32.partialorder %v366, 0.0
        %vm399 = vcmp.gt.f32.partialorder %v367, 0.0
        %vm400 = vcmp.gt.f32.partialorder %v368, 0.0
        %v401 = vld [vmem:[%s3] sm:$0x1]
        %v403 = vlaneseq
        %v404 = vshrl.u32 %v403, 7
        %v405 = vsub.s32 0, %v404
        %v406 = vrot.slane %v401, %v405
        %v408 = vmul.f32 %v406, %v337
        %v409 = vmul.f32 %v406, %v338
        %v410 = vmul.f32 %v406, %v339
        %v411 = vmul.f32 %v406, %v340
        %v412 = vmul.f32 %v406, %v341
        %v413 = vmul.f32 %v406, %v342
        %v414 = vmul.f32 %v406, %v343
        %v415 = vmul.f32 %v406, %v344
        %v416 = vmul.f32 %v406, %v345
        %v417 = vmul.f32 %v406, %v346
        %v418 = vmul.f32 %v406, %v347
        %v419 = vmul.f32 %v406, %v348
        %v420 = vmul.f32 %v406, %v349
        %v421 = vmul.f32 %v406, %v350
        %v422 = vmul.f32 %v406, %v351
        %v423 = vmul.f32 %v406, %v352
        %v424 = vmul.f32 %v406, %v353
        %v425 = vmul.f32 %v406, %v354
        %v426 = vmul.f32 %v406, %v355
        %v427 = vmul.f32 %v406, %v356
        %v428 = vmul.f32 %v406, %v357
        %v429 = vmul.f32 %v406, %v358
        %v430 = vmul.f32 %v406, %v359
        %v431 = vmul.f32 %v406, %v360
        %v432 = vmul.f32 %v406, %v361
        %v433 = vmul.f32 %v406, %v362
        %v434 = vmul.f32 %v406, %v363
        %v435 = vmul.f32 %v406, %v364
        %v436 = vmul.f32 %v406, %v365
        %v437 = vmul.f32 %v406, %v366
        %v438 = vmul.f32 %v406, %v367
        %v439 = vmul.f32 %v406, %v368
        %v440 = vsel %vm369, %v337, %v408
        %v441 = vsel %vm370, %v338, %v409
        %v442 = vsel %vm371, %v339, %v410
        %v443 = vsel %vm372, %v340, %v411
        %v444 = vsel %vm373, %v341, %v412
        %v445 = vsel %vm374, %v342, %v413
        %v446 = vsel %vm375, %v343, %v414
        %v447 = vsel %vm376, %v344, %v415
        %v448 = vsel %vm377, %v345, %v416
        %v449 = vsel %vm378, %v346, %v417
        %v450 = vsel %vm379, %v347, %v418
        %v451 = vsel %vm380, %v348, %v419
        %v452 = vsel %vm381, %v349, %v420
        %v453 = vsel %vm382, %v350, %v421
        %v454 = vsel %vm383, %v351, %v422
        %v455 = vsel %vm384, %v352, %v423
        %v456 = vsel %vm385, %v353, %v424
        %v457 = vsel %vm386, %v354, %v425
        %v458 = vsel %vm387, %v355, %v426
        %v459 = vsel %vm388, %v356, %v427
        %v460 = vsel %vm389, %v357, %v428
        %v461 = vsel %vm390, %v358, %v429
        %v462 = vsel %vm391, %v359, %v430
        %v463 = vsel %vm392, %v360, %v431
        %v464 = vsel %vm393, %v361, %v432
        %v465 = vsel %vm394, %v362, %v433
        %v466 = vsel %vm395, %v363, %v434
        %v467 = vsel %vm396, %v364, %v435
        %v468 = vsel %vm397, %v365, %v436
        %v469 = vsel %vm398, %v366, %v437
        %v470 = vsel %vm399, %v367, %v438
        %v471 = vsel %vm400, %v368, %v439
        %v472 = vpack.c.bf16 %v441, %v440
        %v473 = vpack.c.bf16 %v443, %v442
        %v474 = vpack.c.bf16 %v445, %v444
        %v475 = vpack.c.bf16 %v447, %v446
        %v476 = vpack.c.bf16 %v449, %v448
        %v477 = vpack.c.bf16 %v451, %v450
        %v478 = vpack.c.bf16 %v453, %v452
        %v479 = vpack.c.bf16 %v455, %v454
        %v480 = vpack.c.bf16 %v457, %v456
        %v481 = vpack.c.bf16 %v459, %v458
        %v482 = vpack.c.bf16 %v461, %v460
        %v483 = vpack.c.bf16 %v463, %v462
        %v484 = vpack.c.bf16 %v465, %v464
        %v485 = vpack.c.bf16 %v467, %v466
        %v486 = vpack.c.bf16 %v469, %v468
        %v487 = vpack.c.bf16 %v471, %v470
        %v488 = vld [vmem:[%s4] sm:$0xf]
        %v489 = vld [vmem:[%s4 + $0x4] sm:$0xf]
        %v490 = vld [vmem:[%s4 + $0x8] sm:$0xf]
        %v491 = vld [vmem:[%s4 + $0xc] sm:$0xf]
        %v496 = vunpack.c.l.b16 %v488
        %v497 = vunpack.c.l.b16 %v489
        %v498 = vunpack.c.l.b16 %v490
        %v499 = vunpack.c.l.b16 %v491
        %v500 = vpack.c.b16 %v497, %v496
        %v501 = vpack.c.b16 %v499, %v498
        %vm504 = vcmask 261120
        %v506 = vsel %vm504, %v472, 0
        %v509 = vsel %vm504, %v473, 0
        %v512 = vsel %vm504, %v474, 0
        %v515 = vsel %vm504, %v475, 0
        %v518 = vsel %vm504, %v476, 0
        %v521 = vsel %vm504, %v477, 0
        %v524 = vsel %vm504, %v478, 0
        %v527 = vsel %vm504, %v479, 0
        %v530 = vsel %vm504, %v480, 0
        %v533 = vsel %vm504, %v481, 0
        %v536 = vsel %vm504, %v482, 0
        %v539 = vsel %vm504, %v483, 0
        %v542 = vsel %vm504, %v484, 0
        %v545 = vsel %vm504, %v485, 0
        %v548 = vsel %vm504, %v486, 0
        %v551 = vsel %vm504, %v487, 0
        %553 = vmatprep.subr.bf16.mxu0 0
        %554 = vmatpush1.bf16.msra.mxu0 0
        %555 = vmatprep.subr.bf16.mxu0 0
        %556 = vmatpush1.bf16.msra.mxu0 0
        %557 = vmatprep.subr.bf16.mxu0 0
        %558 = vmatpush1.bf16.msra.mxu0 0
        %559 = vmatprep.subr.bf16.mxu0 0
        %560 = vmatpush1.bf16.msra.mxu0 0
        %561 = vmatprep.subr.bf16.mxu0 0
        %562 = vmatpush1.bf16.msra.mxu0 0
        %563 = vmatprep.subr.bf16.mxu0 0
        %564 = vmatpush1.bf16.msra.mxu0 0
        %565 = vmatprep.subr.bf16.mxu0 0
        %566 = vmatpush1.bf16.msra.mxu0 %v501
        %567 = vmatprep.subr.bf16.mxu0 0
        %568 = vmatpush1.bf16.msra.mxu0 %v500
        %569 = vmatprep.subr.bf16.mxu0 0
        %570 = vmatpush2.bf16.msra.mxu0 0
        %571 = vmatprep.subr.bf16.mxu0 0
        %572 = vmatpush2.bf16.msra.mxu0 0
        %573 = vmatprep.subr.bf16.mxu0 0
        %574 = vmatpush2.bf16.msra.mxu0 0
        %575 = vmatprep.subr.bf16.mxu0 0
        %576 = vmatpush2.bf16.msra.mxu0 0
        %577 = vmatprep.subr.bf16.mxu0 0
        %578 = vmatpush2.bf16.msra.mxu0 0
        %579 = vmatprep.subr.bf16.mxu0 0
        %580 = vmatpush2.bf16.msra.mxu0 0
        %581 = vmatprep.subr.bf16.mxu0 0
        %582 = vmatpush2.bf16.msra.mxu0 0
        %583 = vmatprep.subr.bf16.mxu0 0
        %584 = vmatpush2.bf16.msra.mxu0 0
        %585 = vmatprep.mubr.bf16.mxu0 0
        %586 = vmatmul.mubr.bf16.gmra.mxu0 %v506
        %v587 = vpop.f32.mrf.mxu0
        %v588 = vadd.f32 0.0, %v587
        %v589 = vpop.f32.mrf.mxu0
        %v590 = vpop.f32.mrf.mxu0
        %v591 = vadd.f32 0.0, %v590
        %v592 = vpop.f32.mrf.mxu0
        %593 = vmatprep.mubr.bf16.mxu0 0
        %594 = vmatmul.mubr.bf16.gmra.mxu0 %v509
        %v595 = vpop.f32.mrf.mxu0
        %v596 = vadd.f32 0.0, %v595
        %v597 = vpop.f32.mrf.mxu0
        %v598 = vpop.f32.mrf.mxu0
        %v599 = vadd.f32 0.0, %v598
        %v600 = vpop.f32.mrf.mxu0
        %601 = vmatprep.mubr.bf16.mxu0 0
        %602 = vmatmul.mubr.bf16.gmra.mxu0 %v512
        %v603 = vpop.f32.mrf.mxu0
        %v604 = vadd.f32 0.0, %v603
        %v605 = vpop.f32.mrf.mxu0
        %v606 = vpop.f32.mrf.mxu0
        %v607 = vadd.f32 0.0, %v606
        %v608 = vpop.f32.mrf.mxu0
        %609 = vmatprep.mubr.bf16.mxu0 0
        %610 = vmatmul.mubr.bf16.gmra.mxu0 %v515
        %v611 = vpop.f32.mrf.mxu0
        %v612 = vadd.f32 0.0, %v611
        %v613 = vpop.f32.mrf.mxu0
        %v614 = vpop.f32.mrf.mxu0
        %v615 = vadd.f32 0.0, %v614
        %v616 = vpop.f32.mrf.mxu0
        %617 = vmatprep.mubr.bf16.mxu0 0
        %618 = vmatmul.mubr.bf16.gmra.mxu0 %v518
        %v619 = vpop.f32.mrf.mxu0
        %v620 = vadd.f32 0.0, %v619
        %v621 = vpop.f32.mrf.mxu0
        %v622 = vpop.f32.mrf.mxu0
        %v623 = vadd.f32 0.0, %v622
        %v624 = vpop.f32.mrf.mxu0
        %625 = vmatprep.mubr.bf16.mxu0 0
        %626 = vmatmul.mubr.bf16.gmra.mxu0 %v521
        %v627 = vpop.f32.mrf.mxu0
        %v628 = vadd.f32 0.0, %v627
        %v629 = vpop.f32.mrf.mxu0
        %v630 = vpop.f32.mrf.mxu0
        %v631 = vadd.f32 0.0, %v630
        %v632 = vpop.f32.mrf.mxu0
        %633 = vmatprep.mubr.bf16.mxu0 0
        %634 = vmatmul.mubr.bf16.gmra.mxu0 %v524
        %v635 = vpop.f32.mrf.mxu0
        %v636 = vadd.f32 0.0, %v635
        %v637 = vpop.f32.mrf.mxu0
        %v638 = vpop.f32.mrf.mxu0
        %v639 = vadd.f32 0.0, %v638
        %v640 = vpop.f32.mrf.mxu0
        %641 = vmatprep.mubr.bf16.mxu0 0
        %642 = vmatmul.mubr.bf16.gmra.mxu0 %v527
        %v643 = vpop.f32.mrf.mxu0
        %v644 = vadd.f32 0.0, %v643
        %v645 = vpop.f32.mrf.mxu0
        %v646 = vpop.f32.mrf.mxu0
        %v647 = vadd.f32 0.0, %v646
        %v648 = vpop.f32.mrf.mxu0
        %649 = vmatprep.mubr.bf16.mxu0 0
        %650 = vmatmul.mubr.bf16.gmra.mxu0 %v530
        %v651 = vpop.f32.mrf.mxu0
        %v652 = vadd.f32 0.0, %v651
        %v653 = vpop.f32.mrf.mxu0
        %v654 = vpop.f32.mrf.mxu0
        %v655 = vadd.f32 0.0, %v654
        %v656 = vpop.f32.mrf.mxu0
        %657 = vmatprep.mubr.bf16.mxu0 0
        %658 = vmatmul.mubr.bf16.gmra.mxu0 %v533
        %v659 = vpop.f32.mrf.mxu0
        %v660 = vadd.f32 0.0, %v659
        %v661 = vpop.f32.mrf.mxu0
        %v662 = vpop.f32.mrf.mxu0
        %v663 = vadd.f32 0.0, %v662
        %v664 = vpop.f32.mrf.mxu0
        %665 = vmatprep.mubr.bf16.mxu0 0
        %666 = vmatmul.mubr.bf16.gmra.mxu0 %v536
        %v667 = vpop.f32.mrf.mxu0
        %v668 = vadd.f32 0.0, %v667
        %v669 = vpop.f32.mrf.mxu0
        %v670 = vpop.f32.mrf.mxu0
        %v671 = vadd.f32 0.0, %v670
        %v672 = vpop.f32.mrf.mxu0
        %673 = vmatprep.mubr.bf16.mxu0 0
        %674 = vmatmul.mubr.bf16.gmra.mxu0 %v539
        %v675 = vpop.f32.mrf.mxu0
        %v676 = vadd.f32 0.0, %v675
        %v677 = vpop.f32.mrf.mxu0
        %v678 = vpop.f32.mrf.mxu0
        %v679 = vadd.f32 0.0, %v678
        %v680 = vpop.f32.mrf.mxu0
        %681 = vmatprep.mubr.bf16.mxu0 0
        %682 = vmatmul.mubr.bf16.gmra.mxu0 %v542
        %v683 = vpop.f32.mrf.mxu0
        %v684 = vadd.f32 0.0, %v683
        %v685 = vpop.f32.mrf.mxu0
        %v686 = vpop.f32.mrf.mxu0
        %v687 = vadd.f32 0.0, %v686
        %v688 = vpop.f32.mrf.mxu0
        %689 = vmatprep.mubr.bf16.mxu0 0
        %690 = vmatmul.mubr.bf16.gmra.mxu0 %v545
        %v691 = vpop.f32.mrf.mxu0
        %v692 = vadd.f32 0.0, %v691
        %v693 = vpop.f32.mrf.mxu0
        %v694 = vpop.f32.mrf.mxu0
        %v695 = vadd.f32 0.0, %v694
        %v696 = vpop.f32.mrf.mxu0
        %697 = vmatprep.mubr.bf16.mxu0 0
        %698 = vmatmul.mubr.bf16.gmra.mxu0 %v548
        %v699 = vpop.f32.mrf.mxu0
        %v700 = vadd.f32 0.0, %v699
        %v701 = vpop.f32.mrf.mxu0
        %v702 = vpop.f32.mrf.mxu0
        %v703 = vadd.f32 0.0, %v702
        %v704 = vpop.f32.mrf.mxu0
        %705 = vmatprep.mubr.bf16.mxu0 0
        %706 = vmatmul.mubr.bf16.gmra.mxu0 %v551
        %v707 = vpop.f32.mrf.mxu0
        %v708 = vadd.f32 0.0, %v707
        %v709 = vpop.f32.mrf.mxu0
        %v710 = vpop.f32.mrf.mxu0
        %v711 = vadd.f32 0.0, %v710
        %v712 = vpop.f32.mrf.mxu0
        %713 = vdwg.mxu0
        %vm714 = vcmask 523264
        %715 = vst.msk [vmem:[%s218] sm:$0xff] %vm714, %v588
        %716 = vst.msk [vmem:[%s218 + $0x8] sm:$0xff] %vm714, %v591
        %717 = vst.msk [vmem:[%s218 + $0x10] sm:$0xff] %vm714, %v596
        %718 = vst.msk [vmem:[%s218 + $0x18] sm:$0xff] %vm714, %v599
        %719 = vst.msk [vmem:[%s218 + $0x20] sm:$0xff] %vm714, %v604
        %720 = vst.msk [vmem:[%s218 + $0x28] sm:$0xff] %vm714, %v607
        %721 = vst.msk [vmem:[%s218 + $0x30] sm:$0xff] %vm714, %v612
        %722 = vst.msk [vmem:[%s218 + $0x38] sm:$0xff] %vm714, %v615
        %723 = vst.msk [vmem:[%s218 + $0x40] sm:$0xff] %vm714, %v620
        %724 = vst.msk [vmem:[%s218 + $0x48] sm:$0xff] %vm714, %v623
        %725 = vst.msk [vmem:[%s218 + $0x50] sm:$0xff] %vm714, %v628
        %726 = vst.msk [vmem:[%s218 + $0x58] sm:$0xff] %vm714, %v631
        %727 = vst.msk [vmem:[%s218 + $0x60] sm:$0xff] %vm714, %v636
        %728 = vst.msk [vmem:[%s218 + $0x68] sm:$0xff] %vm714, %v639
        %729 = vst.msk [vmem:[%s218 + $0x70] sm:$0xff] %vm714, %v644
        %730 = vst.msk [vmem:[%s218 + $0x78] sm:$0xff] %vm714, %v647
        %731 = vst.msk [vmem:[%s218 + $0x80] sm:$0xff] %vm714, %v652
        %732 = vst.msk [vmem:[%s218 + $0x88] sm:$0xff] %vm714, %v655
        %733 = vst.msk [vmem:[%s218 + $0x90] sm:$0xff] %vm714, %v660
        %734 = vst.msk [vmem:[%s218 + $0x98] sm:$0xff] %vm714, %v663
        %735 = vst.msk [vmem:[%s218 + $0xa0] sm:$0xff] %vm714, %v668
        %736 = vst.msk [vmem:[%s218 + $0xa8] sm:$0xff] %vm714, %v671
        %737 = vst.msk [vmem:[%s218 + $0xb0] sm:$0xff] %vm714, %v676
        %738 = vst.msk [vmem:[%s218 + $0xb8] sm:$0xff] %vm714, %v679
        %739 = vst.msk [vmem:[%s218 + $0xc0] sm:$0xff] %vm714, %v684
        %740 = vst.msk [vmem:[%s218 + $0xc8] sm:$0xff] %vm714, %v687
        %741 = vst.msk [vmem:[%s218 + $0xd0] sm:$0xff] %vm714, %v692
        %742 = vst.msk [vmem:[%s218 + $0xd8] sm:$0xff] %vm714, %v695
        %743 = vst.msk [vmem:[%s218 + $0xe0] sm:$0xff] %vm714, %v700
        %744 = vst.msk [vmem:[%s218 + $0xe8] sm:$0xff] %vm714, %v703
        %745 = vst.msk [vmem:[%s218 + $0xf0] sm:$0xff] %vm714, %v708
        %746 = vst.msk [vmem:[%s218 + $0xf8] sm:$0xff] %vm714, %v711
        %s747 = sand.u32 %s137, 1
        %s748 = scalar_lea.sflag [#allocation3], %s747
        %s749 = sand.u32 %s137, 1
        %s750 = smul.addr %s749, 256
        %s751 = scalar_lea.vmem [#allocation2], %s750
        // Predicated region
        $region41: #{_lambda_.3} parent=39 // pred_check
          %p752 = pneg %p147
        $region42: #{_lambda_.3} parent=39 // pred_check_branch
          %754 = sbr.rel (%p752) target = $region44
        $region43: #{_lambda_.3} parent=39 // pred_region
          %s755 = smul.u32 32, %s19
          %s757 = ssub.s32 4096, 4096
          %758 = vsyncadd %s748, %s757
          %s759 = smul.addr %s755, 128
          %s760 = scalar_lea.hbm %s5, %s759
          %s761 = sshll.u32 %s751, 4
          %s762 = int_to_ptr.vmem [resolvable:$true] %s761
          %767 = dma.vmem_to_hbm [thread:$0]  %s762, 4096, %s760, %s748, 128, 128, 8
        $region44: #{_lambda_.3} parent=39 // pred_fallthru
          _
      $region40: #{_lambda_.3} parent=5 // pred_fallthru
        _
      %p768 = scmp.le.s32.totalorder 2, %s14
      // Predicated region
      $region45: #{_lambda_.3} parent=5 // pred_check
        %p769 = pneg %p768
      $region46: #{_lambda_.3} parent=5 // pred_check_branch
        %771 = sbr.rel (%p769) target = $region48
      $region47: #{_lambda_.3} parent=5 // pred_region
        %s772 = ssub.s32 %s14, 2
        // Predicated region
        $region49: #{_lambda_.3} parent=47 // pred_check
          %p773 = pneg %p153
        $region50: #{_lambda_.3} parent=47 // pred_check_branch
          %775 = sbr.rel (%p773) target = $region52
        $region51: #{_lambda_.3} parent=47 // pred_region
          %s776 = sand.u32 %s138, 1
          %s777 = scalar_lea.sflag [#allocation3], %s776
          %s778 = sand.u32 %s138, 1
          %s779 = smul.addr %s778, 256
          %s780 = scalar_lea.vmem [#allocation2], %s779
          %781 = dma.done %s777, 4096
        $region52: #{_lambda_.3} parent=47 // pred_fallthru
          _
      $region48: #{_lambda_.3} parent=5 // pred_fallthru
        _
    $region6: #{_lambda_.3} parent=1 // loop_footer
      %s18 = sadd.s32 1, %s14
    $region7: #{_lambda_.3} parent=1 // loop_footer_branch
      %13 = sbr.rel target = $region3
    $region8: #{_lambda_.3} parent=1 // loop_exit
      _
    %782 = vsyncpa [#allocation3], 1
    %s783 = scalar_lea.sflag [#allocation3], 1
    %784 = vsyncpa %s783, 1

// kernel: _lambda_.2
$region0: #{_lambda_.2}
  #allocation0 [shape = 'u32[]', space=smem, size = 0x4, offset = 0x4, fixed_abs, tag = 'smem constant byte address 0x4 - core index']
  #allocation1 [shape = 'u32[144,128]{1,0:T(1,128)}', space=vmem, size = 0x12000, scoped, tag = 'internal scratch']
  %s0 = inlined_call_operand.vmem [shape: bf16[2,18,18,32], index: 0, kind: input, shape index: {}]
  %s1 = inlined_call_operand.vmem [shape: bf16[3,3,32,32], index: 1, kind: input, shape index: {}]
  %s2 = inlined_call_operand.vmem [shape: bf16[2,256,32], index: 2, kind: output, shape index: {0}]
  %s3 = inlined_call_operand.vmem [shape: f32[2,1,32], index: 3, kind: output, shape index: {1}]
  %s4 = inlined_call_operand.vmem [shape: f32[2,1,32], index: 4, kind: output, shape index: {2}]
  %5 = xla_tuple %s2, %s3, %s4
  %s6 = sld [smem:[#allocation0]]
  $region57: #{_lambda_.2} parent=0
    _
  %s8 = ssub.s32 1, %s6
  %s9 = scalar_select 0, %s8, %s6
  loop: start=0, step=1, limit=4
  $region2: #{_lambda_.2} parent=0 // loop_pre_header
    _
  $region3: #{_lambda_.2} parent=0 // loop_header
    %s11 = sphi 0, %s15
    %p12 = scmp.ge.s32.totalorder %s11, 4
    %s21 = sphi 0, %s23
    %s24 = sphi 0, %s21
    %s25 = sphi 0, %s24
    %s41 = sphi 0, %s25
    %s45 = sphi 0, %s45
    %s47 = sphi 0, %s45
    %s48 = sphi 0, %s47
    %s62 = sphi 0, %s48
    %s68 = sphi 0, %s70
    %s71 = sphi 0, %s68
    %s72 = sphi 0, %s71
    %s88 = sphi 0, %s72
    %s94 = sphi 0, %s96
    %s97 = sphi 0, %s94
    %s98 = sphi 0, %s97
    %s114 = sphi 0, %s98
    %s120 = sphi 0, %s122
    %s123 = sphi 0, %s120
    %s124 = sphi 0, %s123
    %s140 = sphi 0, %s124
  $region4: #{_lambda_.2} parent=0 // loop_header_branch
    %14 = sbr.rel (%p12) target = $region8
  $region5: #{_lambda_.2} parent=0 // loop_body
    %s16 = ssub.s32 %s11, 1
    %s17 = ssub.s32 %s11, 2
    %s18 = sadd.s32 %s11, 1
    %s19 = ssub.s32 %s11, %s18
    %p20 = scmp.eq.s32.totalorder %s19, 0
    %s22 = sadd.s32 %s21, 1
    %s23 = scalar_select %p20, %s21, %s22
    %p26 = pneg %p20
    %p27 = scmp.eq.s32.totalorder %s11, 1
    %p28 = por %p26, %p27
    %p29 = scmp.ne.s32.totalorder %s21, %s24
    %p30 = scmp.eq.s32.totalorder %s11, 0
    %p31 = por %p29, %p30
    %p32 = scmp.ne.s32.totalorder %s21, %s24
    %p33 = scmp.eq.s32.totalorder %s16, 1
    %p34 = por %p32, %p33
    %p35 = scmp.ne.s32.totalorder %s24, %s25
    %p36 = scmp.eq.s32.totalorder %s16, 0
    %p37 = por %p35, %p36
    %p38 = scmp.ne.s32.totalorder %s24, %s25
    %p39 = scmp.eq.s32.totalorder %s17, 1
    %p40 = por %p38, %p39
    %p42 = scmp.ne.s32.totalorder %s25, %s41
    %p43 = scmp.eq.s32.totalorder %s17, 0
    %p44 = por %p42, %p43
    %s46 = sadd.s32 %s45, 1
    %p49 = scmp.eq.s32.totalorder %s11, 1
    %p50 = scmp.ne.s32.totalorder %s45, %s47
    %p51 = scmp.eq.s32.totalorder %s11, 0
    %p52 = por %p50, %p51
    %p53 = scmp.ne.s32.totalorder %s45, %s47
    %p54 = scmp.eq.s32.totalorder %s16, 1
    %p55 = por %p53, %p54
    %p56 = scmp.ne.s32.totalorder %s47, %s48
    %p57 = scmp.eq.s32.totalorder %s16, 0
    %p58 = por %p56, %p57
    %p59 = scmp.ne.s32.totalorder %s47, %s48
    %p60 = scmp.eq.s32.totalorder %s17, 1
    %p61 = por %p59, %p60
    %p63 = scmp.ne.s32.totalorder %s48, %s62
    %p64 = scmp.eq.s32.totalorder %s17, 0
    %p65 = por %p63, %p64
    %s66 = ssub.s32 %s11, %s18
    %p67 = scmp.eq.s32.totalorder %s66, 0
    %s69 = sadd.s32 %s68, 1
    %s70 = scalar_select %p67, %s68, %s69
    %p73 = pneg %p67
    %p74 = scmp.eq.s32.totalorder %s11, 1
    %p75 = por %p73, %p74
    %p76 = scmp.ne.s32.totalorder %s68, %s71
    %p77 = scmp.eq.s32.totalorder %s11, 0
    %p78 = por %p76, %p77
    %p79 = scmp.ne.s32.totalorder %s68, %s71
    %p80 = scmp.eq.s32.totalorder %s16, 1
    %p81 = por %p79, %p80
    %p82 = scmp.ne.s32.totalorder %s71, %s72
    %p83 = scmp.eq.s32.totalorder %s16, 0
    %p84 = por %p82, %p83
    %p85 = scmp.ne.s32.totalorder %s71, %s72
    %p86 = scmp.eq.s32.totalorder %s17, 1
    %p87 = por %p85, %p86
    %p89 = scmp.ne.s32.totalorder %s72, %s88
    %p90 = scmp.eq.s32.totalorder %s17, 0
    %p91 = por %p89, %p90
    %s92 = ssub.s32 %s11, %s18
    %p93 = scmp.eq.s32.totalorder %s92, 0
    %s95 = sadd.s32 %s94, 1
    %s96 = scalar_select %p93, %s94, %s95
    %p99 = pneg %p93
    %p100 = scmp.eq.s32.totalorder %s11, 1
    %p101 = por %p99, %p100
    %p102 = scmp.ne.s32.totalorder %s94, %s97
    %p103 = scmp.eq.s32.totalorder %s11, 0
    %p104 = por %p102, %p103
    %p105 = scmp.ne.s32.totalorder %s94, %s97
    %p106 = scmp.eq.s32.totalorder %s16, 1
    %p107 = por %p105, %p106
    %p108 = scmp.ne.s32.totalorder %s97, %s98
    %p109 = scmp.eq.s32.totalorder %s16, 0
    %p110 = por %p108, %p109
    %p111 = scmp.ne.s32.totalorder %s97, %s98
    %p112 = scmp.eq.s32.totalorder %s17, 1
    %p113 = por %p111, %p112
    %p115 = scmp.ne.s32.totalorder %s98, %s114
    %p116 = scmp.eq.s32.totalorder %s17, 0
    %p117 = por %p115, %p116
    %s118 = ssub.s32 %s11, %s18
    %p119 = scmp.eq.s32.totalorder %s118, 0
    %s121 = sadd.s32 %s120, 1
    %s122 = scalar_select %p119, %s120, %s121
    %p125 = pneg %p119
    %p126 = scmp.eq.s32.totalorder %s11, 1
    %p127 = por %p125, %p126
    %p128 = scmp.ne.s32.totalorder %s120, %s123
    %p129 = scmp.eq.s32.totalorder %s11, 0
    %p130 = por %p128, %p129
    %p131 = scmp.ne.s32.totalorder %s120, %s123
    %p132 = scmp.eq.s32.totalorder %s16, 1
    %p133 = por %p131, %p132
    %p134 = scmp.ne.s32.totalorder %s123, %s124
    %p135 = scmp.eq.s32.totalorder %s16, 0
    %p136 = por %p134, %p135
    %p137 = scmp.ne.s32.totalorder %s123, %s124
    %p138 = scmp.eq.s32.totalorder %s17, 1
    %p139 = por %p137, %p138
    %p141 = scmp.ne.s32.totalorder %s124, %s140
    %p142 = scmp.eq.s32.totalorder %s17, 0
    %p143 = por %p141, %p142
    %p144 = scmp.le.s32.totalorder 1, %s11
    %p145 = scmp.lt.s32.totalorder %s11, 3
    %p146 = pnand %p144, %p145
    %p147 = pneg %p146
    // Predicated region
    $region9: #{_lambda_.2} parent=5 // pred_check
      _
    $region10: #{_lambda_.2} parent=5 // pred_check_branch
      %149 = sbr.rel (%p146) target = $region12
    $region11: #{_lambda_.2} parent=5 // pred_region
      %s150 = ssub.s32 %s11, 1
      // Predicated region
      $region13: #{_lambda_.2} parent=11 // pred_check
        %p151 = pneg %p58
      $region14: #{_lambda_.2} parent=11 // pred_check_branch
        %153 = sbr.rel (%p151) target = $region16
      $region15: #{_lambda_.2} parent=11 // pred_region
        _
      $region16: #{_lambda_.2} parent=11 // pred_fallthru
        _
    $region12: #{_lambda_.2} parent=5 // pred_fallthru
      _
    %p154 = scmp.lt.s32.totalorder %s11, 2
    // Predicated region
    $region17: #{_lambda_.2} parent=5 // pred_check
      %p155 = pneg %p154
    $region18: #{_lambda_.2} parent=5 // pred_check_branch
      %157 = sbr.rel (%p155) target = $region20
    $region19: #{_lambda_.2} parent=5 // pred_region
      // Predicated region
      $region21: #{_lambda_.2} parent=19 // pred_check
        %p158 = pneg %p31
      $region22: #{_lambda_.2} parent=19 // pred_check_branch
        %160 = sbr.rel (%p158) target = $region24
      $region23: #{_lambda_.2} parent=19 // pred_region
        %p161 = scmp.lt.s32.totalorder %s11, 1
        %s162 = scalar_select %p161, %s11, 1
        %s163 = smul.addr %s162, 54
        %s164 = smul.addr %s163, 4
        %s165 = scalar_lea.vmem %s0, %s164
      $region24: #{_lambda_.2} parent=19 // pred_fallthru
        _
    $region20: #{_lambda_.2} parent=5 // pred_fallthru
      _
    %p166 = scmp.le.s32.totalorder 1, %s11
    %p167 = scmp.lt.s32.totalorder %s11, 3
    %p168 = pnand %p166, %p167
    %p169 = pneg %p168
    // Predicated region
    $region25: #{_lambda_.2} parent=5 // pred_check
      _
    $region26: #{_lambda_.2} parent=5 // pred_check_branch
      %171 = sbr.rel (%p168) target = $region28
    $region27: #{_lambda_.2} parent=5 // pred_region
      %s172 = ssub.s32 %s11, 1
      %p173 = scmp.lt.s32.totalorder %s16, 1
      %s174 = scalar_select %p173, %s16, 1
      %s175 = smul.addr %s174, 54
      %s176 = smul.addr %s175, 4
      %s177 = scalar_lea.vmem %s0, %s176
      %p178 = pneg %p37
      %p179 = pneg %p34
      %p180 = pneg %p58
      %p181 = pneg %p55
      %p182 = pneg %p84
      %p183 = pneg %p81
      %p184 = scmp.lt.s32.totalorder %s16, 1
      %s185 = scalar_select %p184, %s16, 1
      %s186 = smul.addr %s185, 32
      %s187 = smul.addr %s186, 4
      %s188 = scalar_lea.vmem %s2, %s187
      %p189 = pneg %p110
      %p190 = pneg %p107
      %p191 = scmp.lt.s32.totalorder %s16, 1
      %s192 = scalar_select %p191, %s16, 1
      %s193 = scalar_lea.vmem %s3, %s192
      %p194 = pneg %p136
      %p195 = pneg %p133
      %p196 = scmp.lt.s32.totalorder %s16, 1
      %s197 = scalar_select %p196, %s16, 1
      %s198 = scalar_lea.vmem %s4, %s197
      %p199 = scmp.lt.s32.totalorder %s16, 1
      %s200 = scalar_select %p199, %s16, 1
      %s201 = smul.addr %s200, 54
      %s202 = smul.addr %s201, 4
      %s203 = scalar_lea.vmem %s0, %s202
      %p204 = scmp.lt.s32.totalorder %s16, 1
      %s205 = scalar_select %p204, %s16, 1
      %s206 = smul.addr %s205, 32
      %s207 = smul.addr %s206, 4
      %s208 = scalar_lea.vmem %s2, %s207
      %p209 = scmp.lt.s32.totalorder %s16, 1
      %s210 = scalar_select %p209, %s16, 1
      %s211 = scalar_lea.vmem %s3, %s210
      %p212 = scmp.lt.s32.totalorder %s16, 1
      %s213 = scalar_select %p212, %s16, 1
      %s214 = scalar_lea.vmem %s4, %s213
      %v216 = vld [vmem:[%s203] sm:$0xf]
      %v217 = vld [vmem:[%s203 + $0x4] sm:$0xf]
      %v218 = vld [vmem:[%s203 + $0xc] sm:$0xf]
      %v219 = vld [vmem:[%s203 + $0x10] sm:$0xf]
      %v220 = vld [vmem:[%s203 + $0x18] sm:$0xf]
      %v221 = vld [vmem:[%s203 + $0x1c] sm:$0xf]
      %v222 = vld [vmem:[%s203 + $0x24] sm:$0xf]
      %v223 = vld [vmem:[%s203 + $0x28] sm:$0xf]
      %v224 = vld [vmem:[%s203 + $0x30] sm:$0xf]
      %v225 = vld [vmem:[%s203 + $0x34] sm:$0xf]
      %v226 = vld [vmem:[%s203 + $0x3c] sm:$0xf]
      %v227 = vld [vmem:[%s203 + $0x40] sm:$0xf]
      %v228 = vld [vmem:[%s203 + $0x48] sm:$0xf]
      %v229 = vld [vmem:[%s203 + $0x4c] sm:$0xf]
      %v230 = vld [vmem:[%s203 + $0x54] sm:$0xf]
      %v231 = vld [vmem:[%s203 + $0x58] sm:$0xf]
      %v232 = vld [vmem:[%s1] sm:$0xf]
      %v233 = vld [vmem:[%s1 + $0x4] sm:$0xf]
      %v234 = vld [vmem:[%s1 + $0x8] sm:$0xf]
      %v235 = vld [vmem:[%s1 + $0xc] sm:$0xf]
      %v236 = vld [vmem:[%s203 + $0x8] sm:$0x1]
      %v237 = vld [vmem:[%s203 + $0x14] sm:$0x1]
      %v238 = vld [vmem:[%s203 + $0x20] sm:$0x1]
      %v239 = vld [vmem:[%s203 + $0x2c] sm:$0x1]
      %v240 = vld [vmem:[%s203 + $0x38] sm:$0x1]
      %v241 = vld [vmem:[%s203 + $0x44] sm:$0x1]
      %v242 = vld [vmem:[%s203 + $0x50] sm:$0x1]
      %v243 = vld [vmem:[%s203 + $0x5c] sm:$0x1]
      %vm244 = vsmask.f32 3328
      %vm245 = vsmask.f32 7440
      %vm246 = vmor %vm244, %vm245
      %v248 = vshrl.u32 %v216, 16
      %v250 = vrot.slane %v248, 4
      %v251 = vshll.u32 %v216, 16
      %v253 = vrot.slane %v251, 5
      %v254 = vor.u32 %v250, %v253
      %v255 = vrot.slane %v254, 4
      %v257 = vshll.u32 %v217, 16
      %v259 = vrot.slane %v257, 5
      %v260 = vsel %vm246, %v255, %v259
      %v261 = vshrl.u32 %v217, 16
      %v263 = vrot.slane %v261, 4
      %v264 = vor.u32 %v263, %v259
      %v265 = vrot.slane %v264, 4
      %v267 = vshll.u32 %v236, 16
      %v269 = vrot.slane %v267, 5
      %v270 = vsel %vm246, %v265, %v269
      %v272 = vshrl.u32 %v218, 16
      %v274 = vrot.slane %v272, 4
      %v275 = vshll.u32 %v218, 16
      %v277 = vrot.slane %v275, 5
      %v278 = vor.u32 %v274, %v277
      %v279 = vrot.slane %v278, 4
      %v281 = vshll.u32 %v219, 16
      %v283 = vrot.slane %v281, 5
      %v284 = vsel %vm246, %v279, %v283
      %v285 = vshrl.u32 %v219, 16
      %v287 = vrot.slane %v285, 4
      %v288 = vor.u32 %v287, %v283
      %v289 = vrot.slane %v288, 4
      %v291 = vshll.u32 %v237, 16
      %v293 = vrot.slane %v291, 5
      %v294 = vsel %vm246, %v289, %v293
      %v296 = vshrl.u32 %v220, 16
      %v298 = vrot.slane %v296, 4
      %v299 = vshll.u32 %v220, 16
      %v301 = vrot.slane %v299, 5
      %v302 = vor.u32 %v298, %v301
      %v303 = vrot.slane %v302, 4
      %v305 = vshll.u32 %v221, 16
      %v307 = vrot.slane %v305, 5
      %v308 = vsel %vm246, %v303, %v307
      %v309 = vshrl.u32 %v221, 16
      %v311 = vrot.slane %v309, 4
      %v312 = vor.u32 %v311, %v307
      %v313 = vrot.slane %v312, 4
      %v315 = vshll.u32 %v238, 16
      %v317 = vrot.slane %v315, 5
      %v318 = vsel %vm246, %v313, %v317
      %v320 = vshrl.u32 %v222, 16
      %v322 = vrot.slane %v320, 4
      %v323 = vshll.u32 %v222, 16
      %v325 = vrot.slane %v323, 5
      %v326 = vor.u32 %v322, %v325
      %v327 = vrot.slane %v326, 4
      %v329 = vshll.u32 %v223, 16
      %v331 = vrot.slane %v329, 5
      %v332 = vsel %vm246, %v327, %v331
      %v333 = vshrl.u32 %v223, 16
      %v335 = vrot.slane %v333, 4
      %v336 = vor.u32 %v335, %v331
      %v337 = vrot.slane %v336, 4
      %v339 = vshll.u32 %v239, 16
      %v341 = vrot.slane %v339, 5
      %v342 = vsel %vm246, %v337, %v341
      %v344 = vshrl.u32 %v224, 16
      %v346 = vrot.slane %v344, 4
      %v347 = vshll.u32 %v224, 16
      %v349 = vrot.slane %v347, 5
      %v350 = vor.u32 %v346, %v349
      %v351 = vrot.slane %v350, 4
      %v353 = vshll.u32 %v225, 16
      %v355 = vrot.slane %v353, 5
      %v356 = vsel %vm246, %v351, %v355
      %v357 = vshrl.u32 %v225, 16
      %v359 = vrot.slane %v357, 4
      %v360 = vor.u32 %v359, %v355
      %v361 = vrot.slane %v360, 4
      %v363 = vshll.u32 %v240, 16
      %v365 = vrot.slane %v363, 5
      %v366 = vsel %vm246, %v361, %v365
      %v368 = vshrl.u32 %v226, 16
      %v370 = vrot.slane %v368, 4
      %v371 = vshll.u32 %v226, 16
      %v373 = vrot.slane %v371, 5
      %v374 = vor.u32 %v370, %v373
      %v375 = vrot.slane %v374, 4
      %v377 = vshll.u32 %v227, 16
      %v379 = vrot.slane %v377, 5
      %v380 = vsel %vm246, %v375, %v379
      %v381 = vshrl.u32 %v227, 16
      %v383 = vrot.slane %v381, 4
      %v384 = vor.u32 %v383, %v379
      %v385 = vrot.slane %v384, 4
      %v387 = vshll.u32 %v241, 16
      %v389 = vrot.slane %v387, 5
      %v390 = vsel %vm246, %v385, %v389
      %v392 = vshrl.u32 %v228, 16
      %v394 = vrot.slane %v392, 4
      %v395 = vshll.u32 %v228, 16
      %v397 = vrot.slane %v395, 5
      %v398 = vor.u32 %v394, %v397
      %v399 = vrot.slane %v398, 4
      %v401 = vshll.u32 %v229, 16
      %v403 = vrot.slane %v401, 5
      %v404 = vsel %vm246, %v399, %v403
      %v405 = vshrl.u32 %v229, 16
      %v407 = vrot.slane %v405, 4
      %v408 = vor.u32 %v407, %v403
      %v409 = vrot.slane %v408, 4
      %v411 = vshll.u32 %v242, 16
      %v413 = vrot.slane %v411, 5
      %v414 = vsel %vm246, %v409, %v413
      %v416 = vshrl.u32 %v230, 16
      %v418 = vrot.slane %v416, 4
      %v419 = vshll.u32 %v230, 16
      %v421 = vrot.slane %v419, 5
      %v422 = vor.u32 %v418, %v421
      %v423 = vrot.slane %v422, 4
      %v425 = vshll.u32 %v231, 16
      %v427 = vrot.slane %v425, 5
      %v428 = vsel %vm246, %v423, %v427
      %v429 = vshrl.u32 %v231, 16
      %v431 = vrot.slane %v429, 4
      %v432 = vor.u32 %v431, %v427
      %v433 = vrot.slane %v432, 4
      %v435 = vshll.u32 %v243, 16
      %v437 = vrot.slane %v435, 5
      %v438 = vsel %vm246, %v433, %v437
      %s439 = scalar_lea.vmem %s1, 16
      %v440 = vld [vmem:[%s439] sm:$0xf]
      %v441 = vld [vmem:[%s439 + $0x4] sm:$0xf]
      %v442 = vld [vmem:[%s439 + $0x8] sm:$0xf]
      %v443 = vld [vmem:[%s439 + $0xc] sm:$0xf]
      %v444 = vunpack.c.l.b16 %v260
      %v445 = vunpack.c.l.b16 %v270
      %v446 = vunpack.c.l.b16 %v284
      %v447 = vunpack.c.l.b16 %v294
      %v448 = vunpack.c.l.b16 %v308
      %v449 = vunpack.c.l.b16 %v318
      %v450 = vunpack.c.l.b16 %v332
      %v451 = vunpack.c.l.b16 %v342
      %v452 = vunpack.c.l.b16 %v356
      %v453 = vunpack.c.l.b16 %v366
      %v454 = vunpack.c.l.b16 %v380
      %v455 = vunpack.c.l.b16 %v390
      %v456 = vunpack.c.l.b16 %v404
      %v457 = vunpack.c.l.b16 %v414
      %v458 = vunpack.c.l.b16 %v428
      %v459 = vunpack.c.l.b16 %v438
      %v460 = vpack.c.b16 %v445, %v444
      %v461 = vpack.c.b16 %v447, %v446
      %v462 = vpack.c.b16 %v449, %v448
      %v463 = vpack.c.b16 %v451, %v450
      %v464 = vpack.c.b16 %v453, %v452
      %v465 = vpack.c.b16 %v455, %v454
      %v466 = vpack.c.b16 %v457, %v456
      %v467 = vpack.c.b16 %v459, %v458
      %v472 = vunpack.c.l.b16 %v440
      %v473 = vunpack.c.l.b16 %v441
      %v474 = vunpack.c.l.b16 %v442
      %v475 = vunpack.c.l.b16 %v443
      %v476 = vpack.c.b16 %v473, %v472
      %v477 = vpack.c.b16 %v475, %v474
      %vm480 = vcmask 261120
      %v482 = vsel %vm480, %v460, 0
      %v485 = vsel %vm480, %v461, 0
      %v488 = vsel %vm480, %v462, 0
      %v491 = vsel %vm480, %v463, 0
      %v494 = vsel %vm480, %v464, 0
      %v497 = vsel %vm480, %v465, 0
      %v500 = vsel %vm480, %v466, 0
      %v503 = vsel %vm480, %v467, 0
      %505 = vmatprep.subr.bf16.mxu0 0
      %506 = vmatpush1.bf16.msra.mxu0 0
      %507 = vmatprep.subr.bf16.mxu0 0
      %508 = vmatpush1.bf16.msra.mxu0 0
      %509 = vmatprep.subr.bf16.mxu0 0
      %510 = vmatpush1.bf16.msra.mxu0 0
      %511 = vmatprep.subr.bf16.mxu0 0
      %512 = vmatpush1.bf16.msra.mxu0 0
      %513 = vmatprep.subr.bf16.mxu0 0
      %514 = vmatpush1.bf16.msra.mxu0 0
      %515 = vmatprep.subr.bf16.mxu0 0
      %516 = vmatpush1.bf16.msra.mxu0 0
      %517 = vmatprep.subr.bf16.mxu0 0
      %518 = vmatpush1.bf16.msra.mxu0 %v477
      %519 = vmatprep.subr.bf16.mxu0 0
      %520 = vmatpush1.bf16.msra.mxu0 %v476
      %521 = vmatprep.subr.bf16.mxu0 0
      %522 = vmatpush2.bf16.msra.mxu0 0
      %523 = vmatprep.subr.bf16.mxu0 0
      %524 = vmatpush2.bf16.msra.mxu0 0
      %525 = vmatprep.subr.bf16.mxu0 0
      %526 = vmatpush2.bf16.msra.mxu0 0
      %527 = vmatprep.subr.bf16.mxu0 0
      %528 = vmatpush2.bf16.msra.mxu0 0
      %529 = vmatprep.subr.bf16.mxu0 0
      %530 = vmatpush2.bf16.msra.mxu0 0
      %531 = vmatprep.subr.bf16.mxu0 0
      %532 = vmatpush2.bf16.msra.mxu0 0
      %533 = vmatprep.subr.bf16.mxu0 0
      %534 = vmatpush2.bf16.msra.mxu0 0
      %535 = vmatprep.subr.bf16.mxu0 0
      %536 = vmatpush2.bf16.msra.mxu0 0
      %537 = vmatprep.mubr.bf16.mxu0 0
      %538 = vmatmul.mubr.bf16.gmra.mxu0 %v482
      %v539 = vpop.f32.mrf.mxu0
      %v540 = vadd.f32 0.0, %v539
      %v541 = vpop.f32.mrf.mxu0
      %v542 = vpop.f32.mrf.mxu0
      %v543 = vadd.f32 0.0, %v542
      %v544 = vpop.f32.mrf.mxu0
      %545 = vmatprep.mubr.bf16.mxu0 0
      %546 = vmatmul.mubr.bf16.gmra.mxu0 %v485
      %v547 = vpop.f32.mrf.mxu0
      %v548 = vadd.f32 0.0, %v547
      %v549 = vpop.f32.mrf.mxu0
      %v550 = vpop.f32.mrf.mxu0
      %v551 = vadd.f32 0.0, %v550
      %v552 = vpop.f32.mrf.mxu0
      %553 = vmatprep.mubr.bf16.mxu0 0
      %554 = vmatmul.mubr.bf16.gmra.mxu0 %v488
      %v555 = vpop.f32.mrf.mxu0
      %v556 = vadd.f32 0.0, %v555
      %v557 = vpop.f32.mrf.mxu0
      %v558 = vpop.f32.mrf.mxu0
      %v559 = vadd.f32 0.0, %v558
      %v560 = vpop.f32.mrf.mxu0
      %561 = vmatprep.mubr.bf16.mxu0 0
      %562 = vmatmul.mubr.bf16.gmra.mxu0 %v491
      %v563 = vpop.f32.mrf.mxu0
      %v564 = vadd.f32 0.0, %v563
      %v565 = vpop.f32.mrf.mxu0
      %v566 = vpop.f32.mrf.mxu0
      %v567 = vadd.f32 0.0, %v566
      %v568 = vpop.f32.mrf.mxu0
      %569 = vmatprep.mubr.bf16.mxu0 0
      %570 = vmatmul.mubr.bf16.gmra.mxu0 %v494
      %v571 = vpop.f32.mrf.mxu0
      %v572 = vadd.f32 0.0, %v571
      %v573 = vpop.f32.mrf.mxu0
      %v574 = vpop.f32.mrf.mxu0
      %v575 = vadd.f32 0.0, %v574
      %v576 = vpop.f32.mrf.mxu0
      %577 = vmatprep.mubr.bf16.mxu0 0
      %578 = vmatmul.mubr.bf16.gmra.mxu0 %v497
      %v579 = vpop.f32.mrf.mxu0
      %v580 = vadd.f32 0.0, %v579
      %v581 = vpop.f32.mrf.mxu0
      %v582 = vpop.f32.mrf.mxu0
      %v583 = vadd.f32 0.0, %v582
      %v584 = vpop.f32.mrf.mxu0
      %585 = vmatprep.mubr.bf16.mxu0 0
      %586 = vmatmul.mubr.bf16.gmra.mxu0 %v500
      %v587 = vpop.f32.mrf.mxu0
      %v588 = vadd.f32 0.0, %v587
      %v589 = vpop.f32.mrf.mxu0
      %v590 = vpop.f32.mrf.mxu0
      %v591 = vadd.f32 0.0, %v590
      %v592 = vpop.f32.mrf.mxu0
      %593 = vmatprep.mubr.bf16.mxu0 0
      %594 = vmatmul.mubr.bf16.gmra.mxu0 %v503
      %v595 = vpop.f32.mrf.mxu0
      %v596 = vadd.f32 0.0, %v595
      %v597 = vpop.f32.mrf.mxu0
      %v598 = vpop.f32.mrf.mxu0
      %v599 = vadd.f32 0.0, %v598
      %v600 = vpop.f32.mrf.mxu0
      %601 = vdwg.mxu0
      %v618 = vunpack.c.l.b16 %v216
      %v619 = vunpack.c.l.b16 %v217
      %v620 = vunpack.c.l.b16 %v218
      %v621 = vunpack.c.l.b16 %v219
      %v622 = vunpack.c.l.b16 %v220
      %v623 = vunpack.c.l.b16 %v221
      %v624 = vunpack.c.l.b16 %v222
      %v625 = vunpack.c.l.b16 %v223
      %v626 = vunpack.c.l.b16 %v224
      %v627 = vunpack.c.l.b16 %v225
      %v628 = vunpack.c.l.b16 %v226
      %v629 = vunpack.c.l.b16 %v227
      %v630 = vunpack.c.l.b16 %v228
      %v631 = vunpack.c.l.b16 %v229
      %v632 = vunpack.c.l.b16 %v230
      %v633 = vunpack.c.l.b16 %v231
      %v634 = vpack.c.b16 %v619, %v618
      %v635 = vpack.c.b16 %v621, %v620
      %v636 = vpack.c.b16 %v623, %v622
      %v637 = vpack.c.b16 %v625, %v624
      %v638 = vpack.c.b16 %v627, %v626
      %v639 = vpack.c.b16 %v629, %v628
      %v640 = vpack.c.b16 %v631, %v630
      %v641 = vpack.c.b16 %v633, %v632
      %v646 = vunpack.c.l.b16 %v232
      %v647 = vunpack.c.l.b16 %v233
      %v648 = vunpack.c.l.b16 %v234
      %v649 = vunpack.c.l.b16 %v235
      %v650 = vpack.c.b16 %v647, %v646
      %v651 = vpack.c.b16 %v649, %v648
      %v655 = vsel %vm480, %v634, 0
      %v658 = vsel %vm480, %v635, 0
      %v661 = vsel %vm480, %v636, 0
      %v664 = vsel %vm480, %v637, 0
      %v667 = vsel %vm480, %v638, 0
      %v670 = vsel %vm480, %v639, 0
      %v673 = vsel %vm480, %v640, 0
      %v676 = vsel %vm480, %v641, 0
      %678 = vmatprep.subr.bf16.mxu0 0
      %679 = vmatpush1.bf16.msra.mxu0 0
      %680 = vmatprep.subr.bf16.mxu0 0
      %681 = vmatpush1.bf16.msra.mxu0 0
      %682 = vmatprep.subr.bf16.mxu0 0
      %683 = vmatpush1.bf16.msra.mxu0 0
      %684 = vmatprep.subr.bf16.mxu0 0
      %685 = vmatpush1.bf16.msra.mxu0 0
      %686 = vmatprep.subr.bf16.mxu0 0
      %687 = vmatpush1.bf16.msra.mxu0 0
      %688 = vmatprep.subr.bf16.mxu0 0
      %689 = vmatpush1.bf16.msra.mxu0 0
      %690 = vmatprep.subr.bf16.mxu0 0
      %691 = vmatpush1.bf16.msra.mxu0 %v651
      %692 = vmatprep.subr.bf16.mxu0 0
      %693 = vmatpush1.bf16.msra.mxu0 %v650
      %694 = vmatprep.subr.bf16.mxu0 0
      %695 = vmatpush2.bf16.msra.mxu0 0
      %696 = vmatprep.subr.bf16.mxu0 0
      %697 = vmatpush2.bf16.msra.mxu0 0
      %698 = vmatprep.subr.bf16.mxu0 0
      %699 = vmatpush2.bf16.msra.mxu0 0
      %700 = vmatprep.subr.bf16.mxu0 0
      %701 = vmatpush2.bf16.msra.mxu0 0
      %702 = vmatprep.subr.bf16.mxu0 0
      %703 = vmatpush2.bf16.msra.mxu0 0
      %704 = vmatprep.subr.bf16.mxu0 0
      %705 = vmatpush2.bf16.msra.mxu0 0
      %706 = vmatprep.subr.bf16.mxu0 0
      %707 = vmatpush2.bf16.msra.mxu0 0
      %708 = vmatprep.subr.bf16.mxu0 0
      %709 = vmatpush2.bf16.msra.mxu0 0
      %710 = vmatprep.mubr.bf16.mxu0 0
      %711 = vmatmul.mubr.bf16.gmra.mxu0 %v655
      %v712 = vpop.f32.mrf.mxu0
      %v713 = vadd.f32 %v540, %v712
      %v714 = vpop.f32.mrf.mxu0
      %v715 = vpop.f32.mrf.mxu0
      %v716 = vadd.f32 %v543, %v715
      %v717 = vpop.f32.mrf.mxu0
      %718 = vmatprep.mubr.bf16.mxu0 0
      %719 = vmatmul.mubr.bf16.gmra.mxu0 %v658
      %v720 = vpop.f32.mrf.mxu0
      %v721 = vadd.f32 %v548, %v720
      %v722 = vpop.f32.mrf.mxu0
      %v723 = vpop.f32.mrf.mxu0
      %v724 = vadd.f32 %v551, %v723
      %v725 = vpop.f32.mrf.mxu0
      %726 = vmatprep.mubr.bf16.mxu0 0
      %727 = vmatmul.mubr.bf16.gmra.mxu0 %v661
      %v728 = vpop.f32.mrf.mxu0
      %v729 = vadd.f32 %v556, %v728
      %v730 = vpop.f32.mrf.mxu0
      %v731 = vpop.f32.mrf.mxu0
      %v732 = vadd.f32 %v559, %v731
      %v733 = vpop.f32.mrf.mxu0
      %734 = vmatprep.mubr.bf16.mxu0 0
      %735 = vmatmul.mubr.bf16.gmra.mxu0 %v664
      %v736 = vpop.f32.mrf.mxu0
      %v737 = vadd.f32 %v564, %v736
      %v738 = vpop.f32.mrf.mxu0
      %v739 = vpop.f32.mrf.mxu0
      %v740 = vadd.f32 %v567, %v739
      %v741 = vpop.f32.mrf.mxu0
      %742 = vmatprep.mubr.bf16.mxu0 0
      %743 = vmatmul.mubr.bf16.gmra.mxu0 %v667
      %v744 = vpop.f32.mrf.mxu0
      %v745 = vadd.f32 %v572, %v744
      %v746 = vpop.f32.mrf.mxu0
      %v747 = vpop.f32.mrf.mxu0
      %v748 = vadd.f32 %v575, %v747
      %v749 = vpop.f32.mrf.mxu0
      %750 = vmatprep.mubr.bf16.mxu0 0
      %751 = vmatmul.mubr.bf16.gmra.mxu0 %v670
      %v752 = vpop.f32.mrf.mxu0
      %v753 = vadd.f32 %v580, %v752
      %v754 = vpop.f32.mrf.mxu0
      %v755 = vpop.f32.mrf.mxu0
      %v756 = vadd.f32 %v583, %v755
      %v757 = vpop.f32.mrf.mxu0
      %758 = vmatprep.mubr.bf16.mxu0 0
      %759 = vmatmul.mubr.bf16.gmra.mxu0 %v673
      %v760 = vpop.f32.mrf.mxu0
      %v761 = vadd.f32 %v588, %v760
      %v762 = vpop.f32.mrf.mxu0
      %v763 = vpop.f32.mrf.mxu0
      %v764 = vadd.f32 %v591, %v763
      %v765 = vpop.f32.mrf.mxu0
      %766 = vmatprep.mubr.bf16.mxu0 0
      %767 = vmatmul.mubr.bf16.gmra.mxu0 %v676
      %v768 = vpop.f32.mrf.mxu0
      %v769 = vadd.f32 %v596, %v768
      %v770 = vpop.f32.mrf.mxu0
      %v771 = vpop.f32.mrf.mxu0
      %v772 = vadd.f32 %v599, %v771
      %v773 = vpop.f32.mrf.mxu0
      %774 = vdwg.mxu0
      %v775 = vld [vmem:[%s203] sm:$0xe]
      %v776 = vld [vmem:[%s203 + $0xc] sm:$0xe]
      %v777 = vld [vmem:[%s203 + $0x18] sm:$0xe]
      %v778 = vld [vmem:[%s203 + $0x24] sm:$0xe]
      %v779 = vld [vmem:[%s203 + $0x30] sm:$0xe]
      %v780 = vld [vmem:[%s203 + $0x3c] sm:$0xe]
      %v781 = vld [vmem:[%s203 + $0x48] sm:$0xe]
      %v782 = vld [vmem:[%s203 + $0x54] sm:$0xe]
      %vm799 = vcmask 1042432
      %vm800 = vcmask 1046532
      %vm801 = vmor %vm799, %vm800
      %v802 = vrot.slane %v775, 5
      %v803 = vrot.slane %v802, 4
      %v804 = vrot.slane %v217, 5
      %v805 = vsel %vm801, %v803, %v804
      %v806 = vrot.slane %v804, 4
      %v807 = vrot.slane %v236, 5
      %v808 = vsel %vm801, %v806, %v807
      %v809 = vrot.slane %v776, 5
      %v810 = vrot.slane %v809, 4
      %v811 = vrot.slane %v219, 5
      %v812 = vsel %vm801, %v810, %v811
      %v813 = vrot.slane %v811, 4
      %v814 = vrot.slane %v237, 5
      %v815 = vsel %vm801, %v813, %v814
      %v816 = vrot.slane %v777, 5
      %v817 = vrot.slane %v816, 4
      %v818 = vrot.slane %v221, 5
      %v819 = vsel %vm801, %v817, %v818
      %v820 = vrot.slane %v818, 4
      %v821 = vrot.slane %v238, 5
      %v822 = vsel %vm801, %v820, %v821
      %v823 = vrot.slane %v778, 5
      %v824 = vrot.slane %v823, 4
      %v825 = vrot.slane %v223, 5
      %v826 = vsel %vm801, %v824, %v825
      %v827 = vrot.slane %v825, 4
      %v828 = vrot.slane %v239, 5
      %v829 = vsel %vm801, %v827, %v828
      %v830 = vrot.slane %v779, 5
      %v831 = vrot.slane %v830, 4
      %v832 = vrot.slane %v225, 5
      %v833 = vsel %vm801, %v831, %v832
      %v834 = vrot.slane %v832, 4
      %v835 = vrot.slane %v240, 5
      %v836 = vsel %vm801, %v834, %v835
      %v837 = vrot.slane %v780, 5
      %v838 = vrot.slane %v837, 4
      %v839 = vrot.slane %v227, 5
      %v840 = vsel %vm801, %v838, %v839
      %v841 = vrot.slane %v839, 4
      %v842 = vrot.slane %v241, 5
      %v843 = vsel %vm801, %v841, %v842
      %v844 = vrot.slane %v781, 5
      %v845 = vrot.slane %v844, 4
      %v846 = vrot.slane %v229, 5
      %v847 = vsel %vm801, %v845, %v846
      %v848 = vrot.slane %v846, 4
      %v849 = vrot.slane %v242, 5
      %v850 = vsel %vm801, %v848, %v849
      %v851 = vrot.slane %v782, 5
      %v852 = vrot.slane %v851, 4
      %v853 = vrot.slane %v231, 5
      %v854 = vsel %vm801, %v852, %v853
      %v855 = vrot.slane %v853, 4
      %v856 = vrot.slane %v243, 5
      %v857 = vsel %vm801, %v855, %v856
      %s858 = scalar_lea.vmem %s1, 32
      %v859 = vld [vmem:[%s858] sm:$0xf]
      %v860 = vld [vmem:[%s858 + $0x4] sm:$0xf]
      %v861 = vld [vmem:[%s858 + $0x8] sm:$0xf]
      %v862 = vld [vmem:[%s858 + $0xc] sm:$0xf]
      %v863 = vunpack.c.l.b16 %v805
      %v864 = vunpack.c.l.b16 %v808
      %v865 = vunpack.c.l.b16 %v812
      %v866 = vunpack.c.l.b16 %v815
      %v867 = vunpack.c.l.b16 %v819
      %v868 = vunpack.c.l.b16 %v822
      %v869 = vunpack.c.l.b16 %v826
      %v870 = vunpack.c.l.b16 %v829
      %v871 = vunpack.c.l.b16 %v833
      %v872 = vunpack.c.l.b16 %v836
      %v873 = vunpack.c.l.b16 %v840
      %v874 = vunpack.c.l.b16 %v843
      %v875 = vunpack.c.l.b16 %v847
      %v876 = vunpack.c.l.b16 %v850
      %v877 = vunpack.c.l.b16 %v854
      %v878 = vunpack.c.l.b16 %v857
      %v879 = vpack.c.b16 %v864, %v863
      %v880 = vpack.c.b16 %v866, %v865
      %v881 = vpack.c.b16 %v868, %v867
      %v882 = vpack.c.b16 %v870, %v869
      %v883 = vpack.c.b16 %v872, %v871
      %v884 = vpack.c.b16 %v874, %v873
      %v885 = vpack.c.b16 %v876, %v875
      %v886 = vpack.c.b16 %v878, %v877
      %v891 = vunpack.c.l.b16 %v859
      %v892 = vunpack.c.l.b16 %v860
      %v893 = vunpack.c.l.b16 %v861
      %v894 = vunpack.c.l.b16 %v862
      %v895 = vpack.c.b16 %v892, %v891
      %v896 = vpack.c.b16 %v894, %v893
      %v900 = vsel %vm480, %v879, 0
      %v903 = vsel %vm480, %v880, 0
      %v906 = vsel %vm480, %v881, 0
      %v909 = vsel %vm480, %v882, 0
      %v912 = vsel %vm480, %v883, 0
      %v915 = vsel %vm480, %v884, 0
      %v918 = vsel %vm480, %v885, 0
      %v921 = vsel %vm480, %v886, 0
      %923 = vmatprep.subr.bf16.mxu0 0
      %924 = vmatpush1.bf16.msra.mxu0 0
      %925 = vmatprep.subr.bf16.mxu0 0
      %926 = vmatpush1.bf16.msra.mxu0 0
      %927 = vmatprep.subr.bf16.mxu0 0
      %928 = vmatpush1.bf16.msra.mxu0 0
      %929 = vmatprep.subr.bf16.mxu0 0
      %930 = vmatpush1.bf16.msra.mxu0 0
      %931 = vmatprep.subr.bf16.mxu0 0
      %932 = vmatpush1.bf16.msra.mxu0 0
      %933 = vmatprep.subr.bf16.mxu0 0
      %934 = vmatpush1.bf16.msra.mxu0 0
      %935 = vmatprep.subr.bf16.mxu0 0
      %936 = vmatpush1.bf16.msra.mxu0 %v896
      %937 = vmatprep.subr.bf16.mxu0 0
      %938 = vmatpush1.bf16.msra.mxu0 %v895
      %939 = vmatprep.subr.bf16.mxu0 0
      %940 = vmatpush2.bf16.msra.mxu0 0
      %941 = vmatprep.subr.bf16.mxu0 0
      %942 = vmatpush2.bf16.msra.mxu0 0
      %943 = vmatprep.subr.bf16.mxu0 0
      %944 = vmatpush2.bf16.msra.mxu0 0
      %945 = vmatprep.subr.bf16.mxu0 0
      %946 = vmatpush2.bf16.msra.mxu0 0
      %947 = vmatprep.subr.bf16.mxu0 0
      %948 = vmatpush2.bf16.msra.mxu0 0
      %949 = vmatprep.subr.bf16.mxu0 0
      %950 = vmatpush2.bf16.msra.mxu0 0
      %951 = vmatprep.subr.bf16.mxu0 0
      %952 = vmatpush2.bf16.msra.mxu0 0
      %953 = vmatprep.subr.bf16.mxu0 0
      %954 = vmatpush2.bf16.msra.mxu0 0
      %955 = vmatprep.mubr.bf16.mxu0 0
      %956 = vmatmul.mubr.bf16.gmra.mxu0 %v900
      %v957 = vpop.f32.mrf.mxu0
      %v958 = vadd.f32 0.0, %v957
      %v959 = vpop.f32.mrf.mxu0
      %v960 = vpop.f32.mrf.mxu0
      %v961 = vadd.f32 0.0, %v960
      %v962 = vpop.f32.mrf.mxu0
      %963 = vmatprep.mubr.bf16.mxu0 0
      %964 = vmatmul.mubr.bf16.gmra.mxu0 %v903
      %v965 = vpop.f32.mrf.mxu0
      %v966 = vadd.f32 0.0, %v965
      %v967 = vpop.f32.mrf.mxu0
      %v968 = vpop.f32.mrf.mxu0
      %v969 = vadd.f32 0.0, %v968
      %v970 = vpop.f32.mrf.mxu0
      %971 = vmatprep.mubr.bf16.mxu0 0
      %972 = vmatmul.mubr.bf16.gmra.mxu0 %v906
      %v973 = vpop.f32.mrf.mxu0
      %v974 = vadd.f32 0.0, %v973
      %v975 = vpop.f32.mrf.mxu0
      %v976 = vpop.f32.mrf.mxu0
      %v977 = vadd.f32 0.0, %v976
      %v978 = vpop.f32.mrf.mxu0
      %979 = vmatprep.mubr.bf16.mxu0 0
      %980 = vmatmul.mubr.bf16.gmra.mxu0 %v909
      %v981 = vpop.f32.mrf.mxu0
      %v982 = vadd.f32 0.0, %v981
      %v983 = vpop.f32.mrf.mxu0
      %v984 = vpop.f32.mrf.mxu0
      %v985 = vadd.f32 0.0, %v984
      %v986 = vpop.f32.mrf.mxu0
      %987 = vmatprep.mubr.bf16.mxu0 0
      %988 = vmatmul.mubr.bf16.gmra.mxu0 %v912
      %v989 = vpop.f32.mrf.mxu0
      %v990 = vadd.f32 0.0, %v989
      %v991 = vpop.f32.mrf.mxu0
      %v992 = vpop.f32.mrf.mxu0
      %v993 = vadd.f32 0.0, %v992
      %v994 = vpop.f32.mrf.mxu0
      %995 = vmatprep.mubr.bf16.mxu0 0
      %996 = vmatmul.mubr.bf16.gmra.mxu0 %v915
      %v997 = vpop.f32.mrf.mxu0
      %v998 = vadd.f32 0.0, %v997
      %v999 = vpop.f32.mrf.mxu0
      %v1000 = vpop.f32.mrf.mxu0
      %v1001 = vadd.f32 0.0, %v1000
      %v1002 = vpop.f32.mrf.mxu0
      %1003 = vmatprep.mubr.bf16.mxu0 0
      %1004 = vmatmul.mubr.bf16.gmra.mxu0 %v918
      %v1005 = vpop.f32.mrf.mxu0
      %v1006 = vadd.f32 0.0, %v1005
      %v1007 = vpop.f32.mrf.mxu0
      %v1008 = vpop.f32.mrf.mxu0
      %v1009 = vadd.f32 0.0, %v1008
      %v1010 = vpop.f32.mrf.mxu0
      %1011 = vmatprep.mubr.bf16.mxu0 0
      %1012 = vmatmul.mubr.bf16.gmra.mxu0 %v921
      %v1013 = vpop.f32.mrf.mxu0
      %v1014 = vadd.f32 0.0, %v1013
      %v1015 = vpop.f32.mrf.mxu0
      %v1016 = vpop.f32.mrf.mxu0
      %v1017 = vadd.f32 0.0, %v1016
      %v1018 = vpop.f32.mrf.mxu0
      %1019 = vdwg.mxu0
      %v1020 = vadd.f32 %v713, %v958
      %v1021 = vadd.f32 %v716, %v961
      %v1022 = vadd.f32 %v721, %v966
      %v1023 = vadd.f32 %v724, %v969
      %v1024 = vadd.f32 %v729, %v974
      %v1025 = vadd.f32 %v732, %v977
      %v1026 = vadd.f32 %v737, %v982
      %v1027 = vadd.f32 %v740, %v985
      %v1028 = vadd.f32 %v745, %v990
      %v1029 = vadd.f32 %v748, %v993
      %v1030 = vadd.f32 %v753, %v998
      %v1031 = vadd.f32 %v756, %v1001
      %v1032 = vadd.f32 %v761, %v1006
      %v1033 = vadd.f32 %v764, %v1009
      %v1034 = vadd.f32 %v769, %v1014
      %v1035 = vadd.f32 %v772, %v1017
      %s1036 = scalar_lea.vmem %s203, 12
      %v1037 = vld [vmem:[%s1036] sm:$0xf]
      %v1038 = vld [vmem:[%s1036 + $0x4] sm:$0xf]
      %v1039 = vld [vmem:[%s1036 + $0xc] sm:$0xf]
      %v1040 = vld [vmem:[%s1036 + $0x10] sm:$0xf]
      %v1041 = vld [vmem:[%s1036 + $0x18] sm:$0xf]
      %v1042 = vld [vmem:[%s1036 + $0x1c] sm:$0xf]
      %v1043 = vld [vmem:[%s1036 + $0x24] sm:$0xf]
      %v1044 = vld [vmem:[%s1036 + $0x28] sm:$0xf]
      %v1045 = vld [vmem:[%s1036 + $0x30] sm:$0xf]
      %v1046 = vld [vmem:[%s1036 + $0x34] sm:$0xf]
      %v1047 = vld [vmem:[%s1036 + $0x3c] sm:$0xf]
      %v1048 = vld [vmem:[%s1036 + $0x40] sm:$0xf]
      %v1049 = vld [vmem:[%s1036 + $0x48] sm:$0xf]
      %v1050 = vld [vmem:[%s1036 + $0x4c] sm:$0xf]
      %v1051 = vld [vmem:[%s1036 + $0x54] sm:$0xf]
      %v1052 = vld [vmem:[%s1036 + $0x58] sm:$0xf]
      %s1053 = scalar_lea.vmem %s1, 48
      %v1054 = vld [vmem:[%s1053] sm:$0xf]
      %v1055 = vld [vmem:[%s1053 + $0x4] sm:$0xf]
      %v1056 = vld [vmem:[%s1053 + $0x8] sm:$0xf]
      %v1057 = vld [vmem:[%s1053 + $0xc] sm:$0xf]
      %v1074 = vunpack.c.l.b16 %v1037
      %v1075 = vunpack.c.l.b16 %v1038
      %v1076 = vunpack.c.l.b16 %v1039
      %v1077 = vunpack.c.l.b16 %v1040
      %v1078 = vunpack.c.l.b16 %v1041
      %v1079 = vunpack.c.l.b16 %v1042
      %v1080 = vunpack.c.l.b16 %v1043
      %v1081 = vunpack.c.l.b16 %v1044
      %v1082 = vunpack.c.l.b16 %v1045
      %v1083 = vunpack.c.l.b16 %v1046
      %v1084 = vunpack.c.l.b16 %v1047
      %v1085 = vunpack.c.l.b16 %v1048
      %v1086 = vunpack.c.l.b16 %v1049
      %v1087 = vunpack.c.l.b16 %v1050
      %v1088 = vunpack.c.l.b16 %v1051
      %v1089 = vunpack.c.l.b16 %v1052
      %v1090 = vpack.c.b16 %v1075, %v1074
      %v1091 = vpack.c.b16 %v1077, %v1076
      %v1092 = vpack.c.b16 %v1079, %v1078
      %v1093 = vpack.c.b16 %v1081, %v1080
      %v1094 = vpack.c.b16 %v1083, %v1082
      %v1095 = vpack.c.b16 %v1085, %v1084
      %v1096 = vpack.c.b16 %v1087, %v1086
      %v1097 = vpack.c.b16 %v1089, %v1088
      %v1102 = vunpack.c.l.b16 %v1054
      %v1103 = vunpack.c.l.b16 %v1055
      %v1104 = vunpack.c.l.b16 %v1056
      %v1105 = vunpack.c.l.b16 %v1057
      %v1106 = vpack.c.b16 %v1103, %v1102
      %v1107 = vpack.c.b16 %v1105, %v1104
      %v1111 = vsel %vm480, %v1090, 0
      %v1114 = vsel %vm480, %v1091, 0
      %v1117 = vsel %vm480, %v1092, 0
      %v1120 = vsel %vm480, %v1093, 0
      %v1123 = vsel %vm480, %v1094, 0
      %v1126 = vsel %vm480, %v1095, 0
      %v1129 = vsel %vm480, %v1096, 0
      %v1132 = vsel %vm480, %v1097, 0
      %1134 = vmatprep.subr.bf16.mxu0 0
      %1135 = vmatpush1.bf16.msra.mxu0 0
      %1136 = vmatprep.subr.bf16.mxu0 0
      %1137 = vmatpush1.bf16.msra.mxu0 0
      %1138 = vmatprep.subr.bf16.mxu0 0
      %1139 = vmatpush1.bf16.msra.mxu0 0
      %1140 = vmatprep.subr.bf16.mxu0 0
      %1141 = vmatpush1.bf16.msra.mxu0 0
      %1142 = vmatprep.subr.bf16.mxu0 0
      %1143 = vmatpush1.bf16.msra.mxu0 0
      %1144 = vmatprep.subr.bf16.mxu0 0
      %1145 = vmatpush1.bf16.msra.mxu0 0
      %1146 = vmatprep.subr.bf16.mxu0 0
      %1147 = vmatpush1.bf16.msra.mxu0 %v1107
      %1148 = vmatprep.subr.bf16.mxu0 0
      %1149 = vmatpush1.bf16.msra.mxu0 %v1106
      %1150 = vmatprep.subr.bf16.mxu0 0
      %1151 = vmatpush2.bf16.msra.mxu0 0
      %1152 = vmatprep.subr.bf16.mxu0 0
      %1153 = vmatpush2.bf16.msra.mxu0 0
      %1154 = vmatprep.subr.bf16.mxu0 0
      %1155 = vmatpush2.bf16.msra.mxu0 0
      %1156 = vmatprep.subr.bf16.mxu0 0
      %1157 = vmatpush2.bf16.msra.mxu0 0
      %1158 = vmatprep.subr.bf16.mxu0 0
      %1159 = vmatpush2.bf16.msra.mxu0 0
      %1160 = vmatprep.subr.bf16.mxu0 0
      %1161 = vmatpush2.bf16.msra.mxu0 0
      %1162 = vmatprep.subr.bf16.mxu0 0
      %1163 = vmatpush2.bf16.msra.mxu0 0
      %1164 = vmatprep.subr.bf16.mxu0 0
      %1165 = vmatpush2.bf16.msra.mxu0 0
      %1166 = vmatprep.mubr.bf16.mxu0 0
      %1167 = vmatmul.mubr.bf16.gmra.mxu0 %v1111
      %v1168 = vpop.f32.mrf.mxu0
      %v1169 = vadd.f32 0.0, %v1168
      %v1170 = vpop.f32.mrf.mxu0
      %v1171 = vpop.f32.mrf.mxu0
      %v1172 = vadd.f32 0.0, %v1171
      %v1173 = vpop.f32.mrf.mxu0
      %1174 = vmatprep.mubr.bf16.mxu0 0
      %1175 = vmatmul.mubr.bf16.gmra.mxu0 %v1114
      %v1176 = vpop.f32.mrf.mxu0
      %v1177 = vadd.f32 0.0, %v1176
      %v1178 = vpop.f32.mrf.mxu0
      %v1179 = vpop.f32.mrf.mxu0
      %v1180 = vadd.f32 0.0, %v1179
      %v1181 = vpop.f32.mrf.mxu0
      %1182 = vmatprep.mubr.bf16.mxu0 0
      %1183 = vmatmul.mubr.bf16.gmra.mxu0 %v1117
      %v1184 = vpop.f32.mrf.mxu0
      %v1185 = vadd.f32 0.0, %v1184
      %v1186 = vpop.f32.mrf.mxu0
      %v1187 = vpop.f32.mrf.mxu0
      %v1188 = vadd.f32 0.0, %v1187
      %v1189 = vpop.f32.mrf.mxu0
      %1190 = vmatprep.mubr.bf16.mxu0 0
      %1191 = vmatmul.mubr.bf16.gmra.mxu0 %v1120
      %v1192 = vpop.f32.mrf.mxu0
      %v1193 = vadd.f32 0.0, %v1192
      %v1194 = vpop.f32.mrf.mxu0
      %v1195 = vpop.f32.mrf.mxu0
      %v1196 = vadd.f32 0.0, %v1195
      %v1197 = vpop.f32.mrf.mxu0
      %1198 = vmatprep.mubr.bf16.mxu0 0
      %1199 = vmatmul.mubr.bf16.gmra.mxu0 %v1123
      %v1200 = vpop.f32.mrf.mxu0
      %v1201 = vadd.f32 0.0, %v1200
      %v1202 = vpop.f32.mrf.mxu0
      %v1203 = vpop.f32.mrf.mxu0
      %v1204 = vadd.f32 0.0, %v1203
      %v1205 = vpop.f32.mrf.mxu0
      %1206 = vmatprep.mubr.bf16.mxu0 0
      %1207 = vmatmul.mubr.bf16.gmra.mxu0 %v1126
      %v1208 = vpop.f32.mrf.mxu0
      %v1209 = vadd.f32 0.0, %v1208
      %v1210 = vpop.f32.mrf.mxu0
      %v1211 = vpop.f32.mrf.mxu0
      %v1212 = vadd.f32 0.0, %v1211
      %v1213 = vpop.f32.mrf.mxu0
      %1214 = vmatprep.mubr.bf16.mxu0 0
      %1215 = vmatmul.mubr.bf16.gmra.mxu0 %v1129
      %v1216 = vpop.f32.mrf.mxu0
      %v1217 = vadd.f32 0.0, %v1216
      %v1218 = vpop.f32.mrf.mxu0
      %v1219 = vpop.f32.mrf.mxu0
      %v1220 = vadd.f32 0.0, %v1219
      %v1221 = vpop.f32.mrf.mxu0
      %1222 = vmatprep.mubr.bf16.mxu0 0
      %1223 = vmatmul.mubr.bf16.gmra.mxu0 %v1132
      %v1224 = vpop.f32.mrf.mxu0
      %v1225 = vadd.f32 0.0, %v1224
      %v1226 = vpop.f32.mrf.mxu0
      %v1227 = vpop.f32.mrf.mxu0
      %v1228 = vadd.f32 0.0, %v1227
      %v1229 = vpop.f32.mrf.mxu0
      %1230 = vdwg.mxu0
      %v1231 = vadd.f32 %v1020, %v1169
      %v1232 = vadd.f32 %v1021, %v1172
      %v1233 = vadd.f32 %v1022, %v1177
      %v1234 = vadd.f32 %v1023, %v1180
      %v1235 = vadd.f32 %v1024, %v1185
      %v1236 = vadd.f32 %v1025, %v1188
      %v1237 = vadd.f32 %v1026, %v1193
      %v1238 = vadd.f32 %v1027, %v1196
      %v1239 = vadd.f32 %v1028, %v1201
      %v1240 = vadd.f32 %v1029, %v1204
      %v1241 = vadd.f32 %v1030, %v1209
      %v1242 = vadd.f32 %v1031, %v1212
      %v1243 = vadd.f32 %v1032, %v1217
      %v1244 = vadd.f32 %v1033, %v1220
      %v1245 = vadd.f32 %v1034, %v1225
      %v1246 = vadd.f32 %v1035, %v1228
      %v1247 = vld [vmem:[%s1036] sm:$0xf]
      %v1248 = vld [vmem:[%s1036 + $0x4] sm:$0xf]
      %v1249 = vld [vmem:[%s1036 + $0x8] sm:$0x1]
      %v1250 = vld [vmem:[%s1036 + $0xc] sm:$0xf]
      %v1251 = vld [vmem:[%s1036 + $0x10] sm:$0xf]
      %v1252 = vld [vmem:[%s1036 + $0x14] sm:$0x1]
      %v1253 = vld [vmem:[%s1036 + $0x18] sm:$0xf]
      %v1254 = vld [vmem:[%s1036 + $0x1c] sm:$0xf]
      %v1255 = vld [vmem:[%s1036 + $0x20] sm:$0x1]
      %v1256 = vld [vmem:[%s1036 + $0x24] sm:$0xf]
      %v1257 = vld [vmem:[%s1036 + $0x28] sm:$0xf]
      %v1258 = vld [vmem:[%s1036 + $0x2c] sm:$0x1]
      %v1259 = vld [vmem:[%s1036 + $0x30] sm:$0xf]
      %v1260 = vld [vmem:[%s1036 + $0x34] sm:$0xf]
      %v1261 = vld [vmem:[%s1036 + $0x38] sm:$0x1]
      %v1262 = vld [vmem:[%s1036 + $0x3c] sm:$0xf]
      %v1263 = vld [vmem:[%s1036 + $0x40] sm:$0xf]
      %v1264 = vld [vmem:[%s1036 + $0x44] sm:$0x1]
      %v1265 = vld [vmem:[%s1036 + $0x48] sm:$0xf]
      %v1266 = vld [vmem:[%s1036 + $0x4c] sm:$0xf]
      %v1267 = vld [vmem:[%s1036 + $0x50] sm:$0x1]
      %v1268 = vld [vmem:[%s1036 + $0x54] sm:$0xf]
      %v1269 = vld [vmem:[%s1036 + $0x58] sm:$0xf]
      %v1270 = vld [vmem:[%s1036 + $0x5c] sm:$0x1]
      %v1272 = vshrl.u32 %v1247, 16
      %v1274 = vrot.slane %v1272, 4
      %v1275 = vshll.u32 %v1247, 16
      %v1277 = vrot.slane %v1275, 5
      %v1278 = vor.u32 %v1274, %v1277
      %v1279 = vrot.slane %v1278, 4
      %v1281 = vshll.u32 %v1248, 16
      %v1283 = vrot.slane %v1281, 5
      %v1284 = vsel %vm246, %v1279, %v1283
      %v1285 = vshrl.u32 %v1248, 16
      %v1287 = vrot.slane %v1285, 4
      %v1288 = vor.u32 %v1287, %v1283
      %v1289 = vrot.slane %v1288, 4
      %v1291 = vshll.u32 %v1249, 16
      %v1293 = vrot.slane %v1291, 5
      %v1294 = vsel %vm246, %v1289, %v1293
      %v1296 = vshrl.u32 %v1250, 16
      %v1298 = vrot.slane %v1296, 4
      %v1299 = vshll.u32 %v1250, 16
      %v1301 = vrot.slane %v1299, 5
      %v1302 = vor.u32 %v1298, %v1301
      %v1303 = vrot.slane %v1302, 4
      %v1305 = vshll.u32 %v1251, 16
      %v1307 = vrot.slane %v1305, 5
      %v1308 = vsel %vm246, %v1303, %v1307
      %v1309 = vshrl.u32 %v1251, 16
      %v1311 = vrot.slane %v1309, 4
      %v1312 = vor.u32 %v1311, %v1307
      %v1313 = vrot.slane %v1312, 4
      %v1315 = vshll.u32 %v1252, 16
      %v1317 = vrot.slane %v1315, 5
      %v1318 = vsel %vm246, %v1313, %v1317
      %v1320 = vshrl.u32 %v1253, 16
      %v1322 = vrot.slane %v1320, 4
      %v1323 = vshll.u32 %v1253, 16
      %v1325 = vrot.slane %v1323, 5
      %v1326 = vor.u32 %v1322, %v1325
      %v1327 = vrot.slane %v1326, 4
      %v1329 = vshll.u32 %v1254, 16
      %v1331 = vrot.slane %v1329, 5
      %v1332 = vsel %vm246, %v1327, %v1331
      %v1333 = vshrl.u32 %v1254, 16
      %v1335 = vrot.slane %v1333, 4
      %v1336 = vor.u32 %v1335, %v1331
      %v1337 = vrot.slane %v1336, 4
      %v1339 = vshll.u32 %v1255, 16
      %v1341 = vrot.slane %v1339, 5
      %v1342 = vsel %vm246, %v1337, %v1341
      %v1344 = vshrl.u32 %v1256, 16
      %v1346 = vrot.slane %v1344, 4
      %v1347 = vshll.u32 %v1256, 16
      %v1349 = vrot.slane %v1347, 5
      %v1350 = vor.u32 %v1346, %v1349
      %v1351 = vrot.slane %v1350, 4
      %v1353 = vshll.u32 %v1257, 16
      %v1355 = vrot.slane %v1353, 5
      %v1356 = vsel %vm246, %v1351, %v1355
      %v1357 = vshrl.u32 %v1257, 16
      %v1359 = vrot.slane %v1357, 4
      %v1360 = vor.u32 %v1359, %v1355
      %v1361 = vrot.slane %v1360, 4
      %v1363 = vshll.u32 %v1258, 16
      %v1365 = vrot.slane %v1363, 5
      %v1366 = vsel %vm246, %v1361, %v1365
      %v1368 = vshrl.u32 %v1259, 16
      %v1370 = vrot.slane %v1368, 4
      %v1371 = vshll.u32 %v1259, 16
      %v1373 = vrot.slane %v1371, 5
      %v1374 = vor.u32 %v1370, %v1373
      %v1375 = vrot.slane %v1374, 4
      %v1377 = vshll.u32 %v1260, 16
      %v1379 = vrot.slane %v1377, 5
      %v1380 = vsel %vm246, %v1375, %v1379
      %v1381 = vshrl.u32 %v1260, 16
      %v1383 = vrot.slane %v1381, 4
      %v1384 = vor.u32 %v1383, %v1379
      %v1385 = vrot.slane %v1384, 4
      %v1387 = vshll.u32 %v1261, 16
      %v1389 = vrot.slane %v1387, 5
      %v1390 = vsel %vm246, %v1385, %v1389
      %v1392 = vshrl.u32 %v1262, 16
      %v1394 = vrot.slane %v1392, 4
      %v1395 = vshll.u32 %v1262, 16
      %v1397 = vrot.slane %v1395, 5
      %v1398 = vor.u32 %v1394, %v1397
      %v1399 = vrot.slane %v1398, 4
      %v1401 = vshll.u32 %v1263, 16
      %v1403 = vrot.slane %v1401, 5
      %v1404 = vsel %vm246, %v1399, %v1403
      %v1405 = vshrl.u32 %v1263, 16
      %v1407 = vrot.slane %v1405, 4
      %v1408 = vor.u32 %v1407, %v1403
      %v1409 = vrot.slane %v1408, 4
      %v1411 = vshll.u32 %v1264, 16
      %v1413 = vrot.slane %v1411, 5
      %v1414 = vsel %vm246, %v1409, %v1413
      %v1416 = vshrl.u32 %v1265, 16
      %v1418 = vrot.slane %v1416, 4
      %v1419 = vshll.u32 %v1265, 16
      %v1421 = vrot.slane %v1419, 5
      %v1422 = vor.u32 %v1418, %v1421
      %v1423 = vrot.slane %v1422, 4
      %v1425 = vshll.u32 %v1266, 16
      %v1427 = vrot.slane %v1425, 5
      %v1428 = vsel %vm246, %v1423, %v1427
      %v1429 = vshrl.u32 %v1266, 16
      %v1431 = vrot.slane %v1429, 4
      %v1432 = vor.u32 %v1431, %v1427
      %v1433 = vrot.slane %v1432, 4
      %v1435 = vshll.u32 %v1267, 16
      %v1437 = vrot.slane %v1435, 5
      %v1438 = vsel %vm246, %v1433, %v1437
      %v1440 = vshrl.u32 %v1268, 16
      %v1442 = vrot.slane %v1440, 4
      %v1443 = vshll.u32 %v1268, 16
      %v1445 = vrot.slane %v1443, 5
      %v1446 = vor.u32 %v1442, %v1445
      %v1447 = vrot.slane %v1446, 4
      %v1449 = vshll.u32 %v1269, 16
      %v1451 = vrot.slane %v1449, 5
      %v1452 = vsel %vm246, %v1447, %v1451
      %v1453 = vshrl.u32 %v1269, 16
      %v1455 = vrot.slane %v1453, 4
      %v1456 = vor.u32 %v1455, %v1451
      %v1457 = vrot.slane %v1456, 4
      %v1459 = vshll.u32 %v1270, 16
      %v1461 = vrot.slane %v1459, 5
      %v1462 = vsel %vm246, %v1457, %v1461
      %s1463 = scalar_lea.vmem %s1, 64
      %v1464 = vld [vmem:[%s1463] sm:$0xf]
      %v1465 = vld [vmem:[%s1463 + $0x4] sm:$0xf]
      %v1466 = vld [vmem:[%s1463 + $0x8] sm:$0xf]
      %v1467 = vld [vmem:[%s1463 + $0xc] sm:$0xf]
      %v1468 = vunpack.c.l.b16 %v1284
      %v1469 = vunpack.c.l.b16 %v1294
      %v1470 = vunpack.c.l.b16 %v1308
      %v1471 = vunpack.c.l.b16 %v1318
      %v1472 = vunpack.c.l.b16 %v1332
      %v1473 = vunpack.c.l.b16 %v1342
      %v1474 = vunpack.c.l.b16 %v1356
      %v1475 = vunpack.c.l.b16 %v1366
      %v1476 = vunpack.c.l.b16 %v1380
      %v1477 = vunpack.c.l.b16 %v1390
      %v1478 = vunpack.c.l.b16 %v1404
      %v1479 = vunpack.c.l.b16 %v1414
      %v1480 = vunpack.c.l.b16 %v1428
      %v1481 = vunpack.c.l.b16 %v1438
      %v1482 = vunpack.c.l.b16 %v1452
      %v1483 = vunpack.c.l.b16 %v1462
      %v1484 = vpack.c.b16 %v1469, %v1468
      %v1485 = vpack.c.b16 %v1471, %v1470
      %v1486 = vpack.c.b16 %v1473, %v1472
      %v1487 = vpack.c.b16 %v1475, %v1474
      %v1488 = vpack.c.b16 %v1477, %v1476
      %v1489 = vpack.c.b16 %v1479, %v1478
      %v1490 = vpack.c.b16 %v1481, %v1480
      %v1491 = vpack.c.b16 %v1483, %v1482
      %v1496 = vunpack.c.l.b16 %v1464
      %v1497 = vunpack.c.l.b16 %v1465
      %v1498 = vunpack.c.l.b16 %v1466
      %v1499 = vunpack.c.l.b16 %v1467
      %v1500 = vpack.c.b16 %v1497, %v1496
      %v1501 = vpack.c.b16 %v1499, %v1498
      %v1505 = vsel %vm480, %v1484, 0
      %v1508 = vsel %vm480, %v1485, 0
      %v1511 = vsel %vm480, %v1486, 0
      %v1514 = vsel %vm480, %v1487, 0
      %v1517 = vsel %vm480, %v1488, 0
      %v1520 = vsel %vm480, %v1489, 0
      %v1523 = vsel %vm480, %v1490, 0
      %v1526 = vsel %vm480, %v1491, 0
      %1528 = vmatprep.subr.bf16.mxu0 0
      %1529 = vmatpush1.bf16.msra.mxu0 0
      %1530 = vmatprep.subr.bf16.mxu0 0
      %1531 = vmatpush1.bf16.msra.mxu0 0
      %1532 = vmatprep.subr.bf16.mxu0 0
      %1533 = vmatpush1.bf16.msra.mxu0 0
      %1534 = vmatprep.subr.bf16.mxu0 0
      %1535 = vmatpush1.bf16.msra.mxu0 0
      %1536 = vmatprep.subr.bf16.mxu0 0
      %1537 = vmatpush1.bf16.msra.mxu0 0
      %1538 = vmatprep.subr.bf16.mxu0 0
      %1539 = vmatpush1.bf16.msra.mxu0 0
      %1540 = vmatprep.subr.bf16.mxu0 0
      %1541 = vmatpush1.bf16.msra.mxu0 %v1501
      %1542 = vmatprep.subr.bf16.mxu0 0
      %1543 = vmatpush1.bf16.msra.mxu0 %v1500
      %1544 = vmatprep.subr.bf16.mxu0 0
      %1545 = vmatpush2.bf16.msra.mxu0 0
      %1546 = vmatprep.subr.bf16.mxu0 0
      %1547 = vmatpush2.bf16.msra.mxu0 0
      %1548 = vmatprep.subr.bf16.mxu0 0
      %1549 = vmatpush2.bf16.msra.mxu0 0
      %1550 = vmatprep.subr.bf16.mxu0 0
      %1551 = vmatpush2.bf16.msra.mxu0 0
      %1552 = vmatprep.subr.bf16.mxu0 0
      %1553 = vmatpush2.bf16.msra.mxu0 0
      %1554 = vmatprep.subr.bf16.mxu0 0
      %1555 = vmatpush2.bf16.msra.mxu0 0
      %1556 = vmatprep.subr.bf16.mxu0 0
      %1557 = vmatpush2.bf16.msra.mxu0 0
      %1558 = vmatprep.subr.bf16.mxu0 0
      %1559 = vmatpush2.bf16.msra.mxu0 0
      %1560 = vmatprep.mubr.bf16.mxu0 0
      %1561 = vmatmul.mubr.bf16.gmra.mxu0 %v1505
      %v1562 = vpop.f32.mrf.mxu0
      %v1563 = vadd.f32 0.0, %v1562
      %v1564 = vpop.f32.mrf.mxu0
      %v1565 = vpop.f32.mrf.mxu0
      %v1566 = vadd.f32 0.0, %v1565
      %v1567 = vpop.f32.mrf.mxu0
      %1568 = vmatprep.mubr.bf16.mxu0 0
      %1569 = vmatmul.mubr.bf16.gmra.mxu0 %v1508
      %v1570 = vpop.f32.mrf.mxu0
      %v1571 = vadd.f32 0.0, %v1570
      %v1572 = vpop.f32.mrf.mxu0
      %v1573 = vpop.f32.mrf.mxu0
      %v1574 = vadd.f32 0.0, %v1573
      %v1575 = vpop.f32.mrf.mxu0
      %1576 = vmatprep.mubr.bf16.mxu0 0
      %1577 = vmatmul.mubr.bf16.gmra.mxu0 %v1511
      %v1578 = vpop.f32.mrf.mxu0
      %v1579 = vadd.f32 0.0, %v1578
      %v1580 = vpop.f32.mrf.mxu0
      %v1581 = vpop.f32.mrf.mxu0
      %v1582 = vadd.f32 0.0, %v1581
      %v1583 = vpop.f32.mrf.mxu0
      %1584 = vmatprep.mubr.bf16.mxu0 0
      %1585 = vmatmul.mubr.bf16.gmra.mxu0 %v1514
      %v1586 = vpop.f32.mrf.mxu0
      %v1587 = vadd.f32 0.0, %v1586
      %v1588 = vpop.f32.mrf.mxu0
      %v1589 = vpop.f32.mrf.mxu0
      %v1590 = vadd.f32 0.0, %v1589
      %v1591 = vpop.f32.mrf.mxu0
      %1592 = vmatprep.mubr.bf16.mxu0 0
      %1593 = vmatmul.mubr.bf16.gmra.mxu0 %v1517
      %v1594 = vpop.f32.mrf.mxu0
      %v1595 = vadd.f32 0.0, %v1594
      %v1596 = vpop.f32.mrf.mxu0
      %v1597 = vpop.f32.mrf.mxu0
      %v1598 = vadd.f32 0.0, %v1597
      %v1599 = vpop.f32.mrf.mxu0
      %1600 = vmatprep.mubr.bf16.mxu0 0
      %1601 = vmatmul.mubr.bf16.gmra.mxu0 %v1520
      %v1602 = vpop.f32.mrf.mxu0
      %v1603 = vadd.f32 0.0, %v1602
      %v1604 = vpop.f32.mrf.mxu0
      %v1605 = vpop.f32.mrf.mxu0
      %v1606 = vadd.f32 0.0, %v1605
      %v1607 = vpop.f32.mrf.mxu0
      %1608 = vmatprep.mubr.bf16.mxu0 0
      %1609 = vmatmul.mubr.bf16.gmra.mxu0 %v1523
      %v1610 = vpop.f32.mrf.mxu0
      %v1611 = vadd.f32 0.0, %v1610
      %v1612 = vpop.f32.mrf.mxu0
      %v1613 = vpop.f32.mrf.mxu0
      %v1614 = vadd.f32 0.0, %v1613
      %v1615 = vpop.f32.mrf.mxu0
      %1616 = vmatprep.mubr.bf16.mxu0 0
      %1617 = vmatmul.mubr.bf16.gmra.mxu0 %v1526
      %v1618 = vpop.f32.mrf.mxu0
      %v1619 = vadd.f32 0.0, %v1618
      %v1620 = vpop.f32.mrf.mxu0
      %v1621 = vpop.f32.mrf.mxu0
      %v1622 = vadd.f32 0.0, %v1621
      %v1623 = vpop.f32.mrf.mxu0
      %1624 = vdwg.mxu0
      %v1625 = vadd.f32 %v1231, %v1563
      %v1626 = vadd.f32 %v1232, %v1566
      %v1627 = vadd.f32 %v1233, %v1571
      %v1628 = vadd.f32 %v1234, %v1574
      %v1629 = vadd.f32 %v1235, %v1579
      %v1630 = vadd.f32 %v1236, %v1582
      %v1631 = vadd.f32 %v1237, %v1587
      %v1632 = vadd.f32 %v1238, %v1590
      %v1633 = vadd.f32 %v1239, %v1595
      %v1634 = vadd.f32 %v1240, %v1598
      %v1635 = vadd.f32 %v1241, %v1603
      %v1636 = vadd.f32 %v1242, %v1606
      %v1637 = vadd.f32 %v1243, %v1611
      %v1638 = vadd.f32 %v1244, %v1614
      %v1639 = vadd.f32 %v1245, %v1619
      %v1640 = vadd.f32 %v1246, %v1622
      %v1641 = vld [vmem:[%s1036] sm:$0xe]
      %v1642 = vld [vmem:[%s1036 + $0xc] sm:$0xe]
      %v1643 = vld [vmem:[%s1036 + $0x18] sm:$0xe]
      %v1644 = vld [vmem:[%s1036 + $0x24] sm:$0xe]
      %v1645 = vld [vmem:[%s1036 + $0x30] sm:$0xe]
      %v1646 = vld [vmem:[%s1036 + $0x3c] sm:$0xe]
      %v1647 = vld [vmem:[%s1036 + $0x48] sm:$0xe]
      %v1648 = vld [vmem:[%s1036 + $0x54] sm:$0xe]
      %v1673 = vrot.slane %v1641, 5
      %v1674 = vrot.slane %v1673, 4
      %v1675 = vrot.slane %v1248, 5
      %v1676 = vsel %vm801, %v1674, %v1675
      %v1677 = vrot.slane %v1675, 4
      %v1678 = vrot.slane %v1249, 5
      %v1679 = vsel %vm801, %v1677, %v1678
      %v1680 = vrot.slane %v1642, 5
      %v1681 = vrot.slane %v1680, 4
      %v1682 = vrot.slane %v1251, 5
      %v1683 = vsel %vm801, %v1681, %v1682
      %v1684 = vrot.slane %v1682, 4
      %v1685 = vrot.slane %v1252, 5
      %v1686 = vsel %vm801, %v1684, %v1685
      %v1687 = vrot.slane %v1643, 5
      %v1688 = vrot.slane %v1687, 4
      %v1689 = vrot.slane %v1254, 5
      %v1690 = vsel %vm801, %v1688, %v1689
      %v1691 = vrot.slane %v1689, 4
      %v1692 = vrot.slane %v1255, 5
      %v1693 = vsel %vm801, %v1691, %v1692
      %v1694 = vrot.slane %v1644, 5
      %v1695 = vrot.slane %v1694, 4
      %v1696 = vrot.slane %v1257, 5
      %v1697 = vsel %vm801, %v1695, %v1696
      %v1698 = vrot.slane %v1696, 4
      %v1699 = vrot.slane %v1258, 5
      %v1700 = vsel %vm801, %v1698, %v1699
      %v1701 = vrot.slane %v1645, 5
      %v1702 = vrot.slane %v1701, 4
      %v1703 = vrot.slane %v1260, 5
      %v1704 = vsel %vm801, %v1702, %v1703
      %v1705 = vrot.slane %v1703, 4
      %v1706 = vrot.slane %v1261, 5
      %v1707 = vsel %vm801, %v1705, %v1706
      %v1708 = vrot.slane %v1646, 5
      %v1709 = vrot.slane %v1708, 4
      %v1710 = vrot.slane %v1263, 5
      %v1711 = vsel %vm801, %v1709, %v1710
      %v1712 = vrot.slane %v1710, 4
      %v1713 = vrot.slane %v1264, 5
      %v1714 = vsel %vm801, %v1712, %v1713
      %v1715 = vrot.slane %v1647, 5
      %v1716 = vrot.slane %v1715, 4
      %v1717 = vrot.slane %v1266, 5
      %v1718 = vsel %vm801, %v1716, %v1717
      %v1719 = vrot.slane %v1717, 4
      %v1720 = vrot.slane %v1267, 5
      %v1721 = vsel %vm801, %v1719, %v1720
      %v1722 = vrot.slane %v1648, 5
      %v1723 = vrot.slane %v1722, 4
      %v1724 = vrot.slane %v1269, 5
      %v1725 = vsel %vm801, %v1723, %v1724
      %v1726 = vrot.slane %v1724, 4
      %v1727 = vrot.slane %v1270, 5
      %v1728 = vsel %vm801, %v1726, %v1727
      %s1729 = scalar_lea.vmem %s1, 80
      %v1730 = vld [vmem:[%s1729] sm:$0xf]
      %v1731 = vld [vmem:[%s1729 + $0x4] sm:$0xf]
      %v1732 = vld [vmem:[%s1729 + $0x8] sm:$0xf]
      %v1733 = vld [vmem:[%s1729 + $0xc] sm:$0xf]
      %v1734 = vunpack.c.l.b16 %v1676
      %v1735 = vunpack.c.l.b16 %v1679
      %v1736 = vunpack.c.l.b16 %v1683
      %v1737 = vunpack.c.l.b16 %v1686
      %v1738 = vunpack.c.l.b16 %v1690
      %v1739 = vunpack.c.l.b16 %v1693
      %v1740 = vunpack.c.l.b16 %v1697
      %v1741 = vunpack.c.l.b16 %v1700
      %v1742 = vunpack.c.l.b16 %v1704
      %v1743 = vunpack.c.l.b16 %v1707
      %v1744 = vunpack.c.l.b16 %v1711
      %v1745 = vunpack.c.l.b16 %v1714
      %v1746 = vunpack.c.l.b16 %v1718
      %v1747 = vunpack.c.l.b16 %v1721
      %v1748 = vunpack.c.l.b16 %v1725
      %v1749 = vunpack.c.l.b16 %v1728
      %v1750 = vpack.c.b16 %v1735, %v1734
      %v1751 = vpack.c.b16 %v1737, %v1736
      %v1752 = vpack.c.b16 %v1739, %v1738
      %v1753 = vpack.c.b16 %v1741, %v1740
      %v1754 = vpack.c.b16 %v1743, %v1742
      %v1755 = vpack.c.b16 %v1745, %v1744
      %v1756 = vpack.c.b16 %v1747, %v1746
      %v1757 = vpack.c.b16 %v1749, %v1748
      %v1762 = vunpack.c.l.b16 %v1730
      %v1763 = vunpack.c.l.b16 %v1731
      %v1764 = vunpack.c.l.b16 %v1732
      %v1765 = vunpack.c.l.b16 %v1733
      %v1766 = vpack.c.b16 %v1763, %v1762
      %v1767 = vpack.c.b16 %v1765, %v1764
      %v1771 = vsel %vm480, %v1750, 0
      %v1774 = vsel %vm480, %v1751, 0
      %v1777 = vsel %vm480, %v1752, 0
      %v1780 = vsel %vm480, %v1753, 0
      %v1783 = vsel %vm480, %v1754, 0
      %v1786 = vsel %vm480, %v1755, 0
      %v1789 = vsel %vm480, %v1756, 0
      %v1792 = vsel %vm480, %v1757, 0
      %1794 = vmatprep.subr.bf16.mxu0 0
      %1795 = vmatpush1.bf16.msra.mxu0 0
      %1796 = vmatprep.subr.bf16.mxu0 0
      %1797 = vmatpush1.bf16.msra.mxu0 0
      %1798 = vmatprep.subr.bf16.mxu0 0
      %1799 = vmatpush1.bf16.msra.mxu0 0
      %1800 = vmatprep.subr.bf16.mxu0 0
      %1801 = vmatpush1.bf16.msra.mxu0 0
      %1802 = vmatprep.subr.bf16.mxu0 0
      %1803 = vmatpush1.bf16.msra.mxu0 0
      %1804 = vmatprep.subr.bf16.mxu0 0
      %1805 = vmatpush1.bf16.msra.mxu0 0
      %1806 = vmatprep.subr.bf16.mxu0 0
      %1807 = vmatpush1.bf16.msra.mxu0 %v1767
      %1808 = vmatprep.subr.bf16.mxu0 0
      %1809 = vmatpush1.bf16.msra.mxu0 %v1766
      %1810 = vmatprep.subr.bf16.mxu0 0
      %1811 = vmatpush2.bf16.msra.mxu0 0
      %1812 = vmatprep.subr.bf16.mxu0 0
      %1813 = vmatpush2.bf16.msra.mxu0 0
      %1814 = vmatprep.subr.bf16.mxu0 0
      %1815 = vmatpush2.bf16.msra.mxu0 0
      %1816 = vmatprep.subr.bf16.mxu0 0
      %1817 = vmatpush2.bf16.msra.mxu0 0
      %1818 = vmatprep.subr.bf16.mxu0 0
      %1819 = vmatpush2.bf16.msra.mxu0 0
      %1820 = vmatprep.subr.bf16.mxu0 0
      %1821 = vmatpush2.bf16.msra.mxu0 0
      %1822 = vmatprep.subr.bf16.mxu0 0
      %1823 = vmatpush2.bf16.msra.mxu0 0
      %1824 = vmatprep.subr.bf16.mxu0 0
      %1825 = vmatpush2.bf16.msra.mxu0 0
      %1826 = vmatprep.mubr.bf16.mxu0 0
      %1827 = vmatmul.mubr.bf16.gmra.mxu0 %v1771
      %v1828 = vpop.f32.mrf.mxu0
      %v1829 = vadd.f32 0.0, %v1828
      %v1830 = vpop.f32.mrf.mxu0
      %v1831 = vpop.f32.mrf.mxu0
      %v1832 = vadd.f32 0.0, %v1831
      %v1833 = vpop.f32.mrf.mxu0
      %1834 = vmatprep.mubr.bf16.mxu0 0
      %1835 = vmatmul.mubr.bf16.gmra.mxu0 %v1774
      %v1836 = vpop.f32.mrf.mxu0
      %v1837 = vadd.f32 0.0, %v1836
      %v1838 = vpop.f32.mrf.mxu0
      %v1839 = vpop.f32.mrf.mxu0
      %v1840 = vadd.f32 0.0, %v1839
      %v1841 = vpop.f32.mrf.mxu0
      %1842 = vmatprep.mubr.bf16.mxu0 0
      %1843 = vmatmul.mubr.bf16.gmra.mxu0 %v1777
      %v1844 = vpop.f32.mrf.mxu0
      %v1845 = vadd.f32 0.0, %v1844
      %v1846 = vpop.f32.mrf.mxu0
      %v1847 = vpop.f32.mrf.mxu0
      %v1848 = vadd.f32 0.0, %v1847
      %v1849 = vpop.f32.mrf.mxu0
      %1850 = vmatprep.mubr.bf16.mxu0 0
      %1851 = vmatmul.mubr.bf16.gmra.mxu0 %v1780
      %v1852 = vpop.f32.mrf.mxu0
      %v1853 = vadd.f32 0.0, %v1852
      %v1854 = vpop.f32.mrf.mxu0
      %v1855 = vpop.f32.mrf.mxu0
      %v1856 = vadd.f32 0.0, %v1855
      %v1857 = vpop.f32.mrf.mxu0
      %1858 = vmatprep.mubr.bf16.mxu0 0
      %1859 = vmatmul.mubr.bf16.gmra.mxu0 %v1783
      %v1860 = vpop.f32.mrf.mxu0
      %v1861 = vadd.f32 0.0, %v1860
      %v1862 = vpop.f32.mrf.mxu0
      %v1863 = vpop.f32.mrf.mxu0
      %v1864 = vadd.f32 0.0, %v1863
      %v1865 = vpop.f32.mrf.mxu0
      %1866 = vmatprep.mubr.bf16.mxu0 0
      %1867 = vmatmul.mubr.bf16.gmra.mxu0 %v1786
      %v1868 = vpop.f32.mrf.mxu0
      %v1869 = vadd.f32 0.0, %v1868
      %v1870 = vpop.f32.mrf.mxu0
      %v1871 = vpop.f32.mrf.mxu0
      %v1872 = vadd.f32 0.0, %v1871
      %v1873 = vpop.f32.mrf.mxu0
      %1874 = vmatprep.mubr.bf16.mxu0 0
      %1875 = vmatmul.mubr.bf16.gmra.mxu0 %v1789
      %v1876 = vpop.f32.mrf.mxu0
      %v1877 = vadd.f32 0.0, %v1876
      %v1878 = vpop.f32.mrf.mxu0
      %v1879 = vpop.f32.mrf.mxu0
      %v1880 = vadd.f32 0.0, %v1879
      %v1881 = vpop.f32.mrf.mxu0
      %1882 = vmatprep.mubr.bf16.mxu0 0
      %1883 = vmatmul.mubr.bf16.gmra.mxu0 %v1792
      %v1884 = vpop.f32.mrf.mxu0
      %v1885 = vadd.f32 0.0, %v1884
      %v1886 = vpop.f32.mrf.mxu0
      %v1887 = vpop.f32.mrf.mxu0
      %v1888 = vadd.f32 0.0, %v1887
      %v1889 = vpop.f32.mrf.mxu0
      %1890 = vdwg.mxu0
      %v1891 = vadd.f32 %v1625, %v1829
      %v1892 = vadd.f32 %v1626, %v1832
      %v1893 = vadd.f32 %v1627, %v1837
      %v1894 = vadd.f32 %v1628, %v1840
      %v1895 = vadd.f32 %v1629, %v1845
      %v1896 = vadd.f32 %v1630, %v1848
      %v1897 = vadd.f32 %v1631, %v1853
      %v1898 = vadd.f32 %v1632, %v1856
      %v1899 = vadd.f32 %v1633, %v1861
      %v1900 = vadd.f32 %v1634, %v1864
      %v1901 = vadd.f32 %v1635, %v1869
      %v1902 = vadd.f32 %v1636, %v1872
      %v1903 = vadd.f32 %v1637, %v1877
      %v1904 = vadd.f32 %v1638, %v1880
      %v1905 = vadd.f32 %v1639, %v1885
      %v1906 = vadd.f32 %v1640, %v1888
      %s1907 = scalar_lea.vmem %s203, 24
      %v1908 = vld [vmem:[%s1907] sm:$0xf]
      %v1909 = vld [vmem:[%s1907 + $0x4] sm:$0xf]
      %v1910 = vld [vmem:[%s1907 + $0xc] sm:$0xf]
      %v1911 = vld [vmem:[%s1907 + $0x10] sm:$0xf]
      %v1912 = vld [vmem:[%s1907 + $0x18] sm:$0xf]
      %v1913 = vld [vmem:[%s1907 + $0x1c] sm:$0xf]
      %v1914 = vld [vmem:[%s1907 + $0x24] sm:$0xf]
      %v1915 = vld [vmem:[%s1907 + $0x28] sm:$0xf]
      %v1916 = vld [vmem:[%s1907 + $0x30] sm:$0xf]
      %v1917 = vld [vmem:[%s1907 + $0x34] sm:$0xf]
      %v1918 = vld [vmem:[%s1907 + $0x3c] sm:$0xf]
      %v1919 = vld [vmem:[%s1907 + $0x40] sm:$0xf]
      %v1920 = vld [vmem:[%s1907 + $0x48] sm:$0xf]
      %v1921 = vld [vmem:[%s1907 + $0x4c] sm:$0xf]
      %v1922 = vld [vmem:[%s1907 + $0x54] sm:$0xf]
      %v1923 = vld [vmem:[%s1907 + $0x58] sm:$0xf]
      %s1924 = scalar_lea.vmem %s1, 96
      %v1925 = vld [vmem:[%s1924] sm:$0xf]
      %v1926 = vld [vmem:[%s1924 + $0x4] sm:$0xf]
      %v1927 = vld [vmem:[%s1924 + $0x8] sm:$0xf]
      %v1928 = vld [vmem:[%s1924 + $0xc] sm:$0xf]
      %v1945 = vunpack.c.l.b16 %v1908
      %v1946 = vunpack.c.l.b16 %v1909
      %v1947 = vunpack.c.l.b16 %v1910
      %v1948 = vunpack.c.l.b16 %v1911
      %v1949 = vunpack.c.l.b16 %v1912
      %v1950 = vunpack.c.l.b16 %v1913
      %v1951 = vunpack.c.l.b16 %v1914
      %v1952 = vunpack.c.l.b16 %v1915
      %v1953 = vunpack.c.l.b16 %v1916
      %v1954 = vunpack.c.l.b16 %v1917
      %v1955 = vunpack.c.l.b16 %v1918
      %v1956 = vunpack.c.l.b16 %v1919
      %v1957 = vunpack.c.l.b16 %v1920
      %v1958 = vunpack.c.l.b16 %v1921
      %v1959 = vunpack.c.l.b16 %v1922
      %v1960 = vunpack.c.l.b16 %v1923
      %v1961 = vpack.c.b16 %v1946, %v1945
      %v1962 = vpack.c.b16 %v1948, %v1947
      %v1963 = vpack.c.b16 %v1950, %v1949
      %v1964 = vpack.c.b16 %v1952, %v1951
      %v1965 = vpack.c.b16 %v1954, %v1953
      %v1966 = vpack.c.b16 %v1956, %v1955
      %v1967 = vpack.c.b16 %v1958, %v1957
      %v1968 = vpack.c.b16 %v1960, %v1959
      %v1973 = vunpack.c.l.b16 %v1925
      %v1974 = vunpack.c.l.b16 %v1926
      %v1975 = vunpack.c.l.b16 %v1927
      %v1976 = vunpack.c.l.b16 %v1928
      %v1977 = vpack.c.b16 %v1974, %v1973
      %v1978 = vpack.c.b16 %v1976, %v1975
      %v1982 = vsel %vm480, %v1961, 0
      %v1985 = vsel %vm480, %v1962, 0
      %v1988 = vsel %vm480, %v1963, 0
      %v1991 = vsel %vm480, %v1964, 0
      %v1994 = vsel %vm480, %v1965, 0
      %v1997 = vsel %vm480, %v1966, 0
      %v2000 = vsel %vm480, %v1967, 0
      %v2003 = vsel %vm480, %v1968, 0
      %2005 = vmatprep.subr.bf16.mxu0 0
      %2006 = vmatpush1.bf16.msra.mxu0 0
      %2007 = vmatprep.subr.bf16.mxu0 0
      %2008 = vmatpush1.bf16.msra.mxu0 0
      %2009 = vmatprep.subr.bf16.mxu0 0
      %2010 = vmatpush1.bf16.msra.mxu0 0
      %2011 = vmatprep.subr.bf16.mxu0 0
      %2012 = vmatpush1.bf16.msra.mxu0 0
      %2013 = vmatprep.subr.bf16.mxu0 0
      %2014 = vmatpush1.bf16.msra.mxu0 0
      %2015 = vmatprep.subr.bf16.mxu0 0
      %2016 = vmatpush1.bf16.msra.mxu0 0
      %2017 = vmatprep.subr.bf16.mxu0 0
      %2018 = vmatpush1.bf16.msra.mxu0 %v1978
      %2019 = vmatprep.subr.bf16.mxu0 0
      %2020 = vmatpush1.bf16.msra.mxu0 %v1977
      %2021 = vmatprep.subr.bf16.mxu0 0
      %2022 = vmatpush2.bf16.msra.mxu0 0
      %2023 = vmatprep.subr.bf16.mxu0 0
      %2024 = vmatpush2.bf16.msra.mxu0 0
      %2025 = vmatprep.subr.bf16.mxu0 0
      %2026 = vmatpush2.bf16.msra.mxu0 0
      %2027 = vmatprep.subr.bf16.mxu0 0
      %2028 = vmatpush2.bf16.msra.mxu0 0
      %2029 = vmatprep.subr.bf16.mxu0 0
      %2030 = vmatpush2.bf16.msra.mxu0 0
      %2031 = vmatprep.subr.bf16.mxu0 0
      %2032 = vmatpush2.bf16.msra.mxu0 0
      %2033 = vmatprep.subr.bf16.mxu0 0
      %2034 = vmatpush2.bf16.msra.mxu0 0
      %2035 = vmatprep.subr.bf16.mxu0 0
      %2036 = vmatpush2.bf16.msra.mxu0 0
      %2037 = vmatprep.mubr.bf16.mxu0 0
      %2038 = vmatmul.mubr.bf16.gmra.mxu0 %v1982
      %v2039 = vpop.f32.mrf.mxu0
      %v2040 = vadd.f32 0.0, %v2039
      %v2041 = vpop.f32.mrf.mxu0
      %v2042 = vpop.f32.mrf.mxu0
      %v2043 = vadd.f32 0.0, %v2042
      %v2044 = vpop.f32.mrf.mxu0
      %2045 = vmatprep.mubr.bf16.mxu0 0
      %2046 = vmatmul.mubr.bf16.gmra.mxu0 %v1985
      %v2047 = vpop.f32.mrf.mxu0
      %v2048 = vadd.f32 0.0, %v2047
      %v2049 = vpop.f32.mrf.mxu0
      %v2050 = vpop.f32.mrf.mxu0
      %v2051 = vadd.f32 0.0, %v2050
      %v2052 = vpop.f32.mrf.mxu0
      %2053 = vmatprep.mubr.bf16.mxu0 0
      %2054 = vmatmul.mubr.bf16.gmra.mxu0 %v1988
      %v2055 = vpop.f32.mrf.mxu0
      %v2056 = vadd.f32 0.0, %v2055
      %v2057 = vpop.f32.mrf.mxu0
      %v2058 = vpop.f32.mrf.mxu0
      %v2059 = vadd.f32 0.0, %v2058
      %v2060 = vpop.f32.mrf.mxu0
      %2061 = vmatprep.mubr.bf16.mxu0 0
      %2062 = vmatmul.mubr.bf16.gmra.mxu0 %v1991
      %v2063 = vpop.f32.mrf.mxu0
      %v2064 = vadd.f32 0.0, %v2063
      %v2065 = vpop.f32.mrf.mxu0
      %v2066 = vpop.f32.mrf.mxu0
      %v2067 = vadd.f32 0.0, %v2066
      %v2068 = vpop.f32.mrf.mxu0
      %2069 = vmatprep.mubr.bf16.mxu0 0
      %2070 = vmatmul.mubr.bf16.gmra.mxu0 %v1994
      %v2071 = vpop.f32.mrf.mxu0
      %v2072 = vadd.f32 0.0, %v2071
      %v2073 = vpop.f32.mrf.mxu0
      %v2074 = vpop.f32.mrf.mxu0
      %v2075 = vadd.f32 0.0, %v2074
      %v2076 = vpop.f32.mrf.mxu0
      %2077 = vmatprep.mubr.bf16.mxu0 0
      %2078 = vmatmul.mubr.bf16.gmra.mxu0 %v1997
      %v2079 = vpop.f32.mrf.mxu0
      %v2080 = vadd.f32 0.0, %v2079
      %v2081 = vpop.f32.mrf.mxu0
      %v2082 = vpop.f32.mrf.mxu0
      %v2083 = vadd.f32 0.0, %v2082
      %v2084 = vpop.f32.mrf.mxu0
      %2085 = vmatprep.mubr.bf16.mxu0 0
      %2086 = vmatmul.mubr.bf16.gmra.mxu0 %v2000
      %v2087 = vpop.f32.mrf.mxu0
      %v2088 = vadd.f32 0.0, %v2087
      %v2089 = vpop.f32.mrf.mxu0
      %v2090 = vpop.f32.mrf.mxu0
      %v2091 = vadd.f32 0.0, %v2090
      %v2092 = vpop.f32.mrf.mxu0
      %2093 = vmatprep.mubr.bf16.mxu0 0
      %2094 = vmatmul.mubr.bf16.gmra.mxu0 %v2003
      %v2095 = vpop.f32.mrf.mxu0
      %v2096 = vadd.f32 0.0, %v2095
      %v2097 = vpop.f32.mrf.mxu0
      %v2098 = vpop.f32.mrf.mxu0
      %v2099 = vadd.f32 0.0, %v2098
      %v2100 = vpop.f32.mrf.mxu0
      %2101 = vdwg.mxu0
      %v2102 = vadd.f32 %v1891, %v2040
      %v2103 = vadd.f32 %v1892, %v2043
      %v2104 = vadd.f32 %v1893, %v2048
      %v2105 = vadd.f32 %v1894, %v2051
      %v2106 = vadd.f32 %v1895, %v2056
      %v2107 = vadd.f32 %v1896, %v2059
      %v2108 = vadd.f32 %v1897, %v2064
      %v2109 = vadd.f32 %v1898, %v2067
      %v2110 = vadd.f32 %v1899, %v2072
      %v2111 = vadd.f32 %v1900, %v2075
      %v2112 = vadd.f32 %v1901, %v2080
      %v2113 = vadd.f32 %v1902, %v2083
      %v2114 = vadd.f32 %v1903, %v2088
      %v2115 = vadd.f32 %v1904, %v2091
      %v2116 = vadd.f32 %v1905, %v2096
      %v2117 = vadd.f32 %v1906, %v2099
      %v2118 = vld [vmem:[%s1907] sm:$0xf]
      %v2119 = vld [vmem:[%s1907 + $0x4] sm:$0xf]
      %v2120 = vld [vmem:[%s1907 + $0x8] sm:$0x1]
      %v2121 = vld [vmem:[%s1907 + $0xc] sm:$0xf]
      %v2122 = vld [vmem:[%s1907 + $0x10] sm:$0xf]
      %v2123 = vld [vmem:[%s1907 + $0x14] sm:$0x1]
      %v2124 = vld [vmem:[%s1907 + $0x18] sm:$0xf]
      %v2125 = vld [vmem:[%s1907 + $0x1c] sm:$0xf]
      %v2126 = vld [vmem:[%s1907 + $0x20] sm:$0x1]
      %v2127 = vld [vmem:[%s1907 + $0x24] sm:$0xf]
      %v2128 = vld [vmem:[%s1907 + $0x28] sm:$0xf]
      %v2129 = vld [vmem:[%s1907 + $0x2c] sm:$0x1]
      %v2130 = vld [vmem:[%s1907 + $0x30] sm:$0xf]
      %v2131 = vld [vmem:[%s1907 + $0x34] sm:$0xf]
      %v2132 = vld [vmem:[%s1907 + $0x38] sm:$0x1]
      %v2133 = vld [vmem:[%s1907 + $0x3c] sm:$0xf]
      %v2134 = vld [vmem:[%s1907 + $0x40] sm:$0xf]
      %v2135 = vld [vmem:[%s1907 + $0x44] sm:$0x1]
      %v2136 = vld [vmem:[%s1907 + $0x48] sm:$0xf]
      %v2137 = vld [vmem:[%s1907 + $0x4c] sm:$0xf]
      %v2138 = vld [vmem:[%s1907 + $0x50] sm:$0x1]
      %v2139 = vld [vmem:[%s1907 + $0x54] sm:$0xf]
      %v2140 = vld [vmem:[%s1907 + $0x58] sm:$0xf]
      %v2141 = vld [vmem:[%s1907 + $0x5c] sm:$0x1]
      %v2143 = vshrl.u32 %v2118, 16
      %v2145 = vrot.slane %v2143, 4
      %v2146 = vshll.u32 %v2118, 16
      %v2148 = vrot.slane %v2146, 5
      %v2149 = vor.u32 %v2145, %v2148
      %v2150 = vrot.slane %v2149, 4
      %v2152 = vshll.u32 %v2119, 16
      %v2154 = vrot.slane %v2152, 5
      %v2155 = vsel %vm246, %v2150, %v2154
      %v2156 = vshrl.u32 %v2119, 16
      %v2158 = vrot.slane %v2156, 4
      %v2159 = vor.u32 %v2158, %v2154
      %v2160 = vrot.slane %v2159, 4
      %v2162 = vshll.u32 %v2120, 16
      %v2164 = vrot.slane %v2162, 5
      %v2165 = vsel %vm246, %v2160, %v2164
      %v2167 = vshrl.u32 %v2121, 16
      %v2169 = vrot.slane %v2167, 4
      %v2170 = vshll.u32 %v2121, 16
      %v2172 = vrot.slane %v2170, 5
      %v2173 = vor.u32 %v2169, %v2172
      %v2174 = vrot.slane %v2173, 4
      %v2176 = vshll.u32 %v2122, 16
      %v2178 = vrot.slane %v2176, 5
      %v2179 = vsel %vm246, %v2174, %v2178
      %v2180 = vshrl.u32 %v2122, 16
      %v2182 = vrot.slane %v2180, 4
      %v2183 = vor.u32 %v2182, %v2178
      %v2184 = vrot.slane %v2183, 4
      %v2186 = vshll.u32 %v2123, 16
      %v2188 = vrot.slane %v2186, 5
      %v2189 = vsel %vm246, %v2184, %v2188
      %v2191 = vshrl.u32 %v2124, 16
      %v2193 = vrot.slane %v2191, 4
      %v2194 = vshll.u32 %v2124, 16
      %v2196 = vrot.slane %v2194, 5
      %v2197 = vor.u32 %v2193, %v2196
      %v2198 = vrot.slane %v2197, 4
      %v2200 = vshll.u32 %v2125, 16
      %v2202 = vrot.slane %v2200, 5
      %v2203 = vsel %vm246, %v2198, %v2202
      %v2204 = vshrl.u32 %v2125, 16
      %v2206 = vrot.slane %v2204, 4
      %v2207 = vor.u32 %v2206, %v2202
      %v2208 = vrot.slane %v2207, 4
      %v2210 = vshll.u32 %v2126, 16
      %v2212 = vrot.slane %v2210, 5
      %v2213 = vsel %vm246, %v2208, %v2212
      %v2215 = vshrl.u32 %v2127, 16
      %v2217 = vrot.slane %v2215, 4
      %v2218 = vshll.u32 %v2127, 16
      %v2220 = vrot.slane %v2218, 5
      %v2221 = vor.u32 %v2217, %v2220
      %v2222 = vrot.slane %v2221, 4
      %v2224 = vshll.u32 %v2128, 16
      %v2226 = vrot.slane %v2224, 5
      %v2227 = vsel %vm246, %v2222, %v2226
      %v2228 = vshrl.u32 %v2128, 16
      %v2230 = vrot.slane %v2228, 4
      %v2231 = vor.u32 %v2230, %v2226
      %v2232 = vrot.slane %v2231, 4
      %v2234 = vshll.u32 %v2129, 16
      %v2236 = vrot.slane %v2234, 5
      %v2237 = vsel %vm246, %v2232, %v2236
      %v2239 = vshrl.u32 %v2130, 16
      %v2241 = vrot.slane %v2239, 4
      %v2242 = vshll.u32 %v2130, 16
      %v2244 = vrot.slane %v2242, 5
      %v2245 = vor.u32 %v2241, %v2244
      %v2246 = vrot.slane %v2245, 4
      %v2248 = vshll.u32 %v2131, 16
      %v2250 = vrot.slane %v2248, 5
      %v2251 = vsel %vm246, %v2246, %v2250
      %v2252 = vshrl.u32 %v2131, 16
      %v2254 = vrot.slane %v2252, 4
      %v2255 = vor.u32 %v2254, %v2250
      %v2256 = vrot.slane %v2255, 4
      %v2258 = vshll.u32 %v2132, 16
      %v2260 = vrot.slane %v2258, 5
      %v2261 = vsel %vm246, %v2256, %v2260
      %v2263 = vshrl.u32 %v2133, 16
      %v2265 = vrot.slane %v2263, 4
      %v2266 = vshll.u32 %v2133, 16
      %v2268 = vrot.slane %v2266, 5
      %v2269 = vor.u32 %v2265, %v2268
      %v2270 = vrot.slane %v2269, 4
      %v2272 = vshll.u32 %v2134, 16
      %v2274 = vrot.slane %v2272, 5
      %v2275 = vsel %vm246, %v2270, %v2274
      %v2276 = vshrl.u32 %v2134, 16
      %v2278 = vrot.slane %v2276, 4
      %v2279 = vor.u32 %v2278, %v2274
      %v2280 = vrot.slane %v2279, 4
      %v2282 = vshll.u32 %v2135, 16
      %v2284 = vrot.slane %v2282, 5
      %v2285 = vsel %vm246, %v2280, %v2284
      %v2287 = vshrl.u32 %v2136, 16
      %v2289 = vrot.slane %v2287, 4
      %v2290 = vshll.u32 %v2136, 16
      %v2292 = vrot.slane %v2290, 5
      %v2293 = vor.u32 %v2289, %v2292
      %v2294 = vrot.slane %v2293, 4
      %v2296 = vshll.u32 %v2137, 16
      %v2298 = vrot.slane %v2296, 5
      %v2299 = vsel %vm246, %v2294, %v2298
      %v2300 = vshrl.u32 %v2137, 16
      %v2302 = vrot.slane %v2300, 4
      %v2303 = vor.u32 %v2302, %v2298
      %v2304 = vrot.slane %v2303, 4
      %v2306 = vshll.u32 %v2138, 16
      %v2308 = vrot.slane %v2306, 5
      %v2309 = vsel %vm246, %v2304, %v2308
      %v2311 = vshrl.u32 %v2139, 16
      %v2313 = vrot.slane %v2311, 4
      %v2314 = vshll.u32 %v2139, 16
      %v2316 = vrot.slane %v2314, 5
      %v2317 = vor.u32 %v2313, %v2316
      %v2318 = vrot.slane %v2317, 4
      %v2320 = vshll.u32 %v2140, 16
      %v2322 = vrot.slane %v2320, 5
      %v2323 = vsel %vm246, %v2318, %v2322
      %v2324 = vshrl.u32 %v2140, 16
      %v2326 = vrot.slane %v2324, 4
      %v2327 = vor.u32 %v2326, %v2322
      %v2328 = vrot.slane %v2327, 4
      %v2330 = vshll.u32 %v2141, 16
      %v2332 = vrot.slane %v2330, 5
      %v2333 = vsel %vm246, %v2328, %v2332
      %s2334 = scalar_lea.vmem %s1, 112
      %v2335 = vld [vmem:[%s2334] sm:$0xf]
      %v2336 = vld [vmem:[%s2334 + $0x4] sm:$0xf]
      %v2337 = vld [vmem:[%s2334 + $0x8] sm:$0xf]
      %v2338 = vld [vmem:[%s2334 + $0xc] sm:$0xf]
      %v2339 = vunpack.c.l.b16 %v2155
      %v2340 = vunpack.c.l.b16 %v2165
      %v2341 = vunpack.c.l.b16 %v2179
      %v2342 = vunpack.c.l.b16 %v2189
      %v2343 = vunpack.c.l.b16 %v2203
      %v2344 = vunpack.c.l.b16 %v2213
      %v2345 = vunpack.c.l.b16 %v2227
      %v2346 = vunpack.c.l.b16 %v2237
      %v2347 = vunpack.c.l.b16 %v2251
      %v2348 = vunpack.c.l.b16 %v2261
      %v2349 = vunpack.c.l.b16 %v2275
      %v2350 = vunpack.c.l.b16 %v2285
      %v2351 = vunpack.c.l.b16 %v2299
      %v2352 = vunpack.c.l.b16 %v2309
      %v2353 = vunpack.c.l.b16 %v2323
      %v2354 = vunpack.c.l.b16 %v2333
      %v2355 = vpack.c.b16 %v2340, %v2339
      %v2356 = vpack.c.b16 %v2342, %v2341
      %v2357 = vpack.c.b16 %v2344, %v2343
      %v2358 = vpack.c.b16 %v2346, %v2345
      %v2359 = vpack.c.b16 %v2348, %v2347
      %v2360 = vpack.c.b16 %v2350, %v2349
      %v2361 = vpack.c.b16 %v2352, %v2351
      %v2362 = vpack.c.b16 %v2354, %v2353
      %v2367 = vunpack.c.l.b16 %v2335
      %v2368 = vunpack.c.l.b16 %v2336
      %v2369 = vunpack.c.l.b16 %v2337
      %v2370 = vunpack.c.l.b16 %v2338
      %v2371 = vpack.c.b16 %v2368, %v2367
      %v2372 = vpack.c.b16 %v2370, %v2369
      %v2376 = vsel %vm480, %v2355, 0
      %v2379 = vsel %vm480, %v2356, 0
      %v2382 = vsel %vm480, %v2357, 0
      %v2385 = vsel %vm480, %v2358, 0
      %v2388 = vsel %vm480, %v2359, 0
      %v2391 = vsel %vm480, %v2360, 0
      %v2394 = vsel %vm480, %v2361, 0
      %v2397 = vsel %vm480, %v2362, 0
      %2399 = vmatprep.subr.bf16.mxu0 0
      %2400 = vmatpush1.bf16.msra.mxu0 0
      %2401 = vmatprep.subr.bf16.mxu0 0
      %2402 = vmatpush1.bf16.msra.mxu0 0
      %2403 = vmatprep.subr.bf16.mxu0 0
      %2404 = vmatpush1.bf16.msra.mxu0 0
      %2405 = vmatprep.subr.bf16.mxu0 0
      %2406 = vmatpush1.bf16.msra.mxu0 0
      %2407 = vmatprep.subr.bf16.mxu0 0
      %2408 = vmatpush1.bf16.msra.mxu0 0
      %2409 = vmatprep.subr.bf16.mxu0 0
      %2410 = vmatpush1.bf16.msra.mxu0 0
      %2411 = vmatprep.subr.bf16.mxu0 0
      %2412 = vmatpush1.bf16.msra.mxu0 %v2372
      %2413 = vmatprep.subr.bf16.mxu0 0
      %2414 = vmatpush1.bf16.msra.mxu0 %v2371
      %2415 = vmatprep.subr.bf16.mxu0 0
      %2416 = vmatpush2.bf16.msra.mxu0 0
      %2417 = vmatprep.subr.bf16.mxu0 0
      %2418 = vmatpush2.bf16.msra.mxu0 0
      %2419 = vmatprep.subr.bf16.mxu0 0
      %2420 = vmatpush2.bf16.msra.mxu0 0
      %2421 = vmatprep.subr.bf16.mxu0 0
      %2422 = vmatpush2.bf16.msra.mxu0 0
      %2423 = vmatprep.subr.bf16.mxu0 0
      %2424 = vmatpush2.bf16.msra.mxu0 0
      %2425 = vmatprep.subr.bf16.mxu0 0
      %2426 = vmatpush2.bf16.msra.mxu0 0
      %2427 = vmatprep.subr.bf16.mxu0 0
      %2428 = vmatpush2.bf16.msra.mxu0 0
      %2429 = vmatprep.subr.bf16.mxu0 0
      %2430 = vmatpush2.bf16.msra.mxu0 0
      %2431 = vmatprep.mubr.bf16.mxu0 0
      %2432 = vmatmul.mubr.bf16.gmra.mxu0 %v2376
      %v2433 = vpop.f32.mrf.mxu0
      %v2434 = vadd.f32 0.0, %v2433
      %v2435 = vpop.f32.mrf.mxu0
      %v2436 = vpop.f32.mrf.mxu0
      %v2437 = vadd.f32 0.0, %v2436
      %v2438 = vpop.f32.mrf.mxu0
      %2439 = vmatprep.mubr.bf16.mxu0 0
      %2440 = vmatmul.mubr.bf16.gmra.mxu0 %v2379
      %v2441 = vpop.f32.mrf.mxu0
      %v2442 = vadd.f32 0.0, %v2441
      %v2443 = vpop.f32.mrf.mxu0
      %v2444 = vpop.f32.mrf.mxu0
      %v2445 = vadd.f32 0.0, %v2444
      %v2446 = vpop.f32.mrf.mxu0
      %2447 = vmatprep.mubr.bf16.mxu0 0
      %2448 = vmatmul.mubr.bf16.gmra.mxu0 %v2382
      %v2449 = vpop.f32.mrf.mxu0
      %v2450 = vadd.f32 0.0, %v2449
      %v2451 = vpop.f32.mrf.mxu0
      %v2452 = vpop.f32.mrf.mxu0
      %v2453 = vadd.f32 0.0, %v2452
      %v2454 = vpop.f32.mrf.mxu0
      %2455 = vmatprep.mubr.bf16.mxu0 0
      %2456 = vmatmul.mubr.bf16.gmra.mxu0 %v2385
      %v2457 = vpop.f32.mrf.mxu0
      %v2458 = vadd.f32 0.0, %v2457
      %v2459 = vpop.f32.mrf.mxu0
      %v2460 = vpop.f32.mrf.mxu0
      %v2461 = vadd.f32 0.0, %v2460
      %v2462 = vpop.f32.mrf.mxu0
      %2463 = vmatprep.mubr.bf16.mxu0 0
      %2464 = vmatmul.mubr.bf16.gmra.mxu0 %v2388
      %v2465 = vpop.f32.mrf.mxu0
      %v2466 = vadd.f32 0.0, %v2465
      %v2467 = vpop.f32.mrf.mxu0
      %v2468 = vpop.f32.mrf.mxu0
      %v2469 = vadd.f32 0.0, %v2468
      %v2470 = vpop.f32.mrf.mxu0
      %2471 = vmatprep.mubr.bf16.mxu0 0
      %2472 = vmatmul.mubr.bf16.gmra.mxu0 %v2391
      %v2473 = vpop.f32.mrf.mxu0
      %v2474 = vadd.f32 0.0, %v2473
      %v2475 = vpop.f32.mrf.mxu0
      %v2476 = vpop.f32.mrf.mxu0
      %v2477 = vadd.f32 0.0, %v2476
      %v2478 = vpop.f32.mrf.mxu0
      %2479 = vmatprep.mubr.bf16.mxu0 0
      %2480 = vmatmul.mubr.bf16.gmra.mxu0 %v2394
      %v2481 = vpop.f32.mrf.mxu0
      %v2482 = vadd.f32 0.0, %v2481
      %v2483 = vpop.f32.mrf.mxu0
      %v2484 = vpop.f32.mrf.mxu0
      %v2485 = vadd.f32 0.0, %v2484
      %v2486 = vpop.f32.mrf.mxu0
      %2487 = vmatprep.mubr.bf16.mxu0 0
      %2488 = vmatmul.mubr.bf16.gmra.mxu0 %v2397
      %v2489 = vpop.f32.mrf.mxu0
      %v2490 = vadd.f32 0.0, %v2489
      %v2491 = vpop.f32.mrf.mxu0
      %v2492 = vpop.f32.mrf.mxu0
      %v2493 = vadd.f32 0.0, %v2492
      %v2494 = vpop.f32.mrf.mxu0
      %2495 = vdwg.mxu0
      %v2496 = vadd.f32 %v2102, %v2434
      %v2497 = vadd.f32 %v2103, %v2437
      %v2498 = vadd.f32 %v2104, %v2442
      %v2499 = vadd.f32 %v2105, %v2445
      %v2500 = vadd.f32 %v2106, %v2450
      %v2501 = vadd.f32 %v2107, %v2453
      %v2502 = vadd.f32 %v2108, %v2458
      %v2503 = vadd.f32 %v2109, %v2461
      %v2504 = vadd.f32 %v2110, %v2466
      %v2505 = vadd.f32 %v2111, %v2469
      %v2506 = vadd.f32 %v2112, %v2474
      %v2507 = vadd.f32 %v2113, %v2477
      %v2508 = vadd.f32 %v2114, %v2482
      %v2509 = vadd.f32 %v2115, %v2485
      %v2510 = vadd.f32 %v2116, %v2490
      %v2511 = vadd.f32 %v2117, %v2493
      %v2512 = vld [vmem:[%s1907] sm:$0xe]
      %v2513 = vld [vmem:[%s1907 + $0xc] sm:$0xe]
      %v2514 = vld [vmem:[%s1907 + $0x18] sm:$0xe]
      %v2515 = vld [vmem:[%s1907 + $0x24] sm:$0xe]
      %v2516 = vld [vmem:[%s1907 + $0x30] sm:$0xe]
      %v2517 = vld [vmem:[%s1907 + $0x3c] sm:$0xe]
      %v2518 = vld [vmem:[%s1907 + $0x48] sm:$0xe]
      %v2519 = vld [vmem:[%s1907 + $0x54] sm:$0xe]
      %v2544 = vrot.slane %v2512, 5
      %v2545 = vrot.slane %v2544, 4
      %v2546 = vrot.slane %v2119, 5
      %v2547 = vsel %vm801, %v2545, %v2546
      %v2548 = vrot.slane %v2546, 4
      %v2549 = vrot.slane %v2120, 5
      %v2550 = vsel %vm801, %v2548, %v2549
      %v2551 = vrot.slane %v2513, 5
      %v2552 = vrot.slane %v2551, 4
      %v2553 = vrot.slane %v2122, 5
      %v2554 = vsel %vm801, %v2552, %v2553
      %v2555 = vrot.slane %v2553, 4
      %v2556 = vrot.slane %v2123, 5
      %v2557 = vsel %vm801, %v2555, %v2556
      %v2558 = vrot.slane %v2514, 5
      %v2559 = vrot.slane %v2558, 4
      %v2560 = vrot.slane %v2125, 5
      %v2561 = vsel %vm801, %v2559, %v2560
      %v2562 = vrot.slane %v2560, 4
      %v2563 = vrot.slane %v2126, 5
      %v2564 = vsel %vm801, %v2562, %v2563
      %v2565 = vrot.slane %v2515, 5
      %v2566 = vrot.slane %v2565, 4
      %v2567 = vrot.slane %v2128, 5
      %v2568 = vsel %vm801, %v2566, %v2567
      %v2569 = vrot.slane %v2567, 4
      %v2570 = vrot.slane %v2129, 5
      %v2571 = vsel %vm801, %v2569, %v2570
      %v2572 = vrot.slane %v2516, 5
      %v2573 = vrot.slane %v2572, 4
      %v2574 = vrot.slane %v2131, 5
      %v2575 = vsel %vm801, %v2573, %v2574
      %v2576 = vrot.slane %v2574, 4
      %v2577 = vrot.slane %v2132, 5
      %v2578 = vsel %vm801, %v2576, %v2577
      %v2579 = vrot.slane %v2517, 5
      %v2580 = vrot.slane %v2579, 4
      %v2581 = vrot.slane %v2134, 5
      %v2582 = vsel %vm801, %v2580, %v2581
      %v2583 = vrot.slane %v2581, 4
      %v2584 = vrot.slane %v2135, 5
      %v2585 = vsel %vm801, %v2583, %v2584
      %v2586 = vrot.slane %v2518, 5
      %v2587 = vrot.slane %v2586, 4
      %v2588 = vrot.slane %v2137, 5
      %v2589 = vsel %vm801, %v2587, %v2588
      %v2590 = vrot.slane %v2588, 4
      %v2591 = vrot.slane %v2138, 5
      %v2592 = vsel %vm801, %v2590, %v2591
      %v2593 = vrot.slane %v2519, 5
      %v2594 = vrot.slane %v2593, 4
      %v2595 = vrot.slane %v2140, 5
      %v2596 = vsel %vm801, %v2594, %v2595
      %v2597 = vrot.slane %v2595, 4
      %v2598 = vrot.slane %v2141, 5
      %v2599 = vsel %vm801, %v2597, %v2598
      %s2600 = scalar_lea.vmem %s1, 128
      %v2601 = vld [vmem:[%s2600] sm:$0xf]
      %v2602 = vld [vmem:[%s2600 + $0x4] sm:$0xf]
      %v2603 = vld [vmem:[%s2600 + $0x8] sm:$0xf]
      %v2604 = vld [vmem:[%s2600 + $0xc] sm:$0xf]
      %v2605 = vunpack.c.l.b16 %v2547
      %v2606 = vunpack.c.l.b16 %v2550
      %v2607 = vunpack.c.l.b16 %v2554
      %v2608 = vunpack.c.l.b16 %v2557
      %v2609 = vunpack.c.l.b16 %v2561
      %v2610 = vunpack.c.l.b16 %v2564
      %v2611 = vunpack.c.l.b16 %v2568
      %v2612 = vunpack.c.l.b16 %v2571
      %v2613 = vunpack.c.l.b16 %v2575
      %v2614 = vunpack.c.l.b16 %v2578
      %v2615 = vunpack.c.l.b16 %v2582
      %v2616 = vunpack.c.l.b16 %v2585
      %v2617 = vunpack.c.l.b16 %v2589
      %v2618 = vunpack.c.l.b16 %v2592
      %v2619 = vunpack.c.l.b16 %v2596
      %v2620 = vunpack.c.l.b16 %v2599
      %v2621 = vpack.c.b16 %v2606, %v2605
      %v2622 = vpack.c.b16 %v2608, %v2607
      %v2623 = vpack.c.b16 %v2610, %v2609
      %v2624 = vpack.c.b16 %v2612, %v2611
      %v2625 = vpack.c.b16 %v2614, %v2613
      %v2626 = vpack.c.b16 %v2616, %v2615
      %v2627 = vpack.c.b16 %v2618, %v2617
      %v2628 = vpack.c.b16 %v2620, %v2619
      %v2633 = vunpack.c.l.b16 %v2601
      %v2634 = vunpack.c.l.b16 %v2602
      %v2635 = vunpack.c.l.b16 %v2603
      %v2636 = vunpack.c.l.b16 %v2604
      %v2637 = vpack.c.b16 %v2634, %v2633
      %v2638 = vpack.c.b16 %v2636, %v2635
      %v2642 = vsel %vm480, %v2621, 0
      %v2645 = vsel %vm480, %v2622, 0
      %v2648 = vsel %vm480, %v2623, 0
      %v2651 = vsel %vm480, %v2624, 0
      %v2654 = vsel %vm480, %v2625, 0
      %v2657 = vsel %vm480, %v2626, 0
      %v2660 = vsel %vm480, %v2627, 0
      %v2663 = vsel %vm480, %v2628, 0
      %2665 = vmatprep.subr.bf16.mxu0 0
      %2666 = vmatpush1.bf16.msra.mxu0 0
      %2667 = vmatprep.subr.bf16.mxu0 0
      %2668 = vmatpush1.bf16.msra.mxu0 0
      %2669 = vmatprep.subr.bf16.mxu0 0
      %2670 = vmatpush1.bf16.msra.mxu0 0
      %2671 = vmatprep.subr.bf16.mxu0 0
      %2672 = vmatpush1.bf16.msra.mxu0 0
      %2673 = vmatprep.subr.bf16.mxu0 0
      %2674 = vmatpush1.bf16.msra.mxu0 0
      %2675 = vmatprep.subr.bf16.mxu0 0
      %2676 = vmatpush1.bf16.msra.mxu0 0
      %2677 = vmatprep.subr.bf16.mxu0 0
      %2678 = vmatpush1.bf16.msra.mxu0 %v2638
      %2679 = vmatprep.subr.bf16.mxu0 0
      %2680 = vmatpush1.bf16.msra.mxu0 %v2637
      %2681 = vmatprep.subr.bf16.mxu0 0
      %2682 = vmatpush2.bf16.msra.mxu0 0
      %2683 = vmatprep.subr.bf16.mxu0 0
      %2684 = vmatpush2.bf16.msra.mxu0 0
      %2685 = vmatprep.subr.bf16.mxu0 0
      %2686 = vmatpush2.bf16.msra.mxu0 0
      %2687 = vmatprep.subr.bf16.mxu0 0
      %2688 = vmatpush2.bf16.msra.mxu0 0
      %2689 = vmatprep.subr.bf16.mxu0 0
      %2690 = vmatpush2.bf16.msra.mxu0 0
      %2691 = vmatprep.subr.bf16.mxu0 0
      %2692 = vmatpush2.bf16.msra.mxu0 0
      %2693 = vmatprep.subr.bf16.mxu0 0
      %2694 = vmatpush2.bf16.msra.mxu0 0
      %2695 = vmatprep.subr.bf16.mxu0 0
      %2696 = vmatpush2.bf16.msra.mxu0 0
      %2697 = vmatprep.mubr.bf16.mxu0 0
      %2698 = vmatmul.mubr.bf16.gmra.mxu0 %v2642
      %v2699 = vpop.f32.mrf.mxu0
      %v2700 = vadd.f32 0.0, %v2699
      %v2701 = vpop.f32.mrf.mxu0
      %v2702 = vpop.f32.mrf.mxu0
      %v2703 = vadd.f32 0.0, %v2702
      %v2704 = vpop.f32.mrf.mxu0
      %2705 = vmatprep.mubr.bf16.mxu0 0
      %2706 = vmatmul.mubr.bf16.gmra.mxu0 %v2645
      %v2707 = vpop.f32.mrf.mxu0
      %v2708 = vadd.f32 0.0, %v2707
      %v2709 = vpop.f32.mrf.mxu0
      %v2710 = vpop.f32.mrf.mxu0
      %v2711 = vadd.f32 0.0, %v2710
      %v2712 = vpop.f32.mrf.mxu0
      %2713 = vmatprep.mubr.bf16.mxu0 0
      %2714 = vmatmul.mubr.bf16.gmra.mxu0 %v2648
      %v2715 = vpop.f32.mrf.mxu0
      %v2716 = vadd.f32 0.0, %v2715
      %v2717 = vpop.f32.mrf.mxu0
      %v2718 = vpop.f32.mrf.mxu0
      %v2719 = vadd.f32 0.0, %v2718
      %v2720 = vpop.f32.mrf.mxu0
      %2721 = vmatprep.mubr.bf16.mxu0 0
      %2722 = vmatmul.mubr.bf16.gmra.mxu0 %v2651
      %v2723 = vpop.f32.mrf.mxu0
      %v2724 = vadd.f32 0.0, %v2723
      %v2725 = vpop.f32.mrf.mxu0
      %v2726 = vpop.f32.mrf.mxu0
      %v2727 = vadd.f32 0.0, %v2726
      %v2728 = vpop.f32.mrf.mxu0
      %2729 = vmatprep.mubr.bf16.mxu0 0
      %2730 = vmatmul.mubr.bf16.gmra.mxu0 %v2654
      %v2731 = vpop.f32.mrf.mxu0
      %v2732 = vadd.f32 0.0, %v2731
      %v2733 = vpop.f32.mrf.mxu0
      %v2734 = vpop.f32.mrf.mxu0
      %v2735 = vadd.f32 0.0, %v2734
      %v2736 = vpop.f32.mrf.mxu0
      %2737 = vmatprep.mubr.bf16.mxu0 0
      %2738 = vmatmul.mubr.bf16.gmra.mxu0 %v2657
      %v2739 = vpop.f32.mrf.mxu0
      %v2740 = vadd.f32 0.0, %v2739
      %v2741 = vpop.f32.mrf.mxu0
      %v2742 = vpop.f32.mrf.mxu0
      %v2743 = vadd.f32 0.0, %v2742
      %v2744 = vpop.f32.mrf.mxu0
      %2745 = vmatprep.mubr.bf16.mxu0 0
      %2746 = vmatmul.mubr.bf16.gmra.mxu0 %v2660
      %v2747 = vpop.f32.mrf.mxu0
      %v2748 = vadd.f32 0.0, %v2747
      %v2749 = vpop.f32.mrf.mxu0
      %v2750 = vpop.f32.mrf.mxu0
      %v2751 = vadd.f32 0.0, %v2750
      %v2752 = vpop.f32.mrf.mxu0
      %2753 = vmatprep.mubr.bf16.mxu0 0
      %2754 = vmatmul.mubr.bf16.gmra.mxu0 %v2663
      %v2755 = vpop.f32.mrf.mxu0
      %v2756 = vadd.f32 0.0, %v2755
      %v2757 = vpop.f32.mrf.mxu0
      %v2758 = vpop.f32.mrf.mxu0
      %v2759 = vadd.f32 0.0, %v2758
      %v2760 = vpop.f32.mrf.mxu0
      %2761 = vdwg.mxu0
      %v2762 = vadd.f32 %v2496, %v2700
      %v2763 = vadd.f32 %v2497, %v2703
      %v2764 = vadd.f32 %v2498, %v2708
      %v2765 = vadd.f32 %v2499, %v2711
      %v2766 = vadd.f32 %v2500, %v2716
      %v2767 = vadd.f32 %v2501, %v2719
      %v2768 = vadd.f32 %v2502, %v2724
      %v2769 = vadd.f32 %v2503, %v2727
      %v2770 = vadd.f32 %v2504, %v2732
      %v2771 = vadd.f32 %v2505, %v2735
      %v2772 = vadd.f32 %v2506, %v2740
      %v2773 = vadd.f32 %v2507, %v2743
      %v2774 = vadd.f32 %v2508, %v2748
      %v2775 = vadd.f32 %v2509, %v2751
      %v2776 = vadd.f32 %v2510, %v2756
      %v2777 = vadd.f32 %v2511, %v2759
      %v2778 = vpack.c.bf16 %v2763, %v2762
      %v2779 = vpack.c.bf16 %v2765, %v2764
      %v2780 = vpack.c.bf16 %v2767, %v2766
      %v2781 = vpack.c.bf16 %v2769, %v2768
      %v2782 = vpack.c.bf16 %v2771, %v2770
      %v2783 = vpack.c.bf16 %v2773, %v2772
      %v2784 = vpack.c.bf16 %v2775, %v2774
      %v2785 = vpack.c.bf16 %v2777, %v2776
      %v2794 = vunpack.c.l.b16 %v2778
      %v2795 = vunpack.c.h.b16 %v2778
      %v2796 = vunpack.c.l.b16 %v2779
      %v2797 = vunpack.c.h.b16 %v2779
      %v2798 = vunpack.c.l.b16 %v2780
      %v2799 = vunpack.c.h.b16 %v2780
      %v2800 = vunpack.c.l.b16 %v2781
      %v2801 = vunpack.c.h.b16 %v2781
      %v2802 = vunpack.c.l.b16 %v2782
      %v2803 = vunpack.c.h.b16 %v2782
      %v2804 = vunpack.c.l.b16 %v2783
      %v2805 = vunpack.c.h.b16 %v2783
      %v2806 = vunpack.c.l.b16 %v2784
      %v2807 = vunpack.c.h.b16 %v2784
      %v2808 = vunpack.c.l.b16 %v2785
      %v2809 = vunpack.c.h.b16 %v2785
      %v2810 = vpack.c.b16 %v2794, %v2794
      %v2811 = vpack.c.b16 %v2795, %v2795
      %v2812 = vpack.c.b16 %v2796, %v2796
      %v2813 = vpack.c.b16 %v2797, %v2797
      %v2814 = vpack.c.b16 %v2798, %v2798
      %v2815 = vpack.c.b16 %v2799, %v2799
      %v2816 = vpack.c.b16 %v2800, %v2800
      %v2817 = vpack.c.b16 %v2801, %v2801
      %v2818 = vpack.c.b16 %v2802, %v2802
      %v2819 = vpack.c.b16 %v2803, %v2803
      %v2820 = vpack.c.b16 %v2804, %v2804
      %v2821 = vpack.c.b16 %v2805, %v2805
      %v2822 = vpack.c.b16 %v2806, %v2806
      %v2823 = vpack.c.b16 %v2807, %v2807
      %v2824 = vpack.c.b16 %v2808, %v2808
      %v2825 = vpack.c.b16 %v2809, %v2809
      %vm2842 = vcmask 257024
      %2843 = vst.msk [vmem:[%s208] sm:$0xf] %vm2842, %v2810
      %2844 = vst.msk [vmem:[%s208 + $0x4] sm:$0xf] %vm2842, %v2811
      %2845 = vst.msk [vmem:[%s208 + $0x8] sm:$0xf] %vm2842, %v2812
      %2846 = vst.msk [vmem:[%s208 + $0xc] sm:$0xf] %vm2842, %v2813
      %2847 = vst.msk [vmem:[%s208 + $0x10] sm:$0xf] %vm2842, %v2814
      %2848 = vst.msk [vmem:[%s208 + $0x14] sm:$0xf] %vm2842, %v2815
      %2849 = vst.msk [vmem:[%s208 + $0x18] sm:$0xf] %vm2842, %v2816
      %2850 = vst.msk [vmem:[%s208 + $0x1c] sm:$0xf] %vm2842, %v2817
      %2851 = vst.msk [vmem:[%s208 + $0x20] sm:$0xf] %vm2842, %v2818
      %2852 = vst.msk [vmem:[%s208 + $0x24] sm:$0xf] %vm2842, %v2819
      %2853 = vst.msk [vmem:[%s208 + $0x28] sm:$0xf] %vm2842, %v2820
      %2854 = vst.msk [vmem:[%s208 + $0x2c] sm:$0xf] %vm2842, %v2821
      %2855 = vst.msk [vmem:[%s208 + $0x30] sm:$0xf] %vm2842, %v2822
      %2856 = vst.msk [vmem:[%s208 + $0x34] sm:$0xf] %vm2842, %v2823
      %2857 = vst.msk [vmem:[%s208 + $0x38] sm:$0xf] %vm2842, %v2824
      %2858 = vst.msk [vmem:[%s208 + $0x3c] sm:$0xf] %vm2842, %v2825
      %v2859 = vsel %vm480, %v2762, 0.0
      %v2860 = vsel %vm480, %v2763, 0.0
      %v2861 = vadd.f32 %v2859, %v2860
      %v2862 = vsel %vm480, %v2764, 0.0
      %v2863 = vadd.f32 %v2861, %v2862
      %v2864 = vsel %vm480, %v2765, 0.0
      %v2865 = vadd.f32 %v2863, %v2864
      %v2866 = vsel %vm480, %v2766, 0.0
      %v2867 = vadd.f32 %v2865, %v2866
      %v2868 = vsel %vm480, %v2767, 0.0
      %v2869 = vadd.f32 %v2867, %v2868
      %v2870 = vsel %vm480, %v2768, 0.0
      %v2871 = vadd.f32 %v2869, %v2870
      %v2872 = vsel %vm480, %v2769, 0.0
      %v2873 = vadd.f32 %v2871, %v2872
      %v2874 = vsel %vm480, %v2770, 0.0
      %v2875 = vadd.f32 %v2873, %v2874
      %v2876 = vsel %vm480, %v2771, 0.0
      %v2877 = vadd.f32 %v2875, %v2876
      %v2878 = vsel %vm480, %v2772, 0.0
      %v2879 = vadd.f32 %v2877, %v2878
      %v2880 = vsel %vm480, %v2773, 0.0
      %v2881 = vadd.f32 %v2879, %v2880
      %v2882 = vsel %vm480, %v2774, 0.0
      %v2883 = vadd.f32 %v2881, %v2882
      %v2884 = vsel %vm480, %v2775, 0.0
      %v2885 = vadd.f32 %v2883, %v2884
      %v2886 = vsel %vm480, %v2776, 0.0
      %v2887 = vadd.f32 %v2885, %v2886
      %v2888 = vsel %vm480, %v2777, 0.0
      %v2889 = vadd.f32 %v2887, %v2888
      %v2890 = vrot.slane %v2889, 4
      %v2891 = vadd.f32 %v2889, %v2890
      %v2892 = vrot.slane %v2891, 2
      %v2893 = vadd.f32 %v2891, %v2892
      %v2894 = vrot.slane %v2893, 1
      %v2895 = vadd.f32 %v2893, %v2894
      %v2896 = vadd.f32 %v2895, 0.0
      %v2897 = vmul.f32 %v2762, %v2762
      %v2898 = vmul.f32 %v2763, %v2763
      %v2899 = vmul.f32 %v2764, %v2764
      %v2900 = vmul.f32 %v2765, %v2765
      %v2901 = vmul.f32 %v2766, %v2766
      %v2902 = vmul.f32 %v2767, %v2767
      %v2903 = vmul.f32 %v2768, %v2768
      %v2904 = vmul.f32 %v2769, %v2769
      %v2905 = vmul.f32 %v2770, %v2770
      %v2906 = vmul.f32 %v2771, %v2771
      %v2907 = vmul.f32 %v2772, %v2772
      %v2908 = vmul.f32 %v2773, %v2773
      %v2909 = vmul.f32 %v2774, %v2774
      %v2910 = vmul.f32 %v2775, %v2775
      %v2911 = vmul.f32 %v2776, %v2776
      %v2912 = vmul.f32 %v2777, %v2777
      %v2913 = vsel %vm480, %v2897, 0.0
      %v2914 = vsel %vm480, %v2898, 0.0
      %v2915 = vadd.f32 %v2913, %v2914
      %v2916 = vsel %vm480, %v2899, 0.0
      %v2917 = vadd.f32 %v2915, %v2916
      %v2918 = vsel %vm480, %v2900, 0.0
      %v2919 = vadd.f32 %v2917, %v2918
      %v2920 = vsel %vm480, %v2901, 0.0
      %v2921 = vadd.f32 %v2919, %v2920
      %v2922 = vsel %vm480, %v2902, 0.0
      %v2923 = vadd.f32 %v2921, %v2922
      %v2924 = vsel %vm480, %v2903, 0.0
      %v2925 = vadd.f32 %v2923, %v2924
      %v2926 = vsel %vm480, %v2904, 0.0
      %v2927 = vadd.f32 %v2925, %v2926
      %v2928 = vsel %vm480, %v2905, 0.0
      %v2929 = vadd.f32 %v2927, %v2928
      %v2930 = vsel %vm480, %v2906, 0.0
      %v2931 = vadd.f32 %v2929, %v2930
      %v2932 = vsel %vm480, %v2907, 0.0
      %v2933 = vadd.f32 %v2931, %v2932
      %v2934 = vsel %vm480, %v2908, 0.0
      %v2935 = vadd.f32 %v2933, %v2934
      %v2936 = vsel %vm480, %v2909, 0.0
      %v2937 = vadd.f32 %v2935, %v2936
      %v2938 = vsel %vm480, %v2910, 0.0
      %v2939 = vadd.f32 %v2937, %v2938
      %v2940 = vsel %vm480, %v2911, 0.0
      %v2941 = vadd.f32 %v2939, %v2940
      %v2942 = vsel %vm480, %v2912, 0.0
      %v2943 = vadd.f32 %v2941, %v2942
      %v2944 = vrot.slane %v2943, 4
      %v2945 = vadd.f32 %v2943, %v2944
      %v2946 = vrot.slane %v2945, 2
      %v2947 = vadd.f32 %v2945, %v2946
      %v2948 = vrot.slane %v2947, 1
      %v2949 = vadd.f32 %v2947, %v2948
      %v2950 = vadd.f32 %v2949, 0.0
      %s2951 = scalar_lea.vmem %s203, 96
      %v2952 = vld [vmem:[%s2951] sm:$0xf]
      %v2953 = vld [vmem:[%s2951 + $0x4] sm:$0xf]
      %v2954 = vld [vmem:[%s2951 + $0xc] sm:$0xf]
      %v2955 = vld [vmem:[%s2951 + $0x10] sm:$0xf]
      %v2956 = vld [vmem:[%s2951 + $0x18] sm:$0xf]
      %v2957 = vld [vmem:[%s2951 + $0x1c] sm:$0xf]
      %v2958 = vld [vmem:[%s2951 + $0x24] sm:$0xf]
      %v2959 = vld [vmem:[%s2951 + $0x28] sm:$0xf]
      %v2960 = vld [vmem:[%s2951 + $0x30] sm:$0xf]
      %v2961 = vld [vmem:[%s2951 + $0x34] sm:$0xf]
      %v2962 = vld [vmem:[%s2951 + $0x3c] sm:$0xf]
      %v2963 = vld [vmem:[%s2951 + $0x40] sm:$0xf]
      %v2964 = vld [vmem:[%s2951 + $0x48] sm:$0xf]
      %v2965 = vld [vmem:[%s2951 + $0x4c] sm:$0xf]
      %v2966 = vld [vmem:[%s2951 + $0x54] sm:$0xf]
      %v2967 = vld [vmem:[%s2951 + $0x58] sm:$0xf]
      %v2968 = vld [vmem:[%s1] sm:$0xf]
      %v2969 = vld [vmem:[%s1 + $0x4] sm:$0xf]
      %v2970 = vld [vmem:[%s1 + $0x8] sm:$0xf]
      %v2971 = vld [vmem:[%s1 + $0xc] sm:$0xf]
      %v2972 = vld [vmem:[%s2951 + $0x8] sm:$0x1]
      %v2973 = vld [vmem:[%s2951 + $0x14] sm:$0x1]
      %v2974 = vld [vmem:[%s2951 + $0x20] sm:$0x1]
      %v2975 = vld [vmem:[%s2951 + $0x2c] sm:$0x1]
      %v2976 = vld [vmem:[%s2951 + $0x38] sm:$0x1]
      %v2977 = vld [vmem:[%s2951 + $0x44] sm:$0x1]
      %v2978 = vld [vmem:[%s2951 + $0x50] sm:$0x1]
      %v2979 = vld [vmem:[%s2951 + $0x5c] sm:$0x1]
      %v2981 = vshrl.u32 %v2952, 16
      %v2983 = vrot.slane %v2981, 4
      %v2984 = vshll.u32 %v2952, 16
      %v2986 = vrot.slane %v2984, 5
      %v2987 = vor.u32 %v2983, %v2986
      %v2988 = vrot.slane %v2987, 4
      %v2990 = vshll.u32 %v2953, 16
      %v2992 = vrot.slane %v2990, 5
      %v2993 = vsel %vm246, %v2988, %v2992
      %v2994 = vshrl.u32 %v2953, 16
      %v2996 = vrot.slane %v2994, 4
      %v2997 = vor.u32 %v2996, %v2992
      %v2998 = vrot.slane %v2997, 4
      %v3000 = vshll.u32 %v2972, 16
      %v3002 = vrot.slane %v3000, 5
      %v3003 = vsel %vm246, %v2998, %v3002
      %v3005 = vshrl.u32 %v2954, 16
      %v3007 = vrot.slane %v3005, 4
      %v3008 = vshll.u32 %v2954, 16
      %v3010 = vrot.slane %v3008, 5
      %v3011 = vor.u32 %v3007, %v3010
      %v3012 = vrot.slane %v3011, 4
      %v3014 = vshll.u32 %v2955, 16
      %v3016 = vrot.slane %v3014, 5
      %v3017 = vsel %vm246, %v3012, %v3016
      %v3018 = vshrl.u32 %v2955, 16
      %v3020 = vrot.slane %v3018, 4
      %v3021 = vor.u32 %v3020, %v3016
      %v3022 = vrot.slane %v3021, 4
      %v3024 = vshll.u32 %v2973, 16
      %v3026 = vrot.slane %v3024, 5
      %v3027 = vsel %vm246, %v3022, %v3026
      %v3029 = vshrl.u32 %v2956, 16
      %v3031 = vrot.slane %v3029, 4
      %v3032 = vshll.u32 %v2956, 16
      %v3034 = vrot.slane %v3032, 5
      %v3035 = vor.u32 %v3031, %v3034
      %v3036 = vrot.slane %v3035, 4
      %v3038 = vshll.u32 %v2957, 16
      %v3040 = vrot.slane %v3038, 5
      %v3041 = vsel %vm246, %v3036, %v3040
      %v3042 = vshrl.u32 %v2957, 16
      %v3044 = vrot.slane %v3042, 4
      %v3045 = vor.u32 %v3044, %v3040
      %v3046 = vrot.slane %v3045, 4
      %v3048 = vshll.u32 %v2974, 16
      %v3050 = vrot.slane %v3048, 5
      %v3051 = vsel %vm246, %v3046, %v3050
      %v3053 = vshrl.u32 %v2958, 16
      %v3055 = vrot.slane %v3053, 4
      %v3056 = vshll.u32 %v2958, 16
      %v3058 = vrot.slane %v3056, 5
      %v3059 = vor.u32 %v3055, %v3058
      %v3060 = vrot.slane %v3059, 4
      %v3062 = vshll.u32 %v2959, 16
      %v3064 = vrot.slane %v3062, 5
      %v3065 = vsel %vm246, %v3060, %v3064
      %v3066 = vshrl.u32 %v2959, 16
      %v3068 = vrot.slane %v3066, 4
      %v3069 = vor.u32 %v3068, %v3064
      %v3070 = vrot.slane %v3069, 4
      %v3072 = vshll.u32 %v2975, 16
      %v3074 = vrot.slane %v3072, 5
      %v3075 = vsel %vm246, %v3070, %v3074
      %v3077 = vshrl.u32 %v2960, 16
      %v3079 = vrot.slane %v3077, 4
      %v3080 = vshll.u32 %v2960, 16
      %v3082 = vrot.slane %v3080, 5
      %v3083 = vor.u32 %v3079, %v3082
      %v3084 = vrot.slane %v3083, 4
      %v3086 = vshll.u32 %v2961, 16
      %v3088 = vrot.slane %v3086, 5
      %v3089 = vsel %vm246, %v3084, %v3088
      %v3090 = vshrl.u32 %v2961, 16
      %v3092 = vrot.slane %v3090, 4
      %v3093 = vor.u32 %v3092, %v3088
      %v3094 = vrot.slane %v3093, 4
      %v3096 = vshll.u32 %v2976, 16
      %v3098 = vrot.slane %v3096, 5
      %v3099 = vsel %vm246, %v3094, %v3098
      %v3101 = vshrl.u32 %v2962, 16
      %v3103 = vrot.slane %v3101, 4
      %v3104 = vshll.u32 %v2962, 16
      %v3106 = vrot.slane %v3104, 5
      %v3107 = vor.u32 %v3103, %v3106
      %v3108 = vrot.slane %v3107, 4
      %v3110 = vshll.u32 %v2963, 16
      %v3112 = vrot.slane %v3110, 5
      %v3113 = vsel %vm246, %v3108, %v3112
      %v3114 = vshrl.u32 %v2963, 16
      %v3116 = vrot.slane %v3114, 4
      %v3117 = vor.u32 %v3116, %v3112
      %v3118 = vrot.slane %v3117, 4
      %v3120 = vshll.u32 %v2977, 16
      %v3122 = vrot.slane %v3120, 5
      %v3123 = vsel %vm246, %v3118, %v3122
      %v3125 = vshrl.u32 %v2964, 16
      %v3127 = vrot.slane %v3125, 4
      %v3128 = vshll.u32 %v2964, 16
      %v3130 = vrot.slane %v3128, 5
      %v3131 = vor.u32 %v3127, %v3130
      %v3132 = vrot.slane %v3131, 4
      %v3134 = vshll.u32 %v2965, 16
      %v3136 = vrot.slane %v3134, 5
      %v3137 = vsel %vm246, %v3132, %v3136
      %v3138 = vshrl.u32 %v2965, 16
      %v3140 = vrot.slane %v3138, 4
      %v3141 = vor.u32 %v3140, %v3136
      %v3142 = vrot.slane %v3141, 4
      %v3144 = vshll.u32 %v2978, 16
      %v3146 = vrot.slane %v3144, 5
      %v3147 = vsel %vm246, %v3142, %v3146
      %v3149 = vshrl.u32 %v2966, 16
      %v3151 = vrot.slane %v3149, 4
      %v3152 = vshll.u32 %v2966, 16
      %v3154 = vrot.slane %v3152, 5
      %v3155 = vor.u32 %v3151, %v3154
      %v3156 = vrot.slane %v3155, 4
      %v3158 = vshll.u32 %v2967, 16
      %v3160 = vrot.slane %v3158, 5
      %v3161 = vsel %vm246, %v3156, %v3160
      %v3162 = vshrl.u32 %v2967, 16
      %v3164 = vrot.slane %v3162, 4
      %v3165 = vor.u32 %v3164, %v3160
      %v3166 = vrot.slane %v3165, 4
      %v3168 = vshll.u32 %v2979, 16
      %v3170 = vrot.slane %v3168, 5
      %v3171 = vsel %vm246, %v3166, %v3170
      %v3172 = vld [vmem:[%s439] sm:$0xf]
      %v3173 = vld [vmem:[%s439 + $0x4] sm:$0xf]
      %v3174 = vld [vmem:[%s439 + $0x8] sm:$0xf]
      %v3175 = vld [vmem:[%s439 + $0xc] sm:$0xf]
      %v3176 = vunpack.c.l.b16 %v2993
      %v3177 = vunpack.c.l.b16 %v3003
      %v3178 = vunpack.c.l.b16 %v3017
      %v3179 = vunpack.c.l.b16 %v3027
      %v3180 = vunpack.c.l.b16 %v3041
      %v3181 = vunpack.c.l.b16 %v3051
      %v3182 = vunpack.c.l.b16 %v3065
      %v3183 = vunpack.c.l.b16 %v3075
      %v3184 = vunpack.c.l.b16 %v3089
      %v3185 = vunpack.c.l.b16 %v3099
      %v3186 = vunpack.c.l.b16 %v3113
      %v3187 = vunpack.c.l.b16 %v3123
      %v3188 = vunpack.c.l.b16 %v3137
      %v3189 = vunpack.c.l.b16 %v3147
      %v3190 = vunpack.c.l.b16 %v3161
      %v3191 = vunpack.c.l.b16 %v3171
      %v3192 = vpack.c.b16 %v3177, %v3176
      %v3193 = vpack.c.b16 %v3179, %v3178
      %v3194 = vpack.c.b16 %v3181, %v3180
      %v3195 = vpack.c.b16 %v3183, %v3182
      %v3196 = vpack.c.b16 %v3185, %v3184
      %v3197 = vpack.c.b16 %v3187, %v3186
      %v3198 = vpack.c.b16 %v3189, %v3188
      %v3199 = vpack.c.b16 %v3191, %v3190
      %v3204 = vunpack.c.l.b16 %v3172
      %v3205 = vunpack.c.l.b16 %v3173
      %v3206 = vunpack.c.l.b16 %v3174
      %v3207 = vunpack.c.l.b16 %v3175
      %v3208 = vpack.c.b16 %v3205, %v3204
      %v3209 = vpack.c.b16 %v3207, %v3206
      %v3213 = vsel %vm480, %v3192, 0
      %v3216 = vsel %vm480, %v3193, 0
      %v3219 = vsel %vm480, %v3194, 0
      %v3222 = vsel %vm480, %v3195, 0
      %v3225 = vsel %vm480, %v3196, 0
      %v3228 = vsel %vm480, %v3197, 0
      %v3231 = vsel %vm480, %v3198, 0
      %v3234 = vsel %vm480, %v3199, 0
      %3236 = vmatprep.subr.bf16.mxu0 0
      %3237 = vmatpush1.bf16.msra.mxu0 0
      %3238 = vmatprep.subr.bf16.mxu0 0
      %3239 = vmatpush1.bf16.msra.mxu0 0
      %3240 = vmatprep.subr.bf16.mxu0 0
      %3241 = vmatpush1.bf16.msra.mxu0 0
      %3242 = vmatprep.subr.bf16.mxu0 0
      %3243 = vmatpush1.bf16.msra.mxu0 0
      %3244 = vmatprep.subr.bf16.mxu0 0
      %3245 = vmatpush1.bf16.msra.mxu0 0
      %3246 = vmatprep.subr.bf16.mxu0 0
      %3247 = vmatpush1.bf16.msra.mxu0 0
      %3248 = vmatprep.subr.bf16.mxu0 0
      %3249 = vmatpush1.bf16.msra.mxu0 %v3209
      %3250 = vmatprep.subr.bf16.mxu0 0
      %3251 = vmatpush1.bf16.msra.mxu0 %v3208
      %3252 = vmatprep.subr.bf16.mxu0 0
      %3253 = vmatpush2.bf16.msra.mxu0 0
      %3254 = vmatprep.subr.bf16.mxu0 0
      %3255 = vmatpush2.bf16.msra.mxu0 0
      %3256 = vmatprep.subr.bf16.mxu0 0
      %3257 = vmatpush2.bf16.msra.mxu0 0
      %3258 = vmatprep.subr.bf16.mxu0 0
      %3259 = vmatpush2.bf16.msra.mxu0 0
      %3260 = vmatprep.subr.bf16.mxu0 0
      %3261 = vmatpush2.bf16.msra.mxu0 0
      %3262 = vmatprep.subr.bf16.mxu0 0
      %3263 = vmatpush2.bf16.msra.mxu0 0
      %3264 = vmatprep.subr.bf16.mxu0 0
      %3265 = vmatpush2.bf16.msra.mxu0 0
      %3266 = vmatprep.subr.bf16.mxu0 0
      %3267 = vmatpush2.bf16.msra.mxu0 0
      %3268 = vmatprep.mubr.bf16.mxu0 0
      %3269 = vmatmul.mubr.bf16.gmra.mxu0 %v3213
      %v3270 = vpop.f32.mrf.mxu0
      %v3271 = vadd.f32 0.0, %v3270
      %v3272 = vpop.f32.mrf.mxu0
      %v3273 = vpop.f32.mrf.mxu0
      %v3274 = vadd.f32 0.0, %v3273
      %v3275 = vpop.f32.mrf.mxu0
      %3276 = vmatprep.mubr.bf16.mxu0 0
      %3277 = vmatmul.mubr.bf16.gmra.mxu0 %v3216
      %v3278 = vpop.f32.mrf.mxu0
      %v3279 = vadd.f32 0.0, %v3278
      %v3280 = vpop.f32.mrf.mxu0
      %v3281 = vpop.f32.mrf.mxu0
      %v3282 = vadd.f32 0.0, %v3281
      %v3283 = vpop.f32.mrf.mxu0
      %3284 = vmatprep.mubr.bf16.mxu0 0
      %3285 = vmatmul.mubr.bf16.gmra.mxu0 %v3219
      %v3286 = vpop.f32.mrf.mxu0
      %v3287 = vadd.f32 0.0, %v3286
      %v3288 = vpop.f32.mrf.mxu0
      %v3289 = vpop.f32.mrf.mxu0
      %v3290 = vadd.f32 0.0, %v3289
      %v3291 = vpop.f32.mrf.mxu0
      %3292 = vmatprep.mubr.bf16.mxu0 0
      %3293 = vmatmul.mubr.bf16.gmra.mxu0 %v3222
      %v3294 = vpop.f32.mrf.mxu0
      %v3295 = vadd.f32 0.0, %v3294
      %v3296 = vpop.f32.mrf.mxu0
      %v3297 = vpop.f32.mrf.mxu0
      %v3298 = vadd.f32 0.0, %v3297
      %v3299 = vpop.f32.mrf.mxu0
      %3300 = vmatprep.mubr.bf16.mxu0 0
      %3301 = vmatmul.mubr.bf16.gmra.mxu0 %v3225
      %v3302 = vpop.f32.mrf.mxu0
      %v3303 = vadd.f32 0.0, %v3302
      %v3304 = vpop.f32.mrf.mxu0
      %v3305 = vpop.f32.mrf.mxu0
      %v3306 = vadd.f32 0.0, %v3305
      %v3307 = vpop.f32.mrf.mxu0
      %3308 = vmatprep.mubr.bf16.mxu0 0
      %3309 = vmatmul.mubr.bf16.gmra.mxu0 %v3228
      %v3310 = vpop.f32.mrf.mxu0
      %v3311 = vadd.f32 0.0, %v3310
      %v3312 = vpop.f32.mrf.mxu0
      %v3313 = vpop.f32.mrf.mxu0
      %v3314 = vadd.f32 0.0, %v3313
      %v3315 = vpop.f32.mrf.mxu0
      %3316 = vmatprep.mubr.bf16.mxu0 0
      %3317 = vmatmul.mubr.bf16.gmra.mxu0 %v3231
      %v3318 = vpop.f32.mrf.mxu0
      %v3319 = vadd.f32 0.0, %v3318
      %v3320 = vpop.f32.mrf.mxu0
      %v3321 = vpop.f32.mrf.mxu0
      %v3322 = vadd.f32 0.0, %v3321
      %v3323 = vpop.f32.mrf.mxu0
      %3324 = vmatprep.mubr.bf16.mxu0 0
      %3325 = vmatmul.mubr.bf16.gmra.mxu0 %v3234
      %v3326 = vpop.f32.mrf.mxu0
      %v3327 = vadd.f32 0.0, %v3326
      %v3328 = vpop.f32.mrf.mxu0
      %v3329 = vpop.f32.mrf.mxu0
      %v3330 = vadd.f32 0.0, %v3329
      %v3331 = vpop.f32.mrf.mxu0
      %3332 = vdwg.mxu0
      %v3349 = vunpack.c.l.b16 %v2952
      %v3350 = vunpack.c.l.b16 %v2953
      %v3351 = vunpack.c.l.b16 %v2954
      %v3352 = vunpack.c.l.b16 %v2955
      %v3353 = vunpack.c.l.b16 %v2956
      %v3354 = vunpack.c.l.b16 %v2957
      %v3355 = vunpack.c.l.b16 %v2958
      %v3356 = vunpack.c.l.b16 %v2959
      %v3357 = vunpack.c.l.b16 %v2960
      %v3358 = vunpack.c.l.b16 %v2961
      %v3359 = vunpack.c.l.b16 %v2962
      %v3360 = vunpack.c.l.b16 %v2963
      %v3361 = vunpack.c.l.b16 %v2964
      %v3362 = vunpack.c.l.b16 %v2965
      %v3363 = vunpack.c.l.b16 %v2966
      %v3364 = vunpack.c.l.b16 %v2967
      %v3365 = vpack.c.b16 %v3350, %v3349
      %v3366 = vpack.c.b16 %v3352, %v3351
      %v3367 = vpack.c.b16 %v3354, %v3353
      %v3368 = vpack.c.b16 %v3356, %v3355
      %v3369 = vpack.c.b16 %v3358, %v3357
      %v3370 = vpack.c.b16 %v3360, %v3359
      %v3371 = vpack.c.b16 %v3362, %v3361
      %v3372 = vpack.c.b16 %v3364, %v3363
      %v3377 = vunpack.c.l.b16 %v2968
      %v3378 = vunpack.c.l.b16 %v2969
      %v3379 = vunpack.c.l.b16 %v2970
      %v3380 = vunpack.c.l.b16 %v2971
      %v3381 = vpack.c.b16 %v3378, %v3377
      %v3382 = vpack.c.b16 %v3380, %v3379
      %v3386 = vsel %vm480, %v3365, 0
      %v3389 = vsel %vm480, %v3366, 0
      %v3392 = vsel %vm480, %v3367, 0
      %v3395 = vsel %vm480, %v3368, 0
      %v3398 = vsel %vm480, %v3369, 0
      %v3401 = vsel %vm480, %v3370, 0
      %v3404 = vsel %vm480, %v3371, 0
      %v3407 = vsel %vm480, %v3372, 0
      %3409 = vmatprep.subr.bf16.mxu0 0
      %3410 = vmatpush1.bf16.msra.mxu0 0
      %3411 = vmatprep.subr.bf16.mxu0 0
      %3412 = vmatpush1.bf16.msra.mxu0 0
      %3413 = vmatprep.subr.bf16.mxu0 0
      %3414 = vmatpush1.bf16.msra.mxu0 0
      %3415 = vmatprep.subr.bf16.mxu0 0
      %3416 = vmatpush1.bf16.msra.mxu0 0
      %3417 = vmatprep.subr.bf16.mxu0 0
      %3418 = vmatpush1.bf16.msra.mxu0 0
      %3419 = vmatprep.subr.bf16.mxu0 0
      %3420 = vmatpush1.bf16.msra.mxu0 0
      %3421 = vmatprep.subr.bf16.mxu0 0
      %3422 = vmatpush1.bf16.msra.mxu0 %v3382
      %3423 = vmatprep.subr.bf16.mxu0 0
      %3424 = vmatpush1.bf16.msra.mxu0 %v3381
      %3425 = vmatprep.subr.bf16.mxu0 0
      %3426 = vmatpush2.bf16.msra.mxu0 0
      %3427 = vmatprep.subr.bf16.mxu0 0
      %3428 = vmatpush2.bf16.msra.mxu0 0
      %3429 = vmatprep.subr.bf16.mxu0 0
      %3430 = vmatpush2.bf16.msra.mxu0 0
      %3431 = vmatprep.subr.bf16.mxu0 0
      %3432 = vmatpush2.bf16.msra.mxu0 0
      %3433 = vmatprep.subr.bf16.mxu0 0
      %3434 = vmatpush2.bf16.msra.mxu0 0
      %3435 = vmatprep.subr.bf16.mxu0 0
      %3436 = vmatpush2.bf16.msra.mxu0 0
      %3437 = vmatprep.subr.bf16.mxu0 0
      %3438 = vmatpush2.bf16.msra.mxu0 0
      %3439 = vmatprep.subr.bf16.mxu0 0
      %3440 = vmatpush2.bf16.msra.mxu0 0
      %3441 = vmatprep.mubr.bf16.mxu0 0
      %3442 = vmatmul.mubr.bf16.gmra.mxu0 %v3386
      %v3443 = vpop.f32.mrf.mxu0
      %v3444 = vadd.f32 %v3271, %v3443
      %v3445 = vpop.f32.mrf.mxu0
      %v3446 = vpop.f32.mrf.mxu0
      %v3447 = vadd.f32 %v3274, %v3446
      %v3448 = vpop.f32.mrf.mxu0
      %3449 = vmatprep.mubr.bf16.mxu0 0
      %3450 = vmatmul.mubr.bf16.gmra.mxu0 %v3389
      %v3451 = vpop.f32.mrf.mxu0
      %v3452 = vadd.f32 %v3279, %v3451
      %v3453 = vpop.f32.mrf.mxu0
      %v3454 = vpop.f32.mrf.mxu0
      %v3455 = vadd.f32 %v3282, %v3454
      %v3456 = vpop.f32.mrf.mxu0
      %3457 = vmatprep.mubr.bf16.mxu0 0
      %3458 = vmatmul.mubr.bf16.gmra.mxu0 %v3392
      %v3459 = vpop.f32.mrf.mxu0
      %v3460 = vadd.f32 %v3287, %v3459
      %v3461 = vpop.f32.mrf.mxu0
      %v3462 = vpop.f32.mrf.mxu0
      %v3463 = vadd.f32 %v3290, %v3462
      %v3464 = vpop.f32.mrf.mxu0
      %3465 = vmatprep.mubr.bf16.mxu0 0
      %3466 = vmatmul.mubr.bf16.gmra.mxu0 %v3395
      %v3467 = vpop.f32.mrf.mxu0
      %v3468 = vadd.f32 %v3295, %v3467
      %v3469 = vpop.f32.mrf.mxu0
      %v3470 = vpop.f32.mrf.mxu0
      %v3471 = vadd.f32 %v3298, %v3470
      %v3472 = vpop.f32.mrf.mxu0
      %3473 = vmatprep.mubr.bf16.mxu0 0
      %3474 = vmatmul.mubr.bf16.gmra.mxu0 %v3398
      %v3475 = vpop.f32.mrf.mxu0
      %v3476 = vadd.f32 %v3303, %v3475
      %v3477 = vpop.f32.mrf.mxu0
      %v3478 = vpop.f32.mrf.mxu0
      %v3479 = vadd.f32 %v3306, %v3478
      %v3480 = vpop.f32.mrf.mxu0
      %3481 = vmatprep.mubr.bf16.mxu0 0
      %3482 = vmatmul.mubr.bf16.gmra.mxu0 %v3401
      %v3483 = vpop.f32.mrf.mxu0
      %v3484 = vadd.f32 %v3311, %v3483
      %v3485 = vpop.f32.mrf.mxu0
      %v3486 = vpop.f32.mrf.mxu0
      %v3487 = vadd.f32 %v3314, %v3486
      %v3488 = vpop.f32.mrf.mxu0
      %3489 = vmatprep.mubr.bf16.mxu0 0
      %3490 = vmatmul.mubr.bf16.gmra.mxu0 %v3404
      %v3491 = vpop.f32.mrf.mxu0
      %v3492 = vadd.f32 %v3319, %v3491
      %v3493 = vpop.f32.mrf.mxu0
      %v3494 = vpop.f32.mrf.mxu0
      %v3495 = vadd.f32 %v3322, %v3494
      %v3496 = vpop.f32.mrf.mxu0
      %3497 = vmatprep.mubr.bf16.mxu0 0
      %3498 = vmatmul.mubr.bf16.gmra.mxu0 %v3407
      %v3499 = vpop.f32.mrf.mxu0
      %v3500 = vadd.f32 %v3327, %v3499
      %v3501 = vpop.f32.mrf.mxu0
      %v3502 = vpop.f32.mrf.mxu0
      %v3503 = vadd.f32 %v3330, %v3502
      %v3504 = vpop.f32.mrf.mxu0
      %3505 = vdwg.mxu0
      %v3506 = vld [vmem:[%s2951] sm:$0xe]
      %v3507 = vld [vmem:[%s2951 + $0xc] sm:$0xe]
      %v3508 = vld [vmem:[%s2951 + $0x18] sm:$0xe]
      %v3509 = vld [vmem:[%s2951 + $0x24] sm:$0xe]
      %v3510 = vld [vmem:[%s2951 + $0x30] sm:$0xe]
      %v3511 = vld [vmem:[%s2951 + $0x3c] sm:$0xe]
      %v3512 = vld [vmem:[%s2951 + $0x48] sm:$0xe]
      %v3513 = vld [vmem:[%s2951 + $0x54] sm:$0xe]
      %v3530 = vrot.slane %v3506, 5
      %v3531 = vrot.slane %v3530, 4
      %v3532 = vrot.slane %v2953, 5
      %v3533 = vsel %vm801, %v3531, %v3532
      %v3534 = vrot.slane %v3532, 4
      %v3535 = vrot.slane %v2972, 5
      %v3536 = vsel %vm801, %v3534, %v3535
      %v3537 = vrot.slane %v3507, 5
      %v3538 = vrot.slane %v3537, 4
      %v3539 = vrot.slane %v2955, 5
      %v3540 = vsel %vm801, %v3538, %v3539
      %v3541 = vrot.slane %v3539, 4
      %v3542 = vrot.slane %v2973, 5
      %v3543 = vsel %vm801, %v3541, %v3542
      %v3544 = vrot.slane %v3508, 5
      %v3545 = vrot.slane %v3544, 4
      %v3546 = vrot.slane %v2957, 5
      %v3547 = vsel %vm801, %v3545, %v3546
      %v3548 = vrot.slane %v3546, 4
      %v3549 = vrot.slane %v2974, 5
      %v3550 = vsel %vm801, %v3548, %v3549
      %v3551 = vrot.slane %v3509, 5
      %v3552 = vrot.slane %v3551, 4
      %v3553 = vrot.slane %v2959, 5
      %v3554 = vsel %vm801, %v3552, %v3553
      %v3555 = vrot.slane %v3553, 4
      %v3556 = vrot.slane %v2975, 5
      %v3557 = vsel %vm801, %v3555, %v3556
      %v3558 = vrot.slane %v3510, 5
      %v3559 = vrot.slane %v3558, 4
      %v3560 = vrot.slane %v2961, 5
      %v3561 = vsel %vm801, %v3559, %v3560
      %v3562 = vrot.slane %v3560, 4
      %v3563 = vrot.slane %v2976, 5
      %v3564 = vsel %vm801, %v3562, %v3563
      %v3565 = vrot.slane %v3511, 5
      %v3566 = vrot.slane %v3565, 4
      %v3567 = vrot.slane %v2963, 5
      %v3568 = vsel %vm801, %v3566, %v3567
      %v3569 = vrot.slane %v3567, 4
      %v3570 = vrot.slane %v2977, 5
      %v3571 = vsel %vm801, %v3569, %v3570
      %v3572 = vrot.slane %v3512, 5
      %v3573 = vrot.slane %v3572, 4
      %v3574 = vrot.slane %v2965, 5
      %v3575 = vsel %vm801, %v3573, %v3574
      %v3576 = vrot.slane %v3574, 4
      %v3577 = vrot.slane %v2978, 5
      %v3578 = vsel %vm801, %v3576, %v3577
      %v3579 = vrot.slane %v3513, 5
      %v3580 = vrot.slane %v3579, 4
      %v3581 = vrot.slane %v2967, 5
      %v3582 = vsel %vm801, %v3580, %v3581
      %v3583 = vrot.slane %v3581, 4
      %v3584 = vrot.slane %v2979, 5
      %v3585 = vsel %vm801, %v3583, %v3584
      %v3586 = vld [vmem:[%s858] sm:$0xf]
      %v3587 = vld [vmem:[%s858 + $0x4] sm:$0xf]
      %v3588 = vld [vmem:[%s858 + $0x8] sm:$0xf]
      %v3589 = vld [vmem:[%s858 + $0xc] sm:$0xf]
      %v3590 = vunpack.c.l.b16 %v3533
      %v3591 = vunpack.c.l.b16 %v3536
      %v3592 = vunpack.c.l.b16 %v3540
      %v3593 = vunpack.c.l.b16 %v3543
      %v3594 = vunpack.c.l.b16 %v3547
      %v3595 = vunpack.c.l.b16 %v3550
      %v3596 = vunpack.c.l.b16 %v3554
      %v3597 = vunpack.c.l.b16 %v3557
      %v3598 = vunpack.c.l.b16 %v3561
      %v3599 = vunpack.c.l.b16 %v3564
      %v3600 = vunpack.c.l.b16 %v3568
      %v3601 = vunpack.c.l.b16 %v3571
      %v3602 = vunpack.c.l.b16 %v3575
      %v3603 = vunpack.c.l.b16 %v3578
      %v3604 = vunpack.c.l.b16 %v3582
      %v3605 = vunpack.c.l.b16 %v3585
      %v3606 = vpack.c.b16 %v3591, %v3590
      %v3607 = vpack.c.b16 %v3593, %v3592
      %v3608 = vpack.c.b16 %v3595, %v3594
      %v3609 = vpack.c.b16 %v3597, %v3596
      %v3610 = vpack.c.b16 %v3599, %v3598
      %v3611 = vpack.c.b16 %v3601, %v3600
      %v3612 = vpack.c.b16 %v3603, %v3602
      %v3613 = vpack.c.b16 %v3605, %v3604
      %v3618 = vunpack.c.l.b16 %v3586
      %v3619 = vunpack.c.l.b16 %v3587
      %v3620 = vunpack.c.l.b16 %v3588
      %v3621 = vunpack.c.l.b16 %v3589
      %v3622 = vpack.c.b16 %v3619, %v3618
      %v3623 = vpack.c.b16 %v3621, %v3620
      %v3627 = vsel %vm480, %v3606, 0
      %v3630 = vsel %vm480, %v3607, 0
      %v3633 = vsel %vm480, %v3608, 0
      %v3636 = vsel %vm480, %v3609, 0
      %v3639 = vsel %vm480, %v3610, 0
      %v3642 = vsel %vm480, %v3611, 0
      %v3645 = vsel %vm480, %v3612, 0
      %v3648 = vsel %vm480, %v3613, 0
      %3650 = vmatprep.subr.bf16.mxu0 0
      %3651 = vmatpush1.bf16.msra.mxu0 0
      %3652 = vmatprep.subr.bf16.mxu0 0
      %3653 = vmatpush1.bf16.msra.mxu0 0
      %3654 = vmatprep.subr.bf16.mxu0 0
      %3655 = vmatpush1.bf16.msra.mxu0 0
      %3656 = vmatprep.subr.bf16.mxu0 0
      %3657 = vmatpush1.bf16.msra.mxu0 0
      %3658 = vmatprep.subr.bf16.mxu0 0
      %3659 = vmatpush1.bf16.msra.mxu0 0
      %3660 = vmatprep.subr.bf16.mxu0 0
      %3661 = vmatpush1.bf16.msra.mxu0 0
      %3662 = vmatprep.subr.bf16.mxu0 0
      %3663 = vmatpush1.bf16.msra.mxu0 %v3623
      %3664 = vmatprep.subr.bf16.mxu0 0
      %3665 = vmatpush1.bf16.msra.mxu0 %v3622
      %3666 = vmatprep.subr.bf16.mxu0 0
      %3667 = vmatpush2.bf16.msra.mxu0 0
      %3668 = vmatprep.subr.bf16.mxu0 0
      %3669 = vmatpush2.bf16.msra.mxu0 0
      %3670 = vmatprep.subr.bf16.mxu0 0
      %3671 = vmatpush2.bf16.msra.mxu0 0
      %3672 = vmatprep.subr.bf16.mxu0 0
      %3673 = vmatpush2.bf16.msra.mxu0 0
      %3674 = vmatprep.subr.bf16.mxu0 0
      %3675 = vmatpush2.bf16.msra.mxu0 0
      %3676 = vmatprep.subr.bf16.mxu0 0
      %3677 = vmatpush2.bf16.msra.mxu0 0
      %3678 = vmatprep.subr.bf16.mxu0 0
      %3679 = vmatpush2.bf16.msra.mxu0 0
      %3680 = vmatprep.subr.bf16.mxu0 0
      %3681 = vmatpush2.bf16.msra.mxu0 0
      %3682 = vmatprep.mubr.bf16.mxu0 0
      %3683 = vmatmul.mubr.bf16.gmra.mxu0 %v3627
      %v3684 = vpop.f32.mrf.mxu0
      %v3685 = vadd.f32 0.0, %v3684
      %v3686 = vpop.f32.mrf.mxu0
      %v3687 = vpop.f32.mrf.mxu0
      %v3688 = vadd.f32 0.0, %v3687
      %v3689 = vpop.f32.mrf.mxu0
      %3690 = vmatprep.mubr.bf16.mxu0 0
      %3691 = vmatmul.mubr.bf16.gmra.mxu0 %v3630
      %v3692 = vpop.f32.mrf.mxu0
      %v3693 = vadd.f32 0.0, %v3692
      %v3694 = vpop.f32.mrf.mxu0
      %v3695 = vpop.f32.mrf.mxu0
      %v3696 = vadd.f32 0.0, %v3695
      %v3697 = vpop.f32.mrf.mxu0
      %3698 = vmatprep.mubr.bf16.mxu0 0
      %3699 = vmatmul.mubr.bf16.gmra.mxu0 %v3633
      %v3700 = vpop.f32.mrf.mxu0
      %v3701 = vadd.f32 0.0, %v3700
      %v3702 = vpop.f32.mrf.mxu0
      %v3703 = vpop.f32.mrf.mxu0
      %v3704 = vadd.f32 0.0, %v3703
      %v3705 = vpop.f32.mrf.mxu0
      %3706 = vmatprep.mubr.bf16.mxu0 0
      %3707 = vmatmul.mubr.bf16.gmra.mxu0 %v3636
      %v3708 = vpop.f32.mrf.mxu0
      %v3709 = vadd.f32 0.0, %v3708
      %v3710 = vpop.f32.mrf.mxu0
      %v3711 = vpop.f32.mrf.mxu0
      %v3712 = vadd.f32 0.0, %v3711
      %v3713 = vpop.f32.mrf.mxu0
      %3714 = vmatprep.mubr.bf16.mxu0 0
      %3715 = vmatmul.mubr.bf16.gmra.mxu0 %v3639
      %v3716 = vpop.f32.mrf.mxu0
      %v3717 = vadd.f32 0.0, %v3716
      %v3718 = vpop.f32.mrf.mxu0
      %v3719 = vpop.f32.mrf.mxu0
      %v3720 = vadd.f32 0.0, %v3719
      %v3721 = vpop.f32.mrf.mxu0
      %3722 = vmatprep.mubr.bf16.mxu0 0
      %3723 = vmatmul.mubr.bf16.gmra.mxu0 %v3642
      %v3724 = vpop.f32.mrf.mxu0
      %v3725 = vadd.f32 0.0, %v3724
      %v3726 = vpop.f32.mrf.mxu0
      %v3727 = vpop.f32.mrf.mxu0
      %v3728 = vadd.f32 0.0, %v3727
      %v3729 = vpop.f32.mrf.mxu0
      %3730 = vmatprep.mubr.bf16.mxu0 0
      %3731 = vmatmul.mubr.bf16.gmra.mxu0 %v3645
      %v3732 = vpop.f32.mrf.mxu0
      %v3733 = vadd.f32 0.0, %v3732
      %v3734 = vpop.f32.mrf.mxu0
      %v3735 = vpop.f32.mrf.mxu0
      %v3736 = vadd.f32 0.0, %v3735
      %v3737 = vpop.f32.mrf.mxu0
      %3738 = vmatprep.mubr.bf16.mxu0 0
      %3739 = vmatmul.mubr.bf16.gmra.mxu0 %v3648
      %v3740 = vpop.f32.mrf.mxu0
      %v3741 = vadd.f32 0.0, %v3740
      %v3742 = vpop.f32.mrf.mxu0
      %v3743 = vpop.f32.mrf.mxu0
      %v3744 = vadd.f32 0.0, %v3743
      %v3745 = vpop.f32.mrf.mxu0
      %3746 = vdwg.mxu0
      %v3747 = vadd.f32 %v3444, %v3685
      %v3748 = vadd.f32 %v3447, %v3688
      %v3749 = vadd.f32 %v3452, %v3693
      %v3750 = vadd.f32 %v3455, %v3696
      %v3751 = vadd.f32 %v3460, %v3701
      %v3752 = vadd.f32 %v3463, %v3704
      %v3753 = vadd.f32 %v3468, %v3709
      %v3754 = vadd.f32 %v3471, %v3712
      %v3755 = vadd.f32 %v3476, %v3717
      %v3756 = vadd.f32 %v3479, %v3720
      %v3757 = vadd.f32 %v3484, %v3725
      %v3758 = vadd.f32 %v3487, %v3728
      %v3759 = vadd.f32 %v3492, %v3733
      %v3760 = vadd.f32 %v3495, %v3736
      %v3761 = vadd.f32 %v3500, %v3741
      %v3762 = vadd.f32 %v3503, %v3744
      %s3763 = scalar_lea.vmem %s203, 108
      %v3764 = vld [vmem:[%s3763] sm:$0xf]
      %v3765 = vld [vmem:[%s3763 + $0x4] sm:$0xf]
      %v3766 = vld [vmem:[%s3763 + $0xc] sm:$0xf]
      %v3767 = vld [vmem:[%s3763 + $0x10] sm:$0xf]
      %v3768 = vld [vmem:[%s3763 + $0x18] sm:$0xf]
      %v3769 = vld [vmem:[%s3763 + $0x1c] sm:$0xf]
      %v3770 = vld [vmem:[%s3763 + $0x24] sm:$0xf]
      %v3771 = vld [vmem:[%s3763 + $0x28] sm:$0xf]
      %v3772 = vld [vmem:[%s3763 + $0x30] sm:$0xf]
      %v3773 = vld [vmem:[%s3763 + $0x34] sm:$0xf]
      %v3774 = vld [vmem:[%s3763 + $0x3c] sm:$0xf]
      %v3775 = vld [vmem:[%s3763 + $0x40] sm:$0xf]
      %v3776 = vld [vmem:[%s3763 + $0x48] sm:$0xf]
      %v3777 = vld [vmem:[%s3763 + $0x4c] sm:$0xf]
      %v3778 = vld [vmem:[%s3763 + $0x54] sm:$0xf]
      %v3779 = vld [vmem:[%s3763 + $0x58] sm:$0xf]
      %v3780 = vld [vmem:[%s1053] sm:$0xf]
      %v3781 = vld [vmem:[%s1053 + $0x4] sm:$0xf]
      %v3782 = vld [vmem:[%s1053 + $0x8] sm:$0xf]
      %v3783 = vld [vmem:[%s1053 + $0xc] sm:$0xf]
      %v3800 = vunpack.c.l.b16 %v3764
      %v3801 = vunpack.c.l.b16 %v3765
      %v3802 = vunpack.c.l.b16 %v3766
      %v3803 = vunpack.c.l.b16 %v3767
      %v3804 = vunpack.c.l.b16 %v3768
      %v3805 = vunpack.c.l.b16 %v3769
      %v3806 = vunpack.c.l.b16 %v3770
      %v3807 = vunpack.c.l.b16 %v3771
      %v3808 = vunpack.c.l.b16 %v3772
      %v3809 = vunpack.c.l.b16 %v3773
      %v3810 = vunpack.c.l.b16 %v3774
      %v3811 = vunpack.c.l.b16 %v3775
      %v3812 = vunpack.c.l.b16 %v3776
      %v3813 = vunpack.c.l.b16 %v3777
      %v3814 = vunpack.c.l.b16 %v3778
      %v3815 = vunpack.c.l.b16 %v3779
      %v3816 = vpack.c.b16 %v3801, %v3800
      %v3817 = vpack.c.b16 %v3803, %v3802
      %v3818 = vpack.c.b16 %v3805, %v3804
      %v3819 = vpack.c.b16 %v3807, %v3806
      %v3820 = vpack.c.b16 %v3809, %v3808
      %v3821 = vpack.c.b16 %v3811, %v3810
      %v3822 = vpack.c.b16 %v3813, %v3812
      %v3823 = vpack.c.b16 %v3815, %v3814
      %v3828 = vunpack.c.l.b16 %v3780
      %v3829 = vunpack.c.l.b16 %v3781
      %v3830 = vunpack.c.l.b16 %v3782
      %v3831 = vunpack.c.l.b16 %v3783
      %v3832 = vpack.c.b16 %v3829, %v3828
      %v3833 = vpack.c.b16 %v3831, %v3830
      %v3837 = vsel %vm480, %v3816, 0
      %v3840 = vsel %vm480, %v3817, 0
      %v3843 = vsel %vm480, %v3818, 0
      %v3846 = vsel %vm480, %v3819, 0
      %v3849 = vsel %vm480, %v3820, 0
      %v3852 = vsel %vm480, %v3821, 0
      %v3855 = vsel %vm480, %v3822, 0
      %v3858 = vsel %vm480, %v3823, 0
      %3860 = vmatprep.subr.bf16.mxu0 0
      %3861 = vmatpush1.bf16.msra.mxu0 0
      %3862 = vmatprep.subr.bf16.mxu0 0
      %3863 = vmatpush1.bf16.msra.mxu0 0
      %3864 = vmatprep.subr.bf16.mxu0 0
      %3865 = vmatpush1.bf16.msra.mxu0 0
      %3866 = vmatprep.subr.bf16.mxu0 0
      %3867 = vmatpush1.bf16.msra.mxu0 0
      %3868 = vmatprep.subr.bf16.mxu0 0
      %3869 = vmatpush1.bf16.msra.mxu0 0
      %3870 = vmatprep.subr.bf16.mxu0 0
      %3871 = vmatpush1.bf16.msra.mxu0 0
      %3872 = vmatprep.subr.bf16.mxu0 0
      %3873 = vmatpush1.bf16.msra.mxu0 %v3833
      %3874 = vmatprep.subr.bf16.mxu0 0
      %3875 = vmatpush1.bf16.msra.mxu0 %v3832
      %3876 = vmatprep.subr.bf16.mxu0 0
      %3877 = vmatpush2.bf16.msra.mxu0 0
      %3878 = vmatprep.subr.bf16.mxu0 0
      %3879 = vmatpush2.bf16.msra.mxu0 0
      %3880 = vmatprep.subr.bf16.mxu0 0
      %3881 = vmatpush2.bf16.msra.mxu0 0
      %3882 = vmatprep.subr.bf16.mxu0 0
      %3883 = vmatpush2.bf16.msra.mxu0 0
      %3884 = vmatprep.subr.bf16.mxu0 0
      %3885 = vmatpush2.bf16.msra.mxu0 0
      %3886 = vmatprep.subr.bf16.mxu0 0
      %3887 = vmatpush2.bf16.msra.mxu0 0
      %3888 = vmatprep.subr.bf16.mxu0 0
      %3889 = vmatpush2.bf16.msra.mxu0 0
      %3890 = vmatprep.subr.bf16.mxu0 0
      %3891 = vmatpush2.bf16.msra.mxu0 0
      %3892 = vmatprep.mubr.bf16.mxu0 0
      %3893 = vmatmul.mubr.bf16.gmra.mxu0 %v3837
      %v3894 = vpop.f32.mrf.mxu0
      %v3895 = vadd.f32 0.0, %v3894
      %v3896 = vpop.f32.mrf.mxu0
      %v3897 = vpop.f32.mrf.mxu0
      %v3898 = vadd.f32 0.0, %v3897
      %v3899 = vpop.f32.mrf.mxu0
      %3900 = vmatprep.mubr.bf16.mxu0 0
      %3901 = vmatmul.mubr.bf16.gmra.mxu0 %v3840
      %v3902 = vpop.f32.mrf.mxu0
      %v3903 = vadd.f32 0.0, %v3902
      %v3904 = vpop.f32.mrf.mxu0
      %v3905 = vpop.f32.mrf.mxu0
      %v3906 = vadd.f32 0.0, %v3905
      %v3907 = vpop.f32.mrf.mxu0
      %3908 = vmatprep.mubr.bf16.mxu0 0
      %3909 = vmatmul.mubr.bf16.gmra.mxu0 %v3843
      %v3910 = vpop.f32.mrf.mxu0
      %v3911 = vadd.f32 0.0, %v3910
      %v3912 = vpop.f32.mrf.mxu0
      %v3913 = vpop.f32.mrf.mxu0
      %v3914 = vadd.f32 0.0, %v3913
      %v3915 = vpop.f32.mrf.mxu0
      %3916 = vmatprep.mubr.bf16.mxu0 0
      %3917 = vmatmul.mubr.bf16.gmra.mxu0 %v3846
      %v3918 = vpop.f32.mrf.mxu0
      %v3919 = vadd.f32 0.0, %v3918
      %v3920 = vpop.f32.mrf.mxu0
      %v3921 = vpop.f32.mrf.mxu0
      %v3922 = vadd.f32 0.0, %v3921
      %v3923 = vpop.f32.mrf.mxu0
      %3924 = vmatprep.mubr.bf16.mxu0 0
      %3925 = vmatmul.mubr.bf16.gmra.mxu0 %v3849
      %v3926 = vpop.f32.mrf.mxu0
      %v3927 = vadd.f32 0.0, %v3926
      %v3928 = vpop.f32.mrf.mxu0
      %v3929 = vpop.f32.mrf.mxu0
      %v3930 = vadd.f32 0.0, %v3929
      %v3931 = vpop.f32.mrf.mxu0
      %3932 = vmatprep.mubr.bf16.mxu0 0
      %3933 = vmatmul.mubr.bf16.gmra.mxu0 %v3852
      %v3934 = vpop.f32.mrf.mxu0
      %v3935 = vadd.f32 0.0, %v3934
      %v3936 = vpop.f32.mrf.mxu0
      %v3937 = vpop.f32.mrf.mxu0
      %v3938 = vadd.f32 0.0, %v3937
      %v3939 = vpop.f32.mrf.mxu0
      %3940 = vmatprep.mubr.bf16.mxu0 0
      %3941 = vmatmul.mubr.bf16.gmra.mxu0 %v3855
      %v3942 = vpop.f32.mrf.mxu0
      %v3943 = vadd.f32 0.0, %v3942
      %v3944 = vpop.f32.mrf.mxu0
      %v3945 = vpop.f32.mrf.mxu0
      %v3946 = vadd.f32 0.0, %v3945
      %v3947 = vpop.f32.mrf.mxu0
      %3948 = vmatprep.mubr.bf16.mxu0 0
      %3949 = vmatmul.mubr.bf16.gmra.mxu0 %v3858
      %v3950 = vpop.f32.mrf.mxu0
      %v3951 = vadd.f32 0.0, %v3950
      %v3952 = vpop.f32.mrf.mxu0
      %v3953 = vpop.f32.mrf.mxu0
      %v3954 = vadd.f32 0.0, %v3953
      %v3955 = vpop.f32.mrf.mxu0
      %3956 = vdwg.mxu0
      %v3957 = vadd.f32 %v3747, %v3895
      %v3958 = vadd.f32 %v3748, %v3898
      %v3959 = vadd.f32 %v3749, %v3903
      %v3960 = vadd.f32 %v3750, %v3906
      %v3961 = vadd.f32 %v3751, %v3911
      %v3962 = vadd.f32 %v3752, %v3914
      %v3963 = vadd.f32 %v3753, %v3919
      %v3964 = vadd.f32 %v3754, %v3922
      %v3965 = vadd.f32 %v3755, %v3927
      %v3966 = vadd.f32 %v3756, %v3930
      %v3967 = vadd.f32 %v3757, %v3935
      %v3968 = vadd.f32 %v3758, %v3938
      %v3969 = vadd.f32 %v3759, %v3943
      %v3970 = vadd.f32 %v3760, %v3946
      %v3971 = vadd.f32 %v3761, %v3951
      %v3972 = vadd.f32 %v3762, %v3954
      %v3973 = vld [vmem:[%s3763] sm:$0xf]
      %v3974 = vld [vmem:[%s3763 + $0x4] sm:$0xf]
      %v3975 = vld [vmem:[%s3763 + $0x8] sm:$0x1]
      %v3976 = vld [vmem:[%s3763 + $0xc] sm:$0xf]
      %v3977 = vld [vmem:[%s3763 + $0x10] sm:$0xf]
      %v3978 = vld [vmem:[%s3763 + $0x14] sm:$0x1]
      %v3979 = vld [vmem:[%s3763 + $0x18] sm:$0xf]
      %v3980 = vld [vmem:[%s3763 + $0x1c] sm:$0xf]
      %v3981 = vld [vmem:[%s3763 + $0x20] sm:$0x1]
      %v3982 = vld [vmem:[%s3763 + $0x24] sm:$0xf]
      %v3983 = vld [vmem:[%s3763 + $0x28] sm:$0xf]
      %v3984 = vld [vmem:[%s3763 + $0x2c] sm:$0x1]
      %v3985 = vld [vmem:[%s3763 + $0x30] sm:$0xf]
      %v3986 = vld [vmem:[%s3763 + $0x34] sm:$0xf]
      %v3987 = vld [vmem:[%s3763 + $0x38] sm:$0x1]
      %v3988 = vld [vmem:[%s3763 + $0x3c] sm:$0xf]
      %v3989 = vld [vmem:[%s3763 + $0x40] sm:$0xf]
      %v3990 = vld [vmem:[%s3763 + $0x44] sm:$0x1]
      %v3991 = vld [vmem:[%s3763 + $0x48] sm:$0xf]
      %v3992 = vld [vmem:[%s3763 + $0x4c] sm:$0xf]
      %v3993 = vld [vmem:[%s3763 + $0x50] sm:$0x1]
      %v3994 = vld [vmem:[%s3763 + $0x54] sm:$0xf]
      %v3995 = vld [vmem:[%s3763 + $0x58] sm:$0xf]
      %v3996 = vld [vmem:[%s3763 + $0x5c] sm:$0x1]
      %v3998 = vshrl.u32 %v3973, 16
      %v4000 = vrot.slane %v3998, 4
      %v4001 = vshll.u32 %v3973, 16
      %v4003 = vrot.slane %v4001, 5
      %v4004 = vor.u32 %v4000, %v4003
      %v4005 = vrot.slane %v4004, 4
      %v4007 = vshll.u32 %v3974, 16
      %v4009 = vrot.slane %v4007, 5
      %v4010 = vsel %vm246, %v4005, %v4009
      %v4011 = vshrl.u32 %v3974, 16
      %v4013 = vrot.slane %v4011, 4
      %v4014 = vor.u32 %v4013, %v4009
      %v4015 = vrot.slane %v4014, 4
      %v4017 = vshll.u32 %v3975, 16
      %v4019 = vrot.slane %v4017, 5
      %v4020 = vsel %vm246, %v4015, %v4019
      %v4022 = vshrl.u32 %v3976, 16
      %v4024 = vrot.slane %v4022, 4
      %v4025 = vshll.u32 %v3976, 16
      %v4027 = vrot.slane %v4025, 5
      %v4028 = vor.u32 %v4024, %v4027
      %v4029 = vrot.slane %v4028, 4
      %v4031 = vshll.u32 %v3977, 16
      %v4033 = vrot.slane %v4031, 5
      %v4034 = vsel %vm246, %v4029, %v4033
      %v4035 = vshrl.u32 %v3977, 16
      %v4037 = vrot.slane %v4035, 4
      %v4038 = vor.u32 %v4037, %v4033
      %v4039 = vrot.slane %v4038, 4
      %v4041 = vshll.u32 %v3978, 16
      %v4043 = vrot.slane %v4041, 5
      %v4044 = vsel %vm246, %v4039, %v4043
      %v4046 = vshrl.u32 %v3979, 16
      %v4048 = vrot.slane %v4046, 4
      %v4049 = vshll.u32 %v3979, 16
      %v4051 = vrot.slane %v4049, 5
      %v4052 = vor.u32 %v4048, %v4051
      %v4053 = vrot.slane %v4052, 4
      %v4055 = vshll.u32 %v3980, 16
      %v4057 = vrot.slane %v4055, 5
      %v4058 = vsel %vm246, %v4053, %v4057
      %v4059 = vshrl.u32 %v3980, 16
      %v4061 = vrot.slane %v4059, 4
      %v4062 = vor.u32 %v4061, %v4057
      %v4063 = vrot.slane %v4062, 4
      %v4065 = vshll.u32 %v3981, 16
      %v4067 = vrot.slane %v4065, 5
      %v4068 = vsel %vm246, %v4063, %v4067
      %v4070 = vshrl.u32 %v3982, 16
      %v4072 = vrot.slane %v4070, 4
      %v4073 = vshll.u32 %v3982, 16
      %v4075 = vrot.slane %v4073, 5
      %v4076 = vor.u32 %v4072, %v4075
      %v4077 = vrot.slane %v4076, 4
      %v4079 = vshll.u32 %v3983, 16
      %v4081 = vrot.slane %v4079, 5
      %v4082 = vsel %vm246, %v4077, %v4081
      %v4083 = vshrl.u32 %v3983, 16
      %v4085 = vrot.slane %v4083, 4
      %v4086 = vor.u32 %v4085, %v4081
      %v4087 = vrot.slane %v4086, 4
      %v4089 = vshll.u32 %v3984, 16
      %v4091 = vrot.slane %v4089, 5
      %v4092 = vsel %vm246, %v4087, %v4091
      %v4094 = vshrl.u32 %v3985, 16
      %v4096 = vrot.slane %v4094, 4
      %v4097 = vshll.u32 %v3985, 16
      %v4099 = vrot.slane %v4097, 5
      %v4100 = vor.u32 %v4096, %v4099
      %v4101 = vrot.slane %v4100, 4
      %v4103 = vshll.u32 %v3986, 16
      %v4105 = vrot.slane %v4103, 5
      %v4106 = vsel %vm246, %v4101, %v4105
      %v4107 = vshrl.u32 %v3986, 16
      %v4109 = vrot.slane %v4107, 4
      %v4110 = vor.u32 %v4109, %v4105
      %v4111 = vrot.slane %v4110, 4
      %v4113 = vshll.u32 %v3987, 16
      %v4115 = vrot.slane %v4113, 5
      %v4116 = vsel %vm246, %v4111, %v4115
      %v4118 = vshrl.u32 %v3988, 16
      %v4120 = vrot.slane %v4118, 4
      %v4121 = vshll.u32 %v3988, 16
      %v4123 = vrot.slane %v4121, 5
      %v4124 = vor.u32 %v4120, %v4123
      %v4125 = vrot.slane %v4124, 4
      %v4127 = vshll.u32 %v3989, 16
      %v4129 = vrot.slane %v4127, 5
      %v4130 = vsel %vm246, %v4125, %v4129
      %v4131 = vshrl.u32 %v3989, 16
      %v4133 = vrot.slane %v4131, 4
      %v4134 = vor.u32 %v4133, %v4129
      %v4135 = vrot.slane %v4134, 4
      %v4137 = vshll.u32 %v3990, 16
      %v4139 = vrot.slane %v4137, 5
      %v4140 = vsel %vm246, %v4135, %v4139
      %v4142 = vshrl.u32 %v3991, 16
      %v4144 = vrot.slane %v4142, 4
      %v4145 = vshll.u32 %v3991, 16
      %v4147 = vrot.slane %v4145, 5
      %v4148 = vor.u32 %v4144, %v4147
      %v4149 = vrot.slane %v4148, 4
      %v4151 = vshll.u32 %v3992, 16
      %v4153 = vrot.slane %v4151, 5
      %v4154 = vsel %vm246, %v4149, %v4153
      %v4155 = vshrl.u32 %v3992, 16
      %v4157 = vrot.slane %v4155, 4
      %v4158 = vor.u32 %v4157, %v4153
      %v4159 = vrot.slane %v4158, 4
      %v4161 = vshll.u32 %v3993, 16
      %v4163 = vrot.slane %v4161, 5
      %v4164 = vsel %vm246, %v4159, %v4163
      %v4166 = vshrl.u32 %v3994, 16
      %v4168 = vrot.slane %v4166, 4
      %v4169 = vshll.u32 %v3994, 16
      %v4171 = vrot.slane %v4169, 5
      %v4172 = vor.u32 %v4168, %v4171
      %v4173 = vrot.slane %v4172, 4
      %v4175 = vshll.u32 %v3995, 16
      %v4177 = vrot.slane %v4175, 5
      %v4178 = vsel %vm246, %v4173, %v4177
      %v4179 = vshrl.u32 %v3995, 16
      %v4181 = vrot.slane %v4179, 4
      %v4182 = vor.u32 %v4181, %v4177
      %v4183 = vrot.slane %v4182, 4
      %v4185 = vshll.u32 %v3996, 16
      %v4187 = vrot.slane %v4185, 5
      %v4188 = vsel %vm246, %v4183, %v4187
      %v4189 = vld [vmem:[%s1463] sm:$0xf]
      %v4190 = vld [vmem:[%s1463 + $0x4] sm:$0xf]
      %v4191 = vld [vmem:[%s1463 + $0x8] sm:$0xf]
      %v4192 = vld [vmem:[%s1463 + $0xc] sm:$0xf]
      %v4193 = vunpack.c.l.b16 %v4010
      %v4194 = vunpack.c.l.b16 %v4020
      %v4195 = vunpack.c.l.b16 %v4034
      %v4196 = vunpack.c.l.b16 %v4044
      %v4197 = vunpack.c.l.b16 %v4058
      %v4198 = vunpack.c.l.b16 %v4068
      %v4199 = vunpack.c.l.b16 %v4082
      %v4200 = vunpack.c.l.b16 %v4092
      %v4201 = vunpack.c.l.b16 %v4106
      %v4202 = vunpack.c.l.b16 %v4116
      %v4203 = vunpack.c.l.b16 %v4130
      %v4204 = vunpack.c.l.b16 %v4140
      %v4205 = vunpack.c.l.b16 %v4154
      %v4206 = vunpack.c.l.b16 %v4164
      %v4207 = vunpack.c.l.b16 %v4178
      %v4208 = vunpack.c.l.b16 %v4188
      %v4209 = vpack.c.b16 %v4194, %v4193
      %v4210 = vpack.c.b16 %v4196, %v4195
      %v4211 = vpack.c.b16 %v4198, %v4197
      %v4212 = vpack.c.b16 %v4200, %v4199
      %v4213 = vpack.c.b16 %v4202, %v4201
      %v4214 = vpack.c.b16 %v4204, %v4203
      %v4215 = vpack.c.b16 %v4206, %v4205
      %v4216 = vpack.c.b16 %v4208, %v4207
      %v4221 = vunpack.c.l.b16 %v4189
      %v4222 = vunpack.c.l.b16 %v4190
      %v4223 = vunpack.c.l.b16 %v4191
      %v4224 = vunpack.c.l.b16 %v4192
      %v4225 = vpack.c.b16 %v4222, %v4221
      %v4226 = vpack.c.b16 %v4224, %v4223
      %v4230 = vsel %vm480, %v4209, 0
      %v4233 = vsel %vm480, %v4210, 0
      %v4236 = vsel %vm480, %v4211, 0
      %v4239 = vsel %vm480, %v4212, 0
      %v4242 = vsel %vm480, %v4213, 0
      %v4245 = vsel %vm480, %v4214, 0
      %v4248 = vsel %vm480, %v4215, 0
      %v4251 = vsel %vm480, %v4216, 0
      %4253 = vmatprep.subr.bf16.mxu0 0
      %4254 = vmatpush1.bf16.msra.mxu0 0
      %4255 = vmatprep.subr.bf16.mxu0 0
      %4256 = vmatpush1.bf16.msra.mxu0 0
      %4257 = vmatprep.subr.bf16.mxu0 0
      %4258 = vmatpush1.bf16.msra.mxu0 0
      %4259 = vmatprep.subr.bf16.mxu0 0
      %4260 = vmatpush1.bf16.msra.mxu0 0
      %4261 = vmatprep.subr.bf16.mxu0 0
      %4262 = vmatpush1.bf16.msra.mxu0 0
      %4263 = vmatprep.subr.bf16.mxu0 0
      %4264 = vmatpush1.bf16.msra.mxu0 0
      %4265 = vmatprep.subr.bf16.mxu0 0
      %4266 = vmatpush1.bf16.msra.mxu0 %v4226
      %4267 = vmatprep.subr.bf16.mxu0 0
      %4268 = vmatpush1.bf16.msra.mxu0 %v4225
      %4269 = vmatprep.subr.bf16.mxu0 0
      %4270 = vmatpush2.bf16.msra.mxu0 0
      %4271 = vmatprep.subr.bf16.mxu0 0
      %4272 = vmatpush2.bf16.msra.mxu0 0
      %4273 = vmatprep.subr.bf16.mxu0 0
      %4274 = vmatpush2.bf16.msra.mxu0 0
      %4275 = vmatprep.subr.bf16.mxu0 0
      %4276 = vmatpush2.bf16.msra.mxu0 0
      %4277 = vmatprep.subr.bf16.mxu0 0
      %4278 = vmatpush2.bf16.msra.mxu0 0
      %4279 = vmatprep.subr.bf16.mxu0 0
      %4280 = vmatpush2.bf16.msra.mxu0 0
      %4281 = vmatprep.subr.bf16.mxu0 0
      %4282 = vmatpush2.bf16.msra.mxu0 0
      %4283 = vmatprep.subr.bf16.mxu0 0
      %4284 = vmatpush2.bf16.msra.mxu0 0
      %4285 = vmatprep.mubr.bf16.mxu0 0
      %4286 = vmatmul.mubr.bf16.gmra.mxu0 %v4230
      %v4287 = vpop.f32.mrf.mxu0
      %v4288 = vadd.f32 0.0, %v4287
      %v4289 = vpop.f32.mrf.mxu0
      %v4290 = vpop.f32.mrf.mxu0
      %v4291 = vadd.f32 0.0, %v4290
      %v4292 = vpop.f32.mrf.mxu0
      %4293 = vmatprep.mubr.bf16.mxu0 0
      %4294 = vmatmul.mubr.bf16.gmra.mxu0 %v4233
      %v4295 = vpop.f32.mrf.mxu0
      %v4296 = vadd.f32 0.0, %v4295
      %v4297 = vpop.f32.mrf.mxu0
      %v4298 = vpop.f32.mrf.mxu0
      %v4299 = vadd.f32 0.0, %v4298
      %v4300 = vpop.f32.mrf.mxu0
      %4301 = vmatprep.mubr.bf16.mxu0 0
      %4302 = vmatmul.mubr.bf16.gmra.mxu0 %v4236
      %v4303 = vpop.f32.mrf.mxu0
      %v4304 = vadd.f32 0.0, %v4303
      %v4305 = vpop.f32.mrf.mxu0
      %v4306 = vpop.f32.mrf.mxu0
      %v4307 = vadd.f32 0.0, %v4306
      %v4308 = vpop.f32.mrf.mxu0
      %4309 = vmatprep.mubr.bf16.mxu0 0
      %4310 = vmatmul.mubr.bf16.gmra.mxu0 %v4239
      %v4311 = vpop.f32.mrf.mxu0
      %v4312 = vadd.f32 0.0, %v4311
      %v4313 = vpop.f32.mrf.mxu0
      %v4314 = vpop.f32.mrf.mxu0
      %v4315 = vadd.f32 0.0, %v4314
      %v4316 = vpop.f32.mrf.mxu0
      %4317 = vmatprep.mubr.bf16.mxu0 0
      %4318 = vmatmul.mubr.bf16.gmra.mxu0 %v4242
      %v4319 = vpop.f32.mrf.mxu0
      %v4320 = vadd.f32 0.0, %v4319
      %v4321 = vpop.f32.mrf.mxu0
      %v4322 = vpop.f32.mrf.mxu0
      %v4323 = vadd.f32 0.0, %v4322
      %v4324 = vpop.f32.mrf.mxu0
      %4325 = vmatprep.mubr.bf16.mxu0 0
      %4326 = vmatmul.mubr.bf16.gmra.mxu0 %v4245
      %v4327 = vpop.f32.mrf.mxu0
      %v4328 = vadd.f32 0.0, %v4327
      %v4329 = vpop.f32.mrf.mxu0
      %v4330 = vpop.f32.mrf.mxu0
      %v4331 = vadd.f32 0.0, %v4330
      %v4332 = vpop.f32.mrf.mxu0
      %4333 = vmatprep.mubr.bf16.mxu0 0
      %4334 = vmatmul.mubr.bf16.gmra.mxu0 %v4248
      %v4335 = vpop.f32.mrf.mxu0
      %v4336 = vadd.f32 0.0, %v4335
      %v4337 = vpop.f32.mrf.mxu0
      %v4338 = vpop.f32.mrf.mxu0
      %v4339 = vadd.f32 0.0, %v4338
      %v4340 = vpop.f32.mrf.mxu0
      %4341 = vmatprep.mubr.bf16.mxu0 0
      %4342 = vmatmul.mubr.bf16.gmra.mxu0 %v4251
      %v4343 = vpop.f32.mrf.mxu0
      %v4344 = vadd.f32 0.0, %v4343
      %v4345 = vpop.f32.mrf.mxu0
      %v4346 = vpop.f32.mrf.mxu0
      %v4347 = vadd.f32 0.0, %v4346
      %v4348 = vpop.f32.mrf.mxu0
      %4349 = vdwg.mxu0
      %v4350 = vadd.f32 %v3957, %v4288
      %v4351 = vadd.f32 %v3958, %v4291
      %v4352 = vadd.f32 %v3959, %v4296
      %v4353 = vadd.f32 %v3960, %v4299
      %v4354 = vadd.f32 %v3961, %v4304
      %v4355 = vadd.f32 %v3962, %v4307
      %v4356 = vadd.f32 %v3963, %v4312
      %v4357 = vadd.f32 %v3964, %v4315
      %v4358 = vadd.f32 %v3965, %v4320
      %v4359 = vadd.f32 %v3966, %v4323
      %v4360 = vadd.f32 %v3967, %v4328
      %v4361 = vadd.f32 %v3968, %v4331
      %v4362 = vadd.f32 %v3969, %v4336
      %v4363 = vadd.f32 %v3970, %v4339
      %v4364 = vadd.f32 %v3971, %v4344
      %v4365 = vadd.f32 %v3972, %v4347
      %v4366 = vld [vmem:[%s3763] sm:$0xe]
      %v4367 = vld [vmem:[%s3763 + $0xc] sm:$0xe]
      %v4368 = vld [vmem:[%s3763 + $0x18] sm:$0xe]
      %v4369 = vld [vmem:[%s3763 + $0x24] sm:$0xe]
      %v4370 = vld [vmem:[%s3763 + $0x30] sm:$0xe]
      %v4371 = vld [vmem:[%s3763 + $0x3c] sm:$0xe]
      %v4372 = vld [vmem:[%s3763 + $0x48] sm:$0xe]
      %v4373 = vld [vmem:[%s3763 + $0x54] sm:$0xe]
      %v4398 = vrot.slane %v4366, 5
      %v4399 = vrot.slane %v4398, 4
      %v4400 = vrot.slane %v3974, 5
      %v4401 = vsel %vm801, %v4399, %v4400
      %v4402 = vrot.slane %v4400, 4
      %v4403 = vrot.slane %v3975, 5
      %v4404 = vsel %vm801, %v4402, %v4403
      %v4405 = vrot.slane %v4367, 5
      %v4406 = vrot.slane %v4405, 4
      %v4407 = vrot.slane %v3977, 5
      %v4408 = vsel %vm801, %v4406, %v4407
      %v4409 = vrot.slane %v4407, 4
      %v4410 = vrot.slane %v3978, 5
      %v4411 = vsel %vm801, %v4409, %v4410
      %v4412 = vrot.slane %v4368, 5
      %v4413 = vrot.slane %v4412, 4
      %v4414 = vrot.slane %v3980, 5
      %v4415 = vsel %vm801, %v4413, %v4414
      %v4416 = vrot.slane %v4414, 4
      %v4417 = vrot.slane %v3981, 5
      %v4418 = vsel %vm801, %v4416, %v4417
      %v4419 = vrot.slane %v4369, 5
      %v4420 = vrot.slane %v4419, 4
      %v4421 = vrot.slane %v3983, 5
      %v4422 = vsel %vm801, %v4420, %v4421
      %v4423 = vrot.slane %v4421, 4
      %v4424 = vrot.slane %v3984, 5
      %v4425 = vsel %vm801, %v4423, %v4424
      %v4426 = vrot.slane %v4370, 5
      %v4427 = vrot.slane %v4426, 4
      %v4428 = vrot.slane %v3986, 5
      %v4429 = vsel %vm801, %v4427, %v4428
      %v4430 = vrot.slane %v4428, 4
      %v4431 = vrot.slane %v3987, 5
      %v4432 = vsel %vm801, %v4430, %v4431
      %v4433 = vrot.slane %v4371, 5
      %v4434 = vrot.slane %v4433, 4
      %v4435 = vrot.slane %v3989, 5
      %v4436 = vsel %vm801, %v4434, %v4435
      %v4437 = vrot.slane %v4435, 4
      %v4438 = vrot.slane %v3990, 5
      %v4439 = vsel %vm801, %v4437, %v4438
      %v4440 = vrot.slane %v4372, 5
      %v4441 = vrot.slane %v4440, 4
      %v4442 = vrot.slane %v3992, 5
      %v4443 = vsel %vm801, %v4441, %v4442
      %v4444 = vrot.slane %v4442, 4
      %v4445 = vrot.slane %v3993, 5
      %v4446 = vsel %vm801, %v4444, %v4445
      %v4447 = vrot.slane %v4373, 5
      %v4448 = vrot.slane %v4447, 4
      %v4449 = vrot.slane %v3995, 5
      %v4450 = vsel %vm801, %v4448, %v4449
      %v4451 = vrot.slane %v4449, 4
      %v4452 = vrot.slane %v3996, 5
      %v4453 = vsel %vm801, %v4451, %v4452
      %v4454 = vld [vmem:[%s1729] sm:$0xf]
      %v4455 = vld [vmem:[%s1729 + $0x4] sm:$0xf]
      %v4456 = vld [vmem:[%s1729 + $0x8] sm:$0xf]
      %v4457 = vld [vmem:[%s1729 + $0xc] sm:$0xf]
      %v4458 = vunpack.c.l.b16 %v4401
      %v4459 = vunpack.c.l.b16 %v4404
      %v4460 = vunpack.c.l.b16 %v4408
      %v4461 = vunpack.c.l.b16 %v4411
      %v4462 = vunpack.c.l.b16 %v4415
      %v4463 = vunpack.c.l.b16 %v4418
      %v4464 = vunpack.c.l.b16 %v4422
      %v4465 = vunpack.c.l.b16 %v4425
      %v4466 = vunpack.c.l.b16 %v4429
      %v4467 = vunpack.c.l.b16 %v4432
      %v4468 = vunpack.c.l.b16 %v4436
      %v4469 = vunpack.c.l.b16 %v4439
      %v4470 = vunpack.c.l.b16 %v4443
      %v4471 = vunpack.c.l.b16 %v4446
      %v4472 = vunpack.c.l.b16 %v4450
      %v4473 = vunpack.c.l.b16 %v4453
      %v4474 = vpack.c.b16 %v4459, %v4458
      %v4475 = vpack.c.b16 %v4461, %v4460
      %v4476 = vpack.c.b16 %v4463, %v4462
      %v4477 = vpack.c.b16 %v4465, %v4464
      %v4478 = vpack.c.b16 %v4467, %v4466
      %v4479 = vpack.c.b16 %v4469, %v4468
      %v4480 = vpack.c.b16 %v4471, %v4470
      %v4481 = vpack.c.b16 %v4473, %v4472
      %v4486 = vunpack.c.l.b16 %v4454
      %v4487 = vunpack.c.l.b16 %v4455
      %v4488 = vunpack.c.l.b16 %v4456
      %v4489 = vunpack.c.l.b16 %v4457
      %v4490 = vpack.c.b16 %v4487, %v4486
      %v4491 = vpack.c.b16 %v4489, %v4488
      %v4495 = vsel %vm480, %v4474, 0
      %v4498 = vsel %vm480, %v4475, 0
      %v4501 = vsel %vm480, %v4476, 0
      %v4504 = vsel %vm480, %v4477, 0
      %v4507 = vsel %vm480, %v4478, 0
      %v4510 = vsel %vm480, %v4479, 0
      %v4513 = vsel %vm480, %v4480, 0
      %v4516 = vsel %vm480, %v4481, 0
      %4518 = vmatprep.subr.bf16.mxu0 0
      %4519 = vmatpush1.bf16.msra.mxu0 0
      %4520 = vmatprep.subr.bf16.mxu0 0
      %4521 = vmatpush1.bf16.msra.mxu0 0
      %4522 = vmatprep.subr.bf16.mxu0 0
      %4523 = vmatpush1.bf16.msra.mxu0 0
      %4524 = vmatprep.subr.bf16.mxu0 0
      %4525 = vmatpush1.bf16.msra.mxu0 0
      %4526 = vmatprep.subr.bf16.mxu0 0
      %4527 = vmatpush1.bf16.msra.mxu0 0
      %4528 = vmatprep.subr.bf16.mxu0 0
      %4529 = vmatpush1.bf16.msra.mxu0 0
      %4530 = vmatprep.subr.bf16.mxu0 0
      %4531 = vmatpush1.bf16.msra.mxu0 %v4491
      %4532 = vmatprep.subr.bf16.mxu0 0
      %4533 = vmatpush1.bf16.msra.mxu0 %v4490
      %4534 = vmatprep.subr.bf16.mxu0 0
      %4535 = vmatpush2.bf16.msra.mxu0 0
      %4536 = vmatprep.subr.bf16.mxu0 0
      %4537 = vmatpush2.bf16.msra.mxu0 0
      %4538 = vmatprep.subr.bf16.mxu0 0
      %4539 = vmatpush2.bf16.msra.mxu0 0
      %4540 = vmatprep.subr.bf16.mxu0 0
      %4541 = vmatpush2.bf16.msra.mxu0 0
      %4542 = vmatprep.subr.bf16.mxu0 0
      %4543 = vmatpush2.bf16.msra.mxu0 0
      %4544 = vmatprep.subr.bf16.mxu0 0
      %4545 = vmatpush2.bf16.msra.mxu0 0
      %4546 = vmatprep.subr.bf16.mxu0 0
      %4547 = vmatpush2.bf16.msra.mxu0 0
      %4548 = vmatprep.subr.bf16.mxu0 0
      %4549 = vmatpush2.bf16.msra.mxu0 0
      %4550 = vmatprep.mubr.bf16.mxu0 0
      %4551 = vmatmul.mubr.bf16.gmra.mxu0 %v4495
      %v4552 = vpop.f32.mrf.mxu0
      %v4553 = vadd.f32 0.0, %v4552
      %v4554 = vpop.f32.mrf.mxu0
      %v4555 = vpop.f32.mrf.mxu0
      %v4556 = vadd.f32 0.0, %v4555
      %v4557 = vpop.f32.mrf.mxu0
      %4558 = vmatprep.mubr.bf16.mxu0 0
      %4559 = vmatmul.mubr.bf16.gmra.mxu0 %v4498
      %v4560 = vpop.f32.mrf.mxu0
      %v4561 = vadd.f32 0.0, %v4560
      %v4562 = vpop.f32.mrf.mxu0
      %v4563 = vpop.f32.mrf.mxu0
      %v4564 = vadd.f32 0.0, %v4563
      %v4565 = vpop.f32.mrf.mxu0
      %4566 = vmatprep.mubr.bf16.mxu0 0
      %4567 = vmatmul.mubr.bf16.gmra.mxu0 %v4501
      %v4568 = vpop.f32.mrf.mxu0
      %v4569 = vadd.f32 0.0, %v4568
      %v4570 = vpop.f32.mrf.mxu0
      %v4571 = vpop.f32.mrf.mxu0
      %v4572 = vadd.f32 0.0, %v4571
      %v4573 = vpop.f32.mrf.mxu0
      %4574 = vmatprep.mubr.bf16.mxu0 0
      %4575 = vmatmul.mubr.bf16.gmra.mxu0 %v4504
      %v4576 = vpop.f32.mrf.mxu0
      %v4577 = vadd.f32 0.0, %v4576
      %v4578 = vpop.f32.mrf.mxu0
      %v4579 = vpop.f32.mrf.mxu0
      %v4580 = vadd.f32 0.0, %v4579
      %v4581 = vpop.f32.mrf.mxu0
      %4582 = vmatprep.mubr.bf16.mxu0 0
      %4583 = vmatmul.mubr.bf16.gmra.mxu0 %v4507
      %v4584 = vpop.f32.mrf.mxu0
      %v4585 = vadd.f32 0.0, %v4584
      %v4586 = vpop.f32.mrf.mxu0
      %v4587 = vpop.f32.mrf.mxu0
      %v4588 = vadd.f32 0.0, %v4587
      %v4589 = vpop.f32.mrf.mxu0
      %4590 = vmatprep.mubr.bf16.mxu0 0
      %4591 = vmatmul.mubr.bf16.gmra.mxu0 %v4510
      %v4592 = vpop.f32.mrf.mxu0
      %v4593 = vadd.f32 0.0, %v4592
      %v4594 = vpop.f32.mrf.mxu0
      %v4595 = vpop.f32.mrf.mxu0
      %v4596 = vadd.f32 0.0, %v4595
      %v4597 = vpop.f32.mrf.mxu0
      %4598 = vmatprep.mubr.bf16.mxu0 0
      %4599 = vmatmul.mubr.bf16.gmra.mxu0 %v4513
      %v4600 = vpop.f32.mrf.mxu0
      %v4601 = vadd.f32 0.0, %v4600
      %v4602 = vpop.f32.mrf.mxu0
      %v4603 = vpop.f32.mrf.mxu0
      %v4604 = vadd.f32 0.0, %v4603
      %v4605 = vpop.f32.mrf.mxu0
      %4606 = vmatprep.mubr.bf16.mxu0 0
      %4607 = vmatmul.mubr.bf16.gmra.mxu0 %v4516
      %v4608 = vpop.f32.mrf.mxu0
      %v4609 = vadd.f32 0.0, %v4608
      %v4610 = vpop.f32.mrf.mxu0
      %v4611 = vpop.f32.mrf.mxu0
      %v4612 = vadd.f32 0.0, %v4611
      %v4613 = vpop.f32.mrf.mxu0
      %4614 = vdwg.mxu0
      %v4615 = vadd.f32 %v4350, %v4553
      %v4616 = vadd.f32 %v4351, %v4556
      %v4617 = vadd.f32 %v4352, %v4561
      %v4618 = vadd.f32 %v4353, %v4564
      %v4619 = vadd.f32 %v4354, %v4569
      %v4620 = vadd.f32 %v4355, %v4572
      %v4621 = vadd.f32 %v4356, %v4577
      %v4622 = vadd.f32 %v4357, %v4580
      %v4623 = vadd.f32 %v4358, %v4585
      %v4624 = vadd.f32 %v4359, %v4588
      %v4625 = vadd.f32 %v4360, %v4593
      %v4626 = vadd.f32 %v4361, %v4596
      %v4627 = vadd.f32 %v4362, %v4601
      %v4628 = vadd.f32 %v4363, %v4604
      %v4629 = vadd.f32 %v4364, %v4609
      %v4630 = vadd.f32 %v4365, %v4612
      %s4631 = scalar_lea.vmem %s203, 120
      %v4632 = vld [vmem:[%s4631] sm:$0xf]
      %v4633 = vld [vmem:[%s4631 + $0x4] sm:$0xf]
      %v4634 = vld [vmem:[%s4631 + $0xc] sm:$0xf]
      %v4635 = vld [vmem:[%s4631 + $0x10] sm:$0xf]
      %v4636 = vld [vmem:[%s4631 + $0x18] sm:$0xf]
      %v4637 = vld [vmem:[%s4631 + $0x1c] sm:$0xf]
      %v4638 = vld [vmem:[%s4631 + $0x24] sm:$0xf]
      %v4639 = vld [vmem:[%s4631 + $0x28] sm:$0xf]
      %v4640 = vld [vmem:[%s4631 + $0x30] sm:$0xf]
      %v4641 = vld [vmem:[%s4631 + $0x34] sm:$0xf]
      %v4642 = vld [vmem:[%s4631 + $0x3c] sm:$0xf]
      %v4643 = vld [vmem:[%s4631 + $0x40] sm:$0xf]
      %v4644 = vld [vmem:[%s4631 + $0x48] sm:$0xf]
      %v4645 = vld [vmem:[%s4631 + $0x4c] sm:$0xf]
      %v4646 = vld [vmem:[%s4631 + $0x54] sm:$0xf]
      %v4647 = vld [vmem:[%s4631 + $0x58] sm:$0xf]
      %v4648 = vld [vmem:[%s1924] sm:$0xf]
      %v4649 = vld [vmem:[%s1924 + $0x4] sm:$0xf]
      %v4650 = vld [vmem:[%s1924 + $0x8] sm:$0xf]
      %v4651 = vld [vmem:[%s1924 + $0xc] sm:$0xf]
      %v4668 = vunpack.c.l.b16 %v4632
      %v4669 = vunpack.c.l.b16 %v4633
      %v4670 = vunpack.c.l.b16 %v4634
      %v4671 = vunpack.c.l.b16 %v4635
      %v4672 = vunpack.c.l.b16 %v4636
      %v4673 = vunpack.c.l.b16 %v4637
      %v4674 = vunpack.c.l.b16 %v4638
      %v4675 = vunpack.c.l.b16 %v4639
      %v4676 = vunpack.c.l.b16 %v4640
      %v4677 = vunpack.c.l.b16 %v4641
      %v4678 = vunpack.c.l.b16 %v4642
      %v4679 = vunpack.c.l.b16 %v4643
      %v4680 = vunpack.c.l.b16 %v4644
      %v4681 = vunpack.c.l.b16 %v4645
      %v4682 = vunpack.c.l.b16 %v4646
      %v4683 = vunpack.c.l.b16 %v4647
      %v4684 = vpack.c.b16 %v4669, %v4668
      %v4685 = vpack.c.b16 %v4671, %v4670
      %v4686 = vpack.c.b16 %v4673, %v4672
      %v4687 = vpack.c.b16 %v4675, %v4674
      %v4688 = vpack.c.b16 %v4677, %v4676
      %v4689 = vpack.c.b16 %v4679, %v4678
      %v4690 = vpack.c.b16 %v4681, %v4680
      %v4691 = vpack.c.b16 %v4683, %v4682
      %v4696 = vunpack.c.l.b16 %v4648
      %v4697 = vunpack.c.l.b16 %v4649
      %v4698 = vunpack.c.l.b16 %v4650
      %v4699 = vunpack.c.l.b16 %v4651
      %v4700 = vpack.c.b16 %v4697, %v4696
      %v4701 = vpack.c.b16 %v4699, %v4698
      %v4705 = vsel %vm480, %v4684, 0
      %v4708 = vsel %vm480, %v4685, 0
      %v4711 = vsel %vm480, %v4686, 0
      %v4714 = vsel %vm480, %v4687, 0
      %v4717 = vsel %vm480, %v4688, 0
      %v4720 = vsel %vm480, %v4689, 0
      %v4723 = vsel %vm480, %v4690, 0
      %v4726 = vsel %vm480, %v4691, 0
      %4728 = vmatprep.subr.bf16.mxu0 0
      %4729 = vmatpush1.bf16.msra.mxu0 0
      %4730 = vmatprep.subr.bf16.mxu0 0
      %4731 = vmatpush1.bf16.msra.mxu0 0
      %4732 = vmatprep.subr.bf16.mxu0 0
      %4733 = vmatpush1.bf16.msra.mxu0 0
      %4734 = vmatprep.subr.bf16.mxu0 0
      %4735 = vmatpush1.bf16.msra.mxu0 0
      %4736 = vmatprep.subr.bf16.mxu0 0
      %4737 = vmatpush1.bf16.msra.mxu0 0
      %4738 = vmatprep.subr.bf16.mxu0 0
      %4739 = vmatpush1.bf16.msra.mxu0 0
      %4740 = vmatprep.subr.bf16.mxu0 0
      %4741 = vmatpush1.bf16.msra.mxu0 %v4701
      %4742 = vmatprep.subr.bf16.mxu0 0
      %4743 = vmatpush1.bf16.msra.mxu0 %v4700
      %4744 = vmatprep.subr.bf16.mxu0 0
      %4745 = vmatpush2.bf16.msra.mxu0 0
      %4746 = vmatprep.subr.bf16.mxu0 0
      %4747 = vmatpush2.bf16.msra.mxu0 0
      %4748 = vmatprep.subr.bf16.mxu0 0
      %4749 = vmatpush2.bf16.msra.mxu0 0
      %4750 = vmatprep.subr.bf16.mxu0 0
      %4751 = vmatpush2.bf16.msra.mxu0 0
      %4752 = vmatprep.subr.bf16.mxu0 0
      %4753 = vmatpush2.bf16.msra.mxu0 0
      %4754 = vmatprep.subr.bf16.mxu0 0
      %4755 = vmatpush2.bf16.msra.mxu0 0
      %4756 = vmatprep.subr.bf16.mxu0 0
      %4757 = vmatpush2.bf16.msra.mxu0 0
      %4758 = vmatprep.subr.bf16.mxu0 0
      %4759 = vmatpush2.bf16.msra.mxu0 0
      %4760 = vmatprep.mubr.bf16.mxu0 0
      %4761 = vmatmul.mubr.bf16.gmra.mxu0 %v4705
      %v4762 = vpop.f32.mrf.mxu0
      %v4763 = vadd.f32 0.0, %v4762
      %v4764 = vpop.f32.mrf.mxu0
      %v4765 = vpop.f32.mrf.mxu0
      %v4766 = vadd.f32 0.0, %v4765
      %v4767 = vpop.f32.mrf.mxu0
      %4768 = vmatprep.mubr.bf16.mxu0 0
      %4769 = vmatmul.mubr.bf16.gmra.mxu0 %v4708
      %v4770 = vpop.f32.mrf.mxu0
      %v4771 = vadd.f32 0.0, %v4770
      %v4772 = vpop.f32.mrf.mxu0
      %v4773 = vpop.f32.mrf.mxu0
      %v4774 = vadd.f32 0.0, %v4773
      %v4775 = vpop.f32.mrf.mxu0
      %4776 = vmatprep.mubr.bf16.mxu0 0
      %4777 = vmatmul.mubr.bf16.gmra.mxu0 %v4711
      %v4778 = vpop.f32.mrf.mxu0
      %v4779 = vadd.f32 0.0, %v4778
      %v4780 = vpop.f32.mrf.mxu0
      %v4781 = vpop.f32.mrf.mxu0
      %v4782 = vadd.f32 0.0, %v4781
      %v4783 = vpop.f32.mrf.mxu0
      %4784 = vmatprep.mubr.bf16.mxu0 0
      %4785 = vmatmul.mubr.bf16.gmra.mxu0 %v4714
      %v4786 = vpop.f32.mrf.mxu0
      %v4787 = vadd.f32 0.0, %v4786
      %v4788 = vpop.f32.mrf.mxu0
      %v4789 = vpop.f32.mrf.mxu0
      %v4790 = vadd.f32 0.0, %v4789
      %v4791 = vpop.f32.mrf.mxu0
      %4792 = vmatprep.mubr.bf16.mxu0 0
      %4793 = vmatmul.mubr.bf16.gmra.mxu0 %v4717
      %v4794 = vpop.f32.mrf.mxu0
      %v4795 = vadd.f32 0.0, %v4794
      %v4796 = vpop.f32.mrf.mxu0
      %v4797 = vpop.f32.mrf.mxu0
      %v4798 = vadd.f32 0.0, %v4797
      %v4799 = vpop.f32.mrf.mxu0
      %4800 = vmatprep.mubr.bf16.mxu0 0
      %4801 = vmatmul.mubr.bf16.gmra.mxu0 %v4720
      %v4802 = vpop.f32.mrf.mxu0
      %v4803 = vadd.f32 0.0, %v4802
      %v4804 = vpop.f32.mrf.mxu0
      %v4805 = vpop.f32.mrf.mxu0
      %v4806 = vadd.f32 0.0, %v4805
      %v4807 = vpop.f32.mrf.mxu0
      %4808 = vmatprep.mubr.bf16.mxu0 0
      %4809 = vmatmul.mubr.bf16.gmra.mxu0 %v4723
      %v4810 = vpop.f32.mrf.mxu0
      %v4811 = vadd.f32 0.0, %v4810
      %v4812 = vpop.f32.mrf.mxu0
      %v4813 = vpop.f32.mrf.mxu0
      %v4814 = vadd.f32 0.0, %v4813
      %v4815 = vpop.f32.mrf.mxu0
      %4816 = vmatprep.mubr.bf16.mxu0 0
      %4817 = vmatmul.mubr.bf16.gmra.mxu0 %v4726
      %v4818 = vpop.f32.mrf.mxu0
      %v4819 = vadd.f32 0.0, %v4818
      %v4820 = vpop.f32.mrf.mxu0
      %v4821 = vpop.f32.mrf.mxu0
      %v4822 = vadd.f32 0.0, %v4821
      %v4823 = vpop.f32.mrf.mxu0
      %4824 = vdwg.mxu0
      %v4825 = vadd.f32 %v4615, %v4763
      %v4826 = vadd.f32 %v4616, %v4766
      %v4827 = vadd.f32 %v4617, %v4771
      %v4828 = vadd.f32 %v4618, %v4774
      %v4829 = vadd.f32 %v4619, %v4779
      %v4830 = vadd.f32 %v4620, %v4782
      %v4831 = vadd.f32 %v4621, %v4787
      %v4832 = vadd.f32 %v4622, %v4790
      %v4833 = vadd.f32 %v4623, %v4795
      %v4834 = vadd.f32 %v4624, %v4798
      %v4835 = vadd.f32 %v4625, %v4803
      %v4836 = vadd.f32 %v4626, %v4806
      %v4837 = vadd.f32 %v4627, %v4811
      %v4838 = vadd.f32 %v4628, %v4814
      %v4839 = vadd.f32 %v4629, %v4819
      %v4840 = vadd.f32 %v4630, %v4822
      %v4841 = vld [vmem:[%s4631] sm:$0xf]
      %v4842 = vld [vmem:[%s4631 + $0x4] sm:$0xf]
      %v4843 = vld [vmem:[%s4631 + $0x8] sm:$0x1]
      %v4844 = vld [vmem:[%s4631 + $0xc] sm:$0xf]
      %v4845 = vld [vmem:[%s4631 + $0x10] sm:$0xf]
      %v4846 = vld [vmem:[%s4631 + $0x14] sm:$0x1]
      %v4847 = vld [vmem:[%s4631 + $0x18] sm:$0xf]
      %v4848 = vld [vmem:[%s4631 + $0x1c] sm:$0xf]
      %v4849 = vld [vmem:[%s4631 + $0x20] sm:$0x1]
      %v4850 = vld [vmem:[%s4631 + $0x24] sm:$0xf]
      %v4851 = vld [vmem:[%s4631 + $0x28] sm:$0xf]
      %v4852 = vld [vmem:[%s4631 + $0x2c] sm:$0x1]
      %v4853 = vld [vmem:[%s4631 + $0x30] sm:$0xf]
      %v4854 = vld [vmem:[%s4631 + $0x34] sm:$0xf]
      %v4855 = vld [vmem:[%s4631 + $0x38] sm:$0x1]
      %v4856 = vld [vmem:[%s4631 + $0x3c] sm:$0xf]
      %v4857 = vld [vmem:[%s4631 + $0x40] sm:$0xf]
      %v4858 = vld [vmem:[%s4631 + $0x44] sm:$0x1]
      %v4859 = vld [vmem:[%s4631 + $0x48] sm:$0xf]
      %v4860 = vld [vmem:[%s4631 + $0x4c] sm:$0xf]
      %v4861 = vld [vmem:[%s4631 + $0x50] sm:$0x1]
      %v4862 = vld [vmem:[%s4631 + $0x54] sm:$0xf]
      %v4863 = vld [vmem:[%s4631 + $0x58] sm:$0xf]
      %v4864 = vld [vmem:[%s4631 + $0x5c] sm:$0x1]
      %v4866 = vshrl.u32 %v4841, 16
      %v4868 = vrot.slane %v4866, 4
      %v4869 = vshll.u32 %v4841, 16
      %v4871 = vrot.slane %v4869, 5
      %v4872 = vor.u32 %v4868, %v4871
      %v4873 = vrot.slane %v4872, 4
      %v4875 = vshll.u32 %v4842, 16
      %v4877 = vrot.slane %v4875, 5
      %v4878 = vsel %vm246, %v4873, %v4877
      %v4879 = vshrl.u32 %v4842, 16
      %v4881 = vrot.slane %v4879, 4
      %v4882 = vor.u32 %v4881, %v4877
      %v4883 = vrot.slane %v4882, 4
      %v4885 = vshll.u32 %v4843, 16
      %v4887 = vrot.slane %v4885, 5
      %v4888 = vsel %vm246, %v4883, %v4887
      %v4890 = vshrl.u32 %v4844, 16
      %v4892 = vrot.slane %v4890, 4
      %v4893 = vshll.u32 %v4844, 16
      %v4895 = vrot.slane %v4893, 5
      %v4896 = vor.u32 %v4892, %v4895
      %v4897 = vrot.slane %v4896, 4
      %v4899 = vshll.u32 %v4845, 16
      %v4901 = vrot.slane %v4899, 5
      %v4902 = vsel %vm246, %v4897, %v4901
      %v4903 = vshrl.u32 %v4845, 16
      %v4905 = vrot.slane %v4903, 4
      %v4906 = vor.u32 %v4905, %v4901
      %v4907 = vrot.slane %v4906, 4
      %v4909 = vshll.u32 %v4846, 16
      %v4911 = vrot.slane %v4909, 5
      %v4912 = vsel %vm246, %v4907, %v4911
      %v4914 = vshrl.u32 %v4847, 16
      %v4916 = vrot.slane %v4914, 4
      %v4917 = vshll.u32 %v4847, 16
      %v4919 = vrot.slane %v4917, 5
      %v4920 = vor.u32 %v4916, %v4919
      %v4921 = vrot.slane %v4920, 4
      %v4923 = vshll.u32 %v4848, 16
      %v4925 = vrot.slane %v4923, 5
      %v4926 = vsel %vm246, %v4921, %v4925
      %v4927 = vshrl.u32 %v4848, 16
      %v4929 = vrot.slane %v4927, 4
      %v4930 = vor.u32 %v4929, %v4925
      %v4931 = vrot.slane %v4930, 4
      %v4933 = vshll.u32 %v4849, 16
      %v4935 = vrot.slane %v4933, 5
      %v4936 = vsel %vm246, %v4931, %v4935
      %v4938 = vshrl.u32 %v4850, 16
      %v4940 = vrot.slane %v4938, 4
      %v4941 = vshll.u32 %v4850, 16
      %v4943 = vrot.slane %v4941, 5
      %v4944 = vor.u32 %v4940, %v4943
      %v4945 = vrot.slane %v4944, 4
      %v4947 = vshll.u32 %v4851, 16
      %v4949 = vrot.slane %v4947, 5
      %v4950 = vsel %vm246, %v4945, %v4949
      %v4951 = vshrl.u32 %v4851, 16
      %v4953 = vrot.slane %v4951, 4
      %v4954 = vor.u32 %v4953, %v4949
      %v4955 = vrot.slane %v4954, 4
      %v4957 = vshll.u32 %v4852, 16
      %v4959 = vrot.slane %v4957, 5
      %v4960 = vsel %vm246, %v4955, %v4959
      %v4962 = vshrl.u32 %v4853, 16
      %v4964 = vrot.slane %v4962, 4
      %v4965 = vshll.u32 %v4853, 16
      %v4967 = vrot.slane %v4965, 5
      %v4968 = vor.u32 %v4964, %v4967
      %v4969 = vrot.slane %v4968, 4
      %v4971 = vshll.u32 %v4854, 16
      %v4973 = vrot.slane %v4971, 5
      %v4974 = vsel %vm246, %v4969, %v4973
      %v4975 = vshrl.u32 %v4854, 16
      %v4977 = vrot.slane %v4975, 4
      %v4978 = vor.u32 %v4977, %v4973
      %v4979 = vrot.slane %v4978, 4
      %v4981 = vshll.u32 %v4855, 16
      %v4983 = vrot.slane %v4981, 5
      %v4984 = vsel %vm246, %v4979, %v4983
      %v4986 = vshrl.u32 %v4856, 16
      %v4988 = vrot.slane %v4986, 4
      %v4989 = vshll.u32 %v4856, 16
      %v4991 = vrot.slane %v4989, 5
      %v4992 = vor.u32 %v4988, %v4991
      %v4993 = vrot.slane %v4992, 4
      %v4995 = vshll.u32 %v4857, 16
      %v4997 = vrot.slane %v4995, 5
      %v4998 = vsel %vm246, %v4993, %v4997
      %v4999 = vshrl.u32 %v4857, 16
      %v5001 = vrot.slane %v4999, 4
      %v5002 = vor.u32 %v5001, %v4997
      %v5003 = vrot.slane %v5002, 4
      %v5005 = vshll.u32 %v4858, 16
      %v5007 = vrot.slane %v5005, 5
      %v5008 = vsel %vm246, %v5003, %v5007
      %v5010 = vshrl.u32 %v4859, 16
      %v5012 = vrot.slane %v5010, 4
      %v5013 = vshll.u32 %v4859, 16
      %v5015 = vrot.slane %v5013, 5
      %v5016 = vor.u32 %v5012, %v5015
      %v5017 = vrot.slane %v5016, 4
      %v5019 = vshll.u32 %v4860, 16
      %v5021 = vrot.slane %v5019, 5
      %v5022 = vsel %vm246, %v5017, %v5021
      %v5023 = vshrl.u32 %v4860, 16
      %v5025 = vrot.slane %v5023, 4
      %v5026 = vor.u32 %v5025, %v5021
      %v5027 = vrot.slane %v5026, 4
      %v5029 = vshll.u32 %v4861, 16
      %v5031 = vrot.slane %v5029, 5
      %v5032 = vsel %vm246, %v5027, %v5031
      %v5034 = vshrl.u32 %v4862, 16
      %v5036 = vrot.slane %v5034, 4
      %v5037 = vshll.u32 %v4862, 16
      %v5039 = vrot.slane %v5037, 5
      %v5040 = vor.u32 %v5036, %v5039
      %v5041 = vrot.slane %v5040, 4
      %v5043 = vshll.u32 %v4863, 16
      %v5045 = vrot.slane %v5043, 5
      %v5046 = vsel %vm246, %v5041, %v5045
      %v5047 = vshrl.u32 %v4863, 16
      %v5049 = vrot.slane %v5047, 4
      %v5050 = vor.u32 %v5049, %v5045
      %v5051 = vrot.slane %v5050, 4
      %v5053 = vshll.u32 %v4864, 16
      %v5055 = vrot.slane %v5053, 5
      %v5056 = vsel %vm246, %v5051, %v5055
      %v5057 = vld [vmem:[%s2334] sm:$0xf]
      %v5058 = vld [vmem:[%s2334 + $0x4] sm:$0xf]
      %v5059 = vld [vmem:[%s2334 + $0x8] sm:$0xf]
      %v5060 = vld [vmem:[%s2334 + $0xc] sm:$0xf]
      %v5061 = vunpack.c.l.b16 %v4878
      %v5062 = vunpack.c.l.b16 %v4888
      %v5063 = vunpack.c.l.b16 %v4902
      %v5064 = vunpack.c.l.b16 %v4912
      %v5065 = vunpack.c.l.b16 %v4926
      %v5066 = vunpack.c.l.b16 %v4936
      %v5067 = vunpack.c.l.b16 %v4950
      %v5068 = vunpack.c.l.b16 %v4960
      %v5069 = vunpack.c.l.b16 %v4974
      %v5070 = vunpack.c.l.b16 %v4984
      %v5071 = vunpack.c.l.b16 %v4998
      %v5072 = vunpack.c.l.b16 %v5008
      %v5073 = vunpack.c.l.b16 %v5022
      %v5074 = vunpack.c.l.b16 %v5032
      %v5075 = vunpack.c.l.b16 %v5046
      %v5076 = vunpack.c.l.b16 %v5056
      %v5077 = vpack.c.b16 %v5062, %v5061
      %v5078 = vpack.c.b16 %v5064, %v5063
      %v5079 = vpack.c.b16 %v5066, %v5065
      %v5080 = vpack.c.b16 %v5068, %v5067
      %v5081 = vpack.c.b16 %v5070, %v5069
      %v5082 = vpack.c.b16 %v5072, %v5071
      %v5083 = vpack.c.b16 %v5074, %v5073
      %v5084 = vpack.c.b16 %v5076, %v5075
      %v5089 = vunpack.c.l.b16 %v5057
      %v5090 = vunpack.c.l.b16 %v5058
      %v5091 = vunpack.c.l.b16 %v5059
      %v5092 = vunpack.c.l.b16 %v5060
      %v5093 = vpack.c.b16 %v5090, %v5089
      %v5094 = vpack.c.b16 %v5092, %v5091
      %v5098 = vsel %vm480, %v5077, 0
      %v5101 = vsel %vm480, %v5078, 0
      %v5104 = vsel %vm480, %v5079, 0
      %v5107 = vsel %vm480, %v5080, 0
      %v5110 = vsel %vm480, %v5081, 0
      %v5113 = vsel %vm480, %v5082, 0
      %v5116 = vsel %vm480, %v5083, 0
      %v5119 = vsel %vm480, %v5084, 0
      %5121 = vmatprep.subr.bf16.mxu0 0
      %5122 = vmatpush1.bf16.msra.mxu0 0
      %5123 = vmatprep.subr.bf16.mxu0 0
      %5124 = vmatpush1.bf16.msra.mxu0 0
      %5125 = vmatprep.subr.bf16.mxu0 0
      %5126 = vmatpush1.bf16.msra.mxu0 0
      %5127 = vmatprep.subr.bf16.mxu0 0
      %5128 = vmatpush1.bf16.msra.mxu0 0
      %5129 = vmatprep.subr.bf16.mxu0 0
      %5130 = vmatpush1.bf16.msra.mxu0 0
      %5131 = vmatprep.subr.bf16.mxu0 0
      %5132 = vmatpush1.bf16.msra.mxu0 0
      %5133 = vmatprep.subr.bf16.mxu0 0
      %5134 = vmatpush1.bf16.msra.mxu0 %v5094
      %5135 = vmatprep.subr.bf16.mxu0 0
      %5136 = vmatpush1.bf16.msra.mxu0 %v5093
      %5137 = vmatprep.subr.bf16.mxu0 0
      %5138 = vmatpush2.bf16.msra.mxu0 0
      %5139 = vmatprep.subr.bf16.mxu0 0
      %5140 = vmatpush2.bf16.msra.mxu0 0
      %5141 = vmatprep.subr.bf16.mxu0 0
      %5142 = vmatpush2.bf16.msra.mxu0 0
      %5143 = vmatprep.subr.bf16.mxu0 0
      %5144 = vmatpush2.bf16.msra.mxu0 0
      %5145 = vmatprep.subr.bf16.mxu0 0
      %5146 = vmatpush2.bf16.msra.mxu0 0
      %5147 = vmatprep.subr.bf16.mxu0 0
      %5148 = vmatpush2.bf16.msra.mxu0 0
      %5149 = vmatprep.subr.bf16.mxu0 0
      %5150 = vmatpush2.bf16.msra.mxu0 0
      %5151 = vmatprep.subr.bf16.mxu0 0
      %5152 = vmatpush2.bf16.msra.mxu0 0
      %5153 = vmatprep.mubr.bf16.mxu0 0
      %5154 = vmatmul.mubr.bf16.gmra.mxu0 %v5098
      %v5155 = vpop.f32.mrf.mxu0
      %v5156 = vadd.f32 0.0, %v5155
      %v5157 = vpop.f32.mrf.mxu0
      %v5158 = vpop.f32.mrf.mxu0
      %v5159 = vadd.f32 0.0, %v5158
      %v5160 = vpop.f32.mrf.mxu0
      %5161 = vmatprep.mubr.bf16.mxu0 0
      %5162 = vmatmul.mubr.bf16.gmra.mxu0 %v5101
      %v5163 = vpop.f32.mrf.mxu0
      %v5164 = vadd.f32 0.0, %v5163
      %v5165 = vpop.f32.mrf.mxu0
      %v5166 = vpop.f32.mrf.mxu0
      %v5167 = vadd.f32 0.0, %v5166
      %v5168 = vpop.f32.mrf.mxu0
      %5169 = vmatprep.mubr.bf16.mxu0 0
      %5170 = vmatmul.mubr.bf16.gmra.mxu0 %v5104
      %v5171 = vpop.f32.mrf.mxu0
      %v5172 = vadd.f32 0.0, %v5171
      %v5173 = vpop.f32.mrf.mxu0
      %v5174 = vpop.f32.mrf.mxu0
      %v5175 = vadd.f32 0.0, %v5174
      %v5176 = vpop.f32.mrf.mxu0
      %5177 = vmatprep.mubr.bf16.mxu0 0
      %5178 = vmatmul.mubr.bf16.gmra.mxu0 %v5107
      %v5179 = vpop.f32.mrf.mxu0
      %v5180 = vadd.f32 0.0, %v5179
      %v5181 = vpop.f32.mrf.mxu0
      %v5182 = vpop.f32.mrf.mxu0
      %v5183 = vadd.f32 0.0, %v5182
      %v5184 = vpop.f32.mrf.mxu0
      %5185 = vmatprep.mubr.bf16.mxu0 0
      %5186 = vmatmul.mubr.bf16.gmra.mxu0 %v5110
      %v5187 = vpop.f32.mrf.mxu0
      %v5188 = vadd.f32 0.0, %v5187
      %v5189 = vpop.f32.mrf.mxu0
      %v5190 = vpop.f32.mrf.mxu0
      %v5191 = vadd.f32 0.0, %v5190
      %v5192 = vpop.f32.mrf.mxu0
      %5193 = vmatprep.mubr.bf16.mxu0 0
      %5194 = vmatmul.mubr.bf16.gmra.mxu0 %v5113
      %v5195 = vpop.f32.mrf.mxu0
      %v5196 = vadd.f32 0.0, %v5195
      %v5197 = vpop.f32.mrf.mxu0
      %v5198 = vpop.f32.mrf.mxu0
      %v5199 = vadd.f32 0.0, %v5198
      %v5200 = vpop.f32.mrf.mxu0
      %5201 = vmatprep.mubr.bf16.mxu0 0
      %5202 = vmatmul.mubr.bf16.gmra.mxu0 %v5116
      %v5203 = vpop.f32.mrf.mxu0
      %v5204 = vadd.f32 0.0, %v5203
      %v5205 = vpop.f32.mrf.mxu0
      %v5206 = vpop.f32.mrf.mxu0
      %v5207 = vadd.f32 0.0, %v5206
      %v5208 = vpop.f32.mrf.mxu0
      %5209 = vmatprep.mubr.bf16.mxu0 0
      %5210 = vmatmul.mubr.bf16.gmra.mxu0 %v5119
      %v5211 = vpop.f32.mrf.mxu0
      %v5212 = vadd.f32 0.0, %v5211
      %v5213 = vpop.f32.mrf.mxu0
      %v5214 = vpop.f32.mrf.mxu0
      %v5215 = vadd.f32 0.0, %v5214
      %v5216 = vpop.f32.mrf.mxu0
      %5217 = vdwg.mxu0
      %v5218 = vadd.f32 %v4825, %v5156
      %v5219 = vadd.f32 %v4826, %v5159
      %v5220 = vadd.f32 %v4827, %v5164
      %v5221 = vadd.f32 %v4828, %v5167
      %v5222 = vadd.f32 %v4829, %v5172
      %v5223 = vadd.f32 %v4830, %v5175
      %v5224 = vadd.f32 %v4831, %v5180
      %v5225 = vadd.f32 %v4832, %v5183
      %v5226 = vadd.f32 %v4833, %v5188
      %v5227 = vadd.f32 %v4834, %v5191
      %v5228 = vadd.f32 %v4835, %v5196
      %v5229 = vadd.f32 %v4836, %v5199
      %v5230 = vadd.f32 %v4837, %v5204
      %v5231 = vadd.f32 %v4838, %v5207
      %v5232 = vadd.f32 %v4839, %v5212
      %v5233 = vadd.f32 %v4840, %v5215
      %v5234 = vld [vmem:[%s4631] sm:$0xe]
      %v5235 = vld [vmem:[%s4631 + $0xc] sm:$0xe]
      %v5236 = vld [vmem:[%s4631 + $0x18] sm:$0xe]
      %v5237 = vld [vmem:[%s4631 + $0x24] sm:$0xe]
      %v5238 = vld [vmem:[%s4631 + $0x30] sm:$0xe]
      %v5239 = vld [vmem:[%s4631 + $0x3c] sm:$0xe]
      %v5240 = vld [vmem:[%s4631 + $0x48] sm:$0xe]
      %v5241 = vld [vmem:[%s4631 + $0x54] sm:$0xe]
      %v5266 = vrot.slane %v5234, 5
      %v5267 = vrot.slane %v5266, 4
      %v5268 = vrot.slane %v4842, 5
      %v5269 = vsel %vm801, %v5267, %v5268
      %v5270 = vrot.slane %v5268, 4
      %v5271 = vrot.slane %v4843, 5
      %v5272 = vsel %vm801, %v5270, %v5271
      %v5273 = vrot.slane %v5235, 5
      %v5274 = vrot.slane %v5273, 4
      %v5275 = vrot.slane %v4845, 5
      %v5276 = vsel %vm801, %v5274, %v5275
      %v5277 = vrot.slane %v5275, 4
      %v5278 = vrot.slane %v4846, 5
      %v5279 = vsel %vm801, %v5277, %v5278
      %v5280 = vrot.slane %v5236, 5
      %v5281 = vrot.slane %v5280, 4
      %v5282 = vrot.slane %v4848, 5
      %v5283 = vsel %vm801, %v5281, %v5282
      %v5284 = vrot.slane %v5282, 4
      %v5285 = vrot.slane %v4849, 5
      %v5286 = vsel %vm801, %v5284, %v5285
      %v5287 = vrot.slane %v5237, 5
      %v5288 = vrot.slane %v5287, 4
      %v5289 = vrot.slane %v4851, 5
      %v5290 = vsel %vm801, %v5288, %v5289
      %v5291 = vrot.slane %v5289, 4
      %v5292 = vrot.slane %v4852, 5
      %v5293 = vsel %vm801, %v5291, %v5292
      %v5294 = vrot.slane %v5238, 5
      %v5295 = vrot.slane %v5294, 4
      %v5296 = vrot.slane %v4854, 5
      %v5297 = vsel %vm801, %v5295, %v5296
      %v5298 = vrot.slane %v5296, 4
      %v5299 = vrot.slane %v4855, 5
      %v5300 = vsel %vm801, %v5298, %v5299
      %v5301 = vrot.slane %v5239, 5
      %v5302 = vrot.slane %v5301, 4
      %v5303 = vrot.slane %v4857, 5
      %v5304 = vsel %vm801, %v5302, %v5303
      %v5305 = vrot.slane %v5303, 4
      %v5306 = vrot.slane %v4858, 5
      %v5307 = vsel %vm801, %v5305, %v5306
      %v5308 = vrot.slane %v5240, 5
      %v5309 = vrot.slane %v5308, 4
      %v5310 = vrot.slane %v4860, 5
      %v5311 = vsel %vm801, %v5309, %v5310
      %v5312 = vrot.slane %v5310, 4
      %v5313 = vrot.slane %v4861, 5
      %v5314 = vsel %vm801, %v5312, %v5313
      %v5315 = vrot.slane %v5241, 5
      %v5316 = vrot.slane %v5315, 4
      %v5317 = vrot.slane %v4863, 5
      %v5318 = vsel %vm801, %v5316, %v5317
      %v5319 = vrot.slane %v5317, 4
      %v5320 = vrot.slane %v4864, 5
      %v5321 = vsel %vm801, %v5319, %v5320
      %v5322 = vld [vmem:[%s2600] sm:$0xf]
      %v5323 = vld [vmem:[%s2600 + $0x4] sm:$0xf]
      %v5324 = vld [vmem:[%s2600 + $0x8] sm:$0xf]
      %v5325 = vld [vmem:[%s2600 + $0xc] sm:$0xf]
      %v5326 = vunpack.c.l.b16 %v5269
      %v5327 = vunpack.c.l.b16 %v5272
      %v5328 = vunpack.c.l.b16 %v5276
      %v5329 = vunpack.c.l.b16 %v5279
      %v5330 = vunpack.c.l.b16 %v5283
      %v5331 = vunpack.c.l.b16 %v5286
      %v5332 = vunpack.c.l.b16 %v5290
      %v5333 = vunpack.c.l.b16 %v5293
      %v5334 = vunpack.c.l.b16 %v5297
      %v5335 = vunpack.c.l.b16 %v5300
      %v5336 = vunpack.c.l.b16 %v5304
      %v5337 = vunpack.c.l.b16 %v5307
      %v5338 = vunpack.c.l.b16 %v5311
      %v5339 = vunpack.c.l.b16 %v5314
      %v5340 = vunpack.c.l.b16 %v5318
      %v5341 = vunpack.c.l.b16 %v5321
      %v5342 = vpack.c.b16 %v5327, %v5326
      %v5343 = vpack.c.b16 %v5329, %v5328
      %v5344 = vpack.c.b16 %v5331, %v5330
      %v5345 = vpack.c.b16 %v5333, %v5332
      %v5346 = vpack.c.b16 %v5335, %v5334
      %v5347 = vpack.c.b16 %v5337, %v5336
      %v5348 = vpack.c.b16 %v5339, %v5338
      %v5349 = vpack.c.b16 %v5341, %v5340
      %v5354 = vunpack.c.l.b16 %v5322
      %v5355 = vunpack.c.l.b16 %v5323
      %v5356 = vunpack.c.l.b16 %v5324
      %v5357 = vunpack.c.l.b16 %v5325
      %v5358 = vpack.c.b16 %v5355, %v5354
      %v5359 = vpack.c.b16 %v5357, %v5356
      %v5363 = vsel %vm480, %v5342, 0
      %v5366 = vsel %vm480, %v5343, 0
      %v5369 = vsel %vm480, %v5344, 0
      %v5372 = vsel %vm480, %v5345, 0
      %v5375 = vsel %vm480, %v5346, 0
      %v5378 = vsel %vm480, %v5347, 0
      %v5381 = vsel %vm480, %v5348, 0
      %v5384 = vsel %vm480, %v5349, 0
      %5386 = vmatprep.subr.bf16.mxu0 0
      %5387 = vmatpush1.bf16.msra.mxu0 0
      %5388 = vmatprep.subr.bf16.mxu0 0
      %5389 = vmatpush1.bf16.msra.mxu0 0
      %5390 = vmatprep.subr.bf16.mxu0 0
      %5391 = vmatpush1.bf16.msra.mxu0 0
      %5392 = vmatprep.subr.bf16.mxu0 0
      %5393 = vmatpush1.bf16.msra.mxu0 0
      %5394 = vmatprep.subr.bf16.mxu0 0
      %5395 = vmatpush1.bf16.msra.mxu0 0
      %5396 = vmatprep.subr.bf16.mxu0 0
      %5397 = vmatpush1.bf16.msra.mxu0 0
      %5398 = vmatprep.subr.bf16.mxu0 0
      %5399 = vmatpush1.bf16.msra.mxu0 %v5359
      %5400 = vmatprep.subr.bf16.mxu0 0
      %5401 = vmatpush1.bf16.msra.mxu0 %v5358
      %5402 = vmatprep.subr.bf16.mxu0 0
      %5403 = vmatpush2.bf16.msra.mxu0 0
      %5404 = vmatprep.subr.bf16.mxu0 0
      %5405 = vmatpush2.bf16.msra.mxu0 0
      %5406 = vmatprep.subr.bf16.mxu0 0
      %5407 = vmatpush2.bf16.msra.mxu0 0
      %5408 = vmatprep.subr.bf16.mxu0 0
      %5409 = vmatpush2.bf16.msra.mxu0 0
      %5410 = vmatprep.subr.bf16.mxu0 0
      %5411 = vmatpush2.bf16.msra.mxu0 0
      %5412 = vmatprep.subr.bf16.mxu0 0
      %5413 = vmatpush2.bf16.msra.mxu0 0
      %5414 = vmatprep.subr.bf16.mxu0 0
      %5415 = vmatpush2.bf16.msra.mxu0 0
      %5416 = vmatprep.subr.bf16.mxu0 0
      %5417 = vmatpush2.bf16.msra.mxu0 0
      %5418 = vmatprep.mubr.bf16.mxu0 0
      %5419 = vmatmul.mubr.bf16.gmra.mxu0 %v5363
      %v5420 = vpop.f32.mrf.mxu0
      %v5421 = vadd.f32 0.0, %v5420
      %v5422 = vpop.f32.mrf.mxu0
      %v5423 = vpop.f32.mrf.mxu0
      %v5424 = vadd.f32 0.0, %v5423
      %v5425 = vpop.f32.mrf.mxu0
      %5426 = vmatprep.mubr.bf16.mxu0 0
      %5427 = vmatmul.mubr.bf16.gmra.mxu0 %v5366
      %v5428 = vpop.f32.mrf.mxu0
      %v5429 = vadd.f32 0.0, %v5428
      %v5430 = vpop.f32.mrf.mxu0
      %v5431 = vpop.f32.mrf.mxu0
      %v5432 = vadd.f32 0.0, %v5431
      %v5433 = vpop.f32.mrf.mxu0
      %5434 = vmatprep.mubr.bf16.mxu0 0
      %5435 = vmatmul.mubr.bf16.gmra.mxu0 %v5369
      %v5436 = vpop.f32.mrf.mxu0
      %v5437 = vadd.f32 0.0, %v5436
      %v5438 = vpop.f32.mrf.mxu0
      %v5439 = vpop.f32.mrf.mxu0
      %v5440 = vadd.f32 0.0, %v5439
      %v5441 = vpop.f32.mrf.mxu0
      %5442 = vmatprep.mubr.bf16.mxu0 0
      %5443 = vmatmul.mubr.bf16.gmra.mxu0 %v5372
      %v5444 = vpop.f32.mrf.mxu0
      %v5445 = vadd.f32 0.0, %v5444
      %v5446 = vpop.f32.mrf.mxu0
      %v5447 = vpop.f32.mrf.mxu0
      %v5448 = vadd.f32 0.0, %v5447
      %v5449 = vpop.f32.mrf.mxu0
      %5450 = vmatprep.mubr.bf16.mxu0 0
      %5451 = vmatmul.mubr.bf16.gmra.mxu0 %v5375
      %v5452 = vpop.f32.mrf.mxu0
      %v5453 = vadd.f32 0.0, %v5452
      %v5454 = vpop.f32.mrf.mxu0
      %v5455 = vpop.f32.mrf.mxu0
      %v5456 = vadd.f32 0.0, %v5455
      %v5457 = vpop.f32.mrf.mxu0
      %5458 = vmatprep.mubr.bf16.mxu0 0
      %5459 = vmatmul.mubr.bf16.gmra.mxu0 %v5378
      %v5460 = vpop.f32.mrf.mxu0
      %v5461 = vadd.f32 0.0, %v5460
      %v5462 = vpop.f32.mrf.mxu0
      %v5463 = vpop.f32.mrf.mxu0
      %v5464 = vadd.f32 0.0, %v5463
      %v5465 = vpop.f32.mrf.mxu0
      %5466 = vmatprep.mubr.bf16.mxu0 0
      %5467 = vmatmul.mubr.bf16.gmra.mxu0 %v5381
      %v5468 = vpop.f32.mrf.mxu0
      %v5469 = vadd.f32 0.0, %v5468
      %v5470 = vpop.f32.mrf.mxu0
      %v5471 = vpop.f32.mrf.mxu0
      %v5472 = vadd.f32 0.0, %v5471
      %v5473 = vpop.f32.mrf.mxu0
      %5474 = vmatprep.mubr.bf16.mxu0 0
      %5475 = vmatmul.mubr.bf16.gmra.mxu0 %v5384
      %v5476 = vpop.f32.mrf.mxu0
      %v5477 = vadd.f32 0.0, %v5476
      %v5478 = vpop.f32.mrf.mxu0
      %v5479 = vpop.f32.mrf.mxu0
      %v5480 = vadd.f32 0.0, %v5479
      %v5481 = vpop.f32.mrf.mxu0
      %5482 = vdwg.mxu0
      %v5483 = vadd.f32 %v5218, %v5421
      %v5484 = vadd.f32 %v5219, %v5424
      %v5485 = vadd.f32 %v5220, %v5429
      %v5486 = vadd.f32 %v5221, %v5432
      %v5487 = vadd.f32 %v5222, %v5437
      %v5488 = vadd.f32 %v5223, %v5440
      %v5489 = vadd.f32 %v5224, %v5445
      %v5490 = vadd.f32 %v5225, %v5448
      %v5491 = vadd.f32 %v5226, %v5453
      %v5492 = vadd.f32 %v5227, %v5456
      %v5493 = vadd.f32 %v5228, %v5461
      %v5494 = vadd.f32 %v5229, %v5464
      %v5495 = vadd.f32 %v5230, %v5469
      %v5496 = vadd.f32 %v5231, %v5472
      %v5497 = vadd.f32 %v5232, %v5477
      %v5498 = vadd.f32 %v5233, %v5480
      %v5499 = vpack.c.bf16 %v5484, %v5483
      %v5500 = vpack.c.bf16 %v5486, %v5485
      %v5501 = vpack.c.bf16 %v5488, %v5487
      %v5502 = vpack.c.bf16 %v5490, %v5489
      %v5503 = vpack.c.bf16 %v5492, %v5491
      %v5504 = vpack.c.bf16 %v5494, %v5493
      %v5505 = vpack.c.bf16 %v5496, %v5495
      %v5506 = vpack.c.bf16 %v5498, %v5497
      %v5515 = vunpack.c.l.b16 %v5499
      %v5516 = vunpack.c.h.b16 %v5499
      %v5517 = vunpack.c.l.b16 %v5500
      %v5518 = vunpack.c.h.b16 %v5500
      %v5519 = vunpack.c.l.b16 %v5501
      %v5520 = vunpack.c.h.b16 %v5501
      %v5521 = vunpack.c.l.b16 %v5502
      %v5522 = vunpack.c.h.b16 %v5502
      %v5523 = vunpack.c.l.b16 %v5503
      %v5524 = vunpack.c.h.b16 %v5503
      %v5525 = vunpack.c.l.b16 %v5504
      %v5526 = vunpack.c.h.b16 %v5504
      %v5527 = vunpack.c.l.b16 %v5505
      %v5528 = vunpack.c.h.b16 %v5505
      %v5529 = vunpack.c.l.b16 %v5506
      %v5530 = vunpack.c.h.b16 %v5506
      %v5531 = vpack.c.b16 %v5515, %v5515
      %v5532 = vpack.c.b16 %v5516, %v5516
      %v5533 = vpack.c.b16 %v5517, %v5517
      %v5534 = vpack.c.b16 %v5518, %v5518
      %v5535 = vpack.c.b16 %v5519, %v5519
      %v5536 = vpack.c.b16 %v5520, %v5520
      %v5537 = vpack.c.b16 %v5521, %v5521
      %v5538 = vpack.c.b16 %v5522, %v5522
      %v5539 = vpack.c.b16 %v5523, %v5523
      %v5540 = vpack.c.b16 %v5524, %v5524
      %v5541 = vpack.c.b16 %v5525, %v5525
      %v5542 = vpack.c.b16 %v5526, %v5526
      %v5543 = vpack.c.b16 %v5527, %v5527
      %v5544 = vpack.c.b16 %v5528, %v5528
      %v5545 = vpack.c.b16 %v5529, %v5529
      %v5546 = vpack.c.b16 %v5530, %v5530
      %5563 = vst.msk [vmem:[%s208 + $0x40] sm:$0xf] %vm2842, %v5531
      %5564 = vst.msk [vmem:[%s208 + $0x44] sm:$0xf] %vm2842, %v5532
      %5565 = vst.msk [vmem:[%s208 + $0x48] sm:$0xf] %vm2842, %v5533
      %5566 = vst.msk [vmem:[%s208 + $0x4c] sm:$0xf] %vm2842, %v5534
      %5567 = vst.msk [vmem:[%s208 + $0x50] sm:$0xf] %vm2842, %v5535
      %5568 = vst.msk [vmem:[%s208 + $0x54] sm:$0xf] %vm2842, %v5536
      %5569 = vst.msk [vmem:[%s208 + $0x58] sm:$0xf] %vm2842, %v5537
      %5570 = vst.msk [vmem:[%s208 + $0x5c] sm:$0xf] %vm2842, %v5538
      %5571 = vst.msk [vmem:[%s208 + $0x60] sm:$0xf] %vm2842, %v5539
      %5572 = vst.msk [vmem:[%s208 + $0x64] sm:$0xf] %vm2842, %v5540
      %5573 = vst.msk [vmem:[%s208 + $0x68] sm:$0xf] %vm2842, %v5541
      %5574 = vst.msk [vmem:[%s208 + $0x6c] sm:$0xf] %vm2842, %v5542
      %5575 = vst.msk [vmem:[%s208 + $0x70] sm:$0xf] %vm2842, %v5543
      %5576 = vst.msk [vmem:[%s208 + $0x74] sm:$0xf] %vm2842, %v5544
      %5577 = vst.msk [vmem:[%s208 + $0x78] sm:$0xf] %vm2842, %v5545
      %5578 = vst.msk [vmem:[%s208 + $0x7c] sm:$0xf] %vm2842, %v5546
      %v5579 = vsel %vm480, %v5483, 0.0
      %v5580 = vsel %vm480, %v5484, 0.0
      %v5581 = vadd.f32 %v5579, %v5580
      %v5582 = vsel %vm480, %v5485, 0.0
      %v5583 = vadd.f32 %v5581, %v5582
      %v5584 = vsel %vm480, %v5486, 0.0
      %v5585 = vadd.f32 %v5583, %v5584
      %v5586 = vsel %vm480, %v5487, 0.0
      %v5587 = vadd.f32 %v5585, %v5586
      %v5588 = vsel %vm480, %v5488, 0.0
      %v5589 = vadd.f32 %v5587, %v5588
      %v5590 = vsel %vm480, %v5489, 0.0
      %v5591 = vadd.f32 %v5589, %v5590
      %v5592 = vsel %vm480, %v5490, 0.0
      %v5593 = vadd.f32 %v5591, %v5592
      %v5594 = vsel %vm480, %v5491, 0.0
      %v5595 = vadd.f32 %v5593, %v5594
      %v5596 = vsel %vm480, %v5492, 0.0
      %v5597 = vadd.f32 %v5595, %v5596
      %v5598 = vsel %vm480, %v5493, 0.0
      %v5599 = vadd.f32 %v5597, %v5598
      %v5600 = vsel %vm480, %v5494, 0.0
      %v5601 = vadd.f32 %v5599, %v5600
      %v5602 = vsel %vm480, %v5495, 0.0
      %v5603 = vadd.f32 %v5601, %v5602
      %v5604 = vsel %vm480, %v5496, 0.0
      %v5605 = vadd.f32 %v5603, %v5604
      %v5606 = vsel %vm480, %v5497, 0.0
      %v5607 = vadd.f32 %v5605, %v5606
      %v5608 = vsel %vm480, %v5498, 0.0
      %v5609 = vadd.f32 %v5607, %v5608
      %v5610 = vrot.slane %v5609, 4
      %v5611 = vadd.f32 %v5609, %v5610
      %v5612 = vrot.slane %v5611, 2
      %v5613 = vadd.f32 %v5611, %v5612
      %v5614 = vrot.slane %v5613, 1
      %v5615 = vadd.f32 %v5613, %v5614
      %v5616 = vadd.f32 %v2896, %v5615
      %v5617 = vmul.f32 %v5483, %v5483
      %v5618 = vmul.f32 %v5484, %v5484
      %v5619 = vmul.f32 %v5485, %v5485
      %v5620 = vmul.f32 %v5486, %v5486
      %v5621 = vmul.f32 %v5487, %v5487
      %v5622 = vmul.f32 %v5488, %v5488
      %v5623 = vmul.f32 %v5489, %v5489
      %v5624 = vmul.f32 %v5490, %v5490
      %v5625 = vmul.f32 %v5491, %v5491
      %v5626 = vmul.f32 %v5492, %v5492
      %v5627 = vmul.f32 %v5493, %v5493
      %v5628 = vmul.f32 %v5494, %v5494
      %v5629 = vmul.f32 %v5495, %v5495
      %v5630 = vmul.f32 %v5496, %v5496
      %v5631 = vmul.f32 %v5497, %v5497
      %v5632 = vmul.f32 %v5498, %v5498
      %v5633 = vsel %vm480, %v5617, 0.0
      %v5634 = vsel %vm480, %v5618, 0.0
      %v5635 = vadd.f32 %v5633, %v5634
      %v5636 = vsel %vm480, %v5619, 0.0
      %v5637 = vadd.f32 %v5635, %v5636
      %v5638 = vsel %vm480, %v5620, 0.0
      %v5639 = vadd.f32 %v5637, %v5638
      %v5640 = vsel %vm480, %v5621, 0.0
      %v5641 = vadd.f32 %v5639, %v5640
      %v5642 = vsel %vm480, %v5622, 0.0
      %v5643 = vadd.f32 %v5641, %v5642
      %v5644 = vsel %vm480, %v5623, 0.0
      %v5645 = vadd.f32 %v5643, %v5644
      %v5646 = vsel %vm480, %v5624, 0.0
      %v5647 = vadd.f32 %v5645, %v5646
      %v5648 = vsel %vm480, %v5625, 0.0
      %v5649 = vadd.f32 %v5647, %v5648
      %v5650 = vsel %vm480, %v5626, 0.0
      %v5651 = vadd.f32 %v5649, %v5650
      %v5652 = vsel %vm480, %v5627, 0.0
      %v5653 = vadd.f32 %v5651, %v5652
      %v5654 = vsel %vm480, %v5628, 0.0
      %v5655 = vadd.f32 %v5653, %v5654
      %v5656 = vsel %vm480, %v5629, 0.0
      %v5657 = vadd.f32 %v5655, %v5656
      %v5658 = vsel %vm480, %v5630, 0.0
      %v5659 = vadd.f32 %v5657, %v5658
      %v5660 = vsel %vm480, %v5631, 0.0
      %v5661 = vadd.f32 %v5659, %v5660
      %v5662 = vsel %vm480, %v5632, 0.0
      %v5663 = vadd.f32 %v5661, %v5662
      %v5664 = vrot.slane %v5663, 4
      %v5665 = vadd.f32 %v5663, %v5664
      %v5666 = vrot.slane %v5665, 2
      %v5667 = vadd.f32 %v5665, %v5666
      %v5668 = vrot.slane %v5667, 1
      %v5669 = vadd.f32 %v5667, %v5668
      %v5670 = vadd.f32 %v2950, %v5669
      %vm5671 = vcmask 253952
      %5672 = vst.msk [vmem:[%s211] sm:$0x1] %vm5671, %v5616
      %5673 = vst.msk [vmem:[%s214] sm:$0x1] %vm5671, %v5670
      %p5674 = scmp.lt.s32.totalorder %s16, 1
      %s5675 = scalar_select %p5674, %s16, 1
      %s5676 = smul.addr %s5675, 32
      %s5677 = smul.addr %s5676, 4
      %s5678 = scalar_lea.vmem %s2, %s5677
      %p5679 = scmp.lt.s32.totalorder %s16, 1
      %s5680 = scalar_select %p5679, %s16, 1
      %s5681 = scalar_lea.vmem %s3, %s5680
      %p5682 = scmp.lt.s32.totalorder %s16, 1
      %s5683 = scalar_select %p5682, %s16, 1
      %s5684 = scalar_lea.vmem %s4, %s5683
      // Predicated region
      $region29: #{_lambda_.2} parent=27 // pred_check
        %p5685 = pneg %p81
      $region30: #{_lambda_.2} parent=27 // pred_check_branch
        %5687 = sbr.rel (%p5685) target = $region32
      $region31: #{_lambda_.2} parent=27 // pred_region
        _
      $region32: #{_lambda_.2} parent=27 // pred_fallthru
        _
      // Predicated region
      $region33: #{_lambda_.2} parent=27 // pred_check
        %p5688 = pneg %p107
      $region34: #{_lambda_.2} parent=27 // pred_check_branch
        %5690 = sbr.rel (%p5688) target = $region36
      $region35: #{_lambda_.2} parent=27 // pred_region
        _
      $region36: #{_lambda_.2} parent=27 // pred_fallthru
        _
      // Predicated region
      $region37: #{_lambda_.2} parent=27 // pred_check
        %p5691 = pneg %p133
      $region38: #{_lambda_.2} parent=27 // pred_check_branch
        %5693 = sbr.rel (%p5691) target = $region40
      $region39: #{_lambda_.2} parent=27 // pred_region
        _
      $region40: #{_lambda_.2} parent=27 // pred_fallthru
        _
    $region28: #{_lambda_.2} parent=5 // pred_fallthru
      _
    %p5694 = scmp.le.s32.totalorder 2, %s11
    // Predicated region
    $region41: #{_lambda_.2} parent=5 // pred_check
      %p5695 = pneg %p5694
    $region42: #{_lambda_.2} parent=5 // pred_check_branch
      %5697 = sbr.rel (%p5695) target = $region44
    $region43: #{_lambda_.2} parent=5 // pred_region
      %s5698 = ssub.s32 %s11, 2
      // Predicated region
      $region45: #{_lambda_.2} parent=43 // pred_check
        %p5699 = pneg %p87
      $region46: #{_lambda_.2} parent=43 // pred_check_branch
        %5701 = sbr.rel (%p5699) target = $region48
      $region47: #{_lambda_.2} parent=43 // pred_region
        %p5702 = scmp.lt.s32.totalorder %s17, 1
        %s5703 = scalar_select %p5702, %s17, 1
        %s5704 = smul.addr %s5703, 32
        %s5705 = smul.addr %s5704, 4
        %s5706 = scalar_lea.vmem %s2, %s5705
      $region48: #{_lambda_.2} parent=43 // pred_fallthru
        _
      // Predicated region
      $region49: #{_lambda_.2} parent=43 // pred_check
        %p5707 = pneg %p113
      $region50: #{_lambda_.2} parent=43 // pred_check_branch
        %5709 = sbr.rel (%p5707) target = $region52
      $region51: #{_lambda_.2} parent=43 // pred_region
        %p5710 = scmp.lt.s32.totalorder %s17, 1
        %s5711 = scalar_select %p5710, %s17, 1
        %s5712 = scalar_lea.vmem %s3, %s5711
      $region52: #{_lambda_.2} parent=43 // pred_fallthru
        _
      // Predicated region
      $region53: #{_lambda_.2} parent=43 // pred_check
        %p5713 = pneg %p139
      $region54: #{_lambda_.2} parent=43 // pred_check_branch
        %5715 = sbr.rel (%p5713) target = $region56
      $region55: #{_lambda_.2} parent=43 // pred_region
        %p5716 = scmp.lt.s32.totalorder %s17, 1
        %s5717 = scalar_select %p5716, %s17, 1
        %s5718 = scalar_lea.vmem %s4, %s5717
      $region56: #{_lambda_.2} parent=43 // pred_fallthru
        _
    $region44: #{_lambda_.2} parent=5 // pred_fallthru
      _
  $region6: #{_lambda_.2} parent=0 // loop_footer
    %s15 = sadd.s32 1, %s11
  $region7: #{_lambda_.2} parent=0 // loop_footer_branch
    %10 = sbr.rel target = $region3
  $region8: #{_lambda_.2} parent=0 // loop_exit
    _

</llo_original>
